<compile_context>
chip_gen: v5e
topology: v5e:2x2
jax: 0.10.0
libtpu: 0.0.40
codegen_flags: <defaults>
</compile_context>

<pallas_src>
import functools

import jax
import jax.numpy as jnp
from jax import lax
from jax.experimental import pallas as pl
from jax.experimental.pallas import tpu as pltpu


# ---------------------------------------------------------------------------
# VMEM budgets (generation aware, consistent sizing budget vs. scoped limit).
# ---------------------------------------------------------------------------
@functools.lru_cache(maxsize=None)
def _vmem_budgets():
    cap = 64 * 1024 * 1024  # conservative default (v7x per-TensorCore VMEM)
    try:
        info = pltpu.get_tpu_info()
        cap_attr = int(getattr(info, "vmem_capacity_bytes", 0))
        if cap_attr > 0:
            cap = cap_attr
    except Exception:
        pass
    sizing = min((cap * 3) // 5, 96 * 1024 * 1024)   # tile-sizing budget
    limit = min((cap * 3) // 4, 100 * 1024 * 1024)   # scoped VMEM limit
    return int(sizing), int(limit)


# ---------------------------------------------------------------------------
# Kernel body.
# ---------------------------------------------------------------------------
def _dwconv3x3_kernel(ctr_ref, top_ref, bot_ref, w_ref, b_ref, o_ref, *, H):
    """One (group, row-tile) step.

    ctr_ref : (TH, W, SUB, LANE)  body rows of this tile (no spatial padding)
    top_ref : (1,  W, SUB, LANE)  row directly above the tile
    bot_ref : (1,  W, SUB, LANE)  row directly below the tile
    w_ref   : (3, 3, SUB, LANE)   per-lane taps, replicated across sublanes
    b_ref   : (SUB, LANE)         per-lane bias
    o_ref   : (TH, W, SUB, LANE)  output tile
    """
    TH, W = o_ref.shape[0], o_ref.shape[1]
    SUB, LANE = o_ref.shape[2], o_ref.shape[3]
    th = pl.program_id(1)
    row0 = th * TH

    f32 = jnp.float32
    out_dt = o_ref.dtype
    w = w_ref[...].astype(f32)            # (3, 3, SUB, LANE)
    bv = b_ref[...].astype(f32)           # (SUB, LANE)

    x = ctr_ref[...].astype(f32)          # (TH, W, SUB, LANE)
    if H % TH != 0:
        # Last (partial) row tile: zero the rows that fall past the image so the
        # "below" taps of the last valid row see the conv's zero padding
        # (derived from H, not from the grid extent).
        r = lax.broadcasted_iota(jnp.int32, (TH, 1, SUB, LANE), 0)
        x = jnp.where(row0 + r < H, x, 0.0)

    # Halo rows, zeroed at the true image boundary (conv zero padding).
    top = jnp.where(row0 > 0, top_ref[...].astype(f32), 0.0)       # (1, W, SUB, LANE)
    bot = jnp.where(row0 + TH < H, bot_ref[...].astype(f32), 0.0)  # (1, W, SUB, LANE)

    def conv_rows(r0, r1, xa, xm, xb):
        """Write output rows [r0:r1). xa/xm/xb: rows above/at/below them."""
        # Interior columns 1..W-2 : all 9 taps; 3 partial accumulators for ILP.
        a0 = xa[:, 0:W - 2] * w[0, 0]
        a1 = xa[:, 1:W - 1] * w[0, 1]
        a2 = xa[:, 2:W] * w[0, 2]
        a0 = a0 + xm[:, 0:W - 2] * w[1, 0]
        a1 = a1 + xm[:, 1:W - 1] * w[1, 1]
        a2 = a2 + xm[:, 2:W] * w[1, 2]
        a0 = a0 + xb[:, 0:W - 2] * w[2, 0]
        a1 = a1 + xb[:, 1:W - 1] * w[2, 1]
        a2 = a2 + xb[:, 2:W] * w[2, 2]
        o_ref[r0:r1, 1:W - 1] = (a0 + a1 + (a2 + bv)).astype(out_dt)

        # Column 0: the left tap falls in the zero padding.
        c0 = (xa[:, 0:1] * w[0, 1] + xa[:, 1:2] * w[0, 2]
              + xm[:, 0:1] * w[1, 1] + xm[:, 1:2] * w[1, 2]
              + xb[:, 0:1] * w[2, 1] + xb[:, 1:2] * w[2, 2])
        o_ref[r0:r1, 0:1] = (c0 + bv).astype(out_dt)

        # Column W-1: the right tap falls in the zero padding.
        c1 = (xa[:, W - 2:W - 1] * w[0, 0] + xa[:, W - 1:W] * w[0, 1]
              + xm[:, W - 2:W - 1] * w[1, 0] + xm[:, W - 1:W] * w[1, 1]
              + xb[:, W - 2:W - 1] * w[2, 0] + xb[:, W - 1:W] * w[2, 1])
        o_ref[r0:r1, W - 1:W] = (c1 + bv).astype(out_dt)

    # Interior output rows 1..TH-2: every input row comes from the body tile.
    conv_rows(1, TH - 1, x[0:TH - 2], x[1:TH - 1], x[2:TH])
    # First row of the tile: the row above comes from the (masked) top halo.
    conv_rows(0, 1, top, x[0:1], x[1:2])
    # Last row of the tile: the row below comes from the (masked) bottom halo.
    conv_rows(TH - 1, TH, x[TH - 2:TH - 1], x[TH - 1:TH], bot)


# ---------------------------------------------------------------------------
# Relayout-free core: x already in the (G, H, W, SUB, LANE) grouped layout.
# ---------------------------------------------------------------------------
def _dwconv3x3_grouped(xg, wg, bg, *, sizing_budget, vmem_limit):
    G, H, W, SUB, LANE = xg.shape
    assert wg.shape == (3, 3, G, SUB, LANE) and bg.shape == (G, SUB, LANE)
    assert H >= 3 and W >= 3, "this DWConv kernel requires H >= 3 and W >= 3"

    io_bytes = xg.dtype.itemsize
    out_dtype = xg.dtype

    # Row-tile height against the generation-aware VMEM budget.
    row_elems = W * SUB * LANE
    per_row = row_elems * (4 * io_bytes + 5 * 4)       # dbuf in + dbuf out + f32 temps
    fixed = row_elems * 8 * io_bytes + 64 * 1024       # halos, weights, bias, misc
    TH = int(max(3, min(H, (sizing_budget - fixed) // max(per_row, 1))))
    n_h = -(-H // TH)
    # Keep at least 2 grid steps so both v7x TensorCores get work.
    if G * n_h < 2 and H >= 6:
        TH = max(3, -(-H // 2))
        n_h = -(-H // TH)

    kern = functools.partial(_dwconv3x3_kernel, H=H)

    return pl.pallas_call(
        kern,
        out_shape=jax.ShapeDtypeStruct((G, H, W, SUB, LANE), out_dtype),
        grid=(G, n_h),
        in_specs=[
            # Body rows of the tile.
            pl.BlockSpec((None, TH, W, SUB, LANE), lambda g, t: (g, t, 0, 0, 0)),
            # One-row halo above (block size 1 => block index == row index).
            pl.BlockSpec((None, 1, W, SUB, LANE),
                         lambda g, t: (g, jnp.maximum(t * TH - 1, 0), 0, 0, 0)),
            # One-row halo below.
            pl.BlockSpec((None, 1, W, SUB, LANE),
                         lambda g, t: (g, jnp.minimum((t + 1) * TH, H - 1), 0, 0, 0)),
            # Per-lane weights / bias (constant along the inner row-tile loop).
            pl.BlockSpec((3, 3, None, SUB, LANE), lambda g, t: (0, 0, g, 0, 0)),
            pl.BlockSpec((None, SUB, LANE), lambda g, t: (g, 0, 0)),
        ],
        out_specs=pl.BlockSpec((None, TH, W, SUB, LANE), lambda g, t: (g, t, 0, 0, 0)),
        compiler_params=pltpu.CompilerParams(
            dimension_semantics=("parallel", "parallel"),
            vmem_limit_bytes=int(vmem_limit)),
    )(xg, xg, xg, wg, bg)


@functools.partial(jax.jit, static_argnames=("sizing_budget", "vmem_limit"))
def _grouped_jit(xg, wg, bg, *, sizing_budget, vmem_limit):
    return _dwconv3x3_grouped(xg, wg, bg,
                              sizing_budget=sizing_budget, vmem_limit=vmem_limit)


def dwconv3x3_grouped(xg, wg, bg):
    """Relayout-free entry point: inputs already in (G, H, W, SUB, 128) layout."""
    sizing, limit = _vmem_budgets()
    return _grouped_jit(xg, wg, bg, sizing_budget=sizing, vmem_limit=limit)


# ---------------------------------------------------------------------------
# NCHW wrapper (PyTorch-compatible).  The channel pad is fused into the single
# relayout copy; W/H are never spatially padded in HBM.
# ---------------------------------------------------------------------------
@functools.partial(jax.jit, static_argnames=("io_dtype", "sizing_budget", "vmem_limit"))
def _dwconv3x3_nchw(x, weight, bias, *, io_dtype, sizing_budget, vmem_limit):
    B, C, H, W = x.shape
    assert weight.shape == (C, 1, 3, 3) and bias.shape == (C,)
    out_dtype = x.dtype
    io_dt = out_dtype if io_dtype is None else io_dtype

    BC = B * C
    LANE = 128
    nv = -(-BC // LANE)            # number of 128-lane vregs of channels
    G = -(-nv // 8)                # groups of <=8 sublanes
    SUB = -(-nv // G)
    BCp = G * SUB * LANE

    # NCHW -> (G, H, W, SUB, LANE); channel padding fused into this relayout.
    xf = jnp.transpose(x, (2, 3, 0, 1)).reshape(H, W, BC).astype(io_dt)
    xf = jnp.pad(xf, ((0, 0), (0, 0), (0, BCp - BC)))
    xg = jnp.transpose(xf.reshape(H, W, G, SUB, LANE), (2, 0, 1, 3, 4))

    # Per-lane weights / bias, replicated over batch and laid onto (SUB, LANE)
    # so each tap multiply is a plain full-vreg operand.
    w33 = jnp.transpose(weight[:, 0], (1, 2, 0)).astype(io_dt)        # (3, 3, C)
    w33 = jnp.pad(jnp.tile(w33, (1, 1, B)), ((0, 0), (0, 0), (0, BCp - BC)))
    wg = w33.reshape(3, 3, G, SUB, LANE)
    bl = jnp.pad(jnp.tile(bias.astype(jnp.float32), (B,)), (0, BCp - BC))
    bg = bl.reshape(G, SUB, LANE)

    og = _dwconv3x3_grouped(xg, wg, bg,
                            sizing_budget=sizing_budget, vmem_limit=vmem_limit)

    # (G, H, W, SUB, LANE) -> NCHW
    out = jnp.transpose(og, (1, 2, 0, 3, 4)).reshape(H, W, BCp)[:, :, :BC]
    out = jnp.transpose(out.reshape(H, W, B, C), (2, 3, 0, 1))
    return out.astype(out_dtype)


def dwconv3x3(x_nchw, weight, bias, io_dtype=None):
    """Pallas DWConv forward. x: (B, C, H, W); weight: (C, 1, 3, 3); bias: (C,).

    io_dtype=jnp.bfloat16 enables the half-HBM-traffic I/O path (f32 accumulation).
    """
    sizing, limit = _vmem_budgets()
    return _dwconv3x3_nchw(x_nchw, weight, bias,
                           io_dtype=io_dtype, sizing_budget=sizing, vmem_limit=limit)


# ---------------------------------------------------------------------------
# Pure-JAX reference (matches nn.Conv2d(dim, dim, 3, 1, 1, groups=dim)).
# ---------------------------------------------------------------------------
def ref_dwconv3x3(x, weight, bias):
    C = x.shape[1]
    y = lax.conv_general_dilated(
        x, weight, window_strides=(1, 1), padding=[(1, 1), (1, 1)],
        dimension_numbers=("NCHW", "OIHW", "NCHW"), feature_group_count=C)
    return y + bias[None, :, None, None]


if __name__ == "__main__":
    key = jax.random.PRNGKey(0)
    kx, kw, kb = jax.random.split(key, 3)

    B, C, H, W = 2, 4, 16, 16
    x = jax.random.normal(kx, (B, C, H, W), jnp.float32)
    weight = jax.random.normal(kw, (C, 1, 3, 3), jnp.float32) * 0.2
    bias = jax.random.normal(kb, (C,), jnp.float32) * 0.1

    y = jax.block_until_ready(dwconv3x3(x, weight, bias))
    y_ref = jax.block_until_ready(ref_dwconv3x3(x, weight, bias))
    assert y.shape == (B, C, H, W)
    err = float(jnp.max(jnp.abs(y - y_ref)))
    assert jnp.allclose(y, y_ref, rtol=1e-4, atol=1e-4), err

    # Odd spatial dims exercise the ragged row-tile / boundary-mask path.
    H2, W2 = 13, 17
    x2 = jax.random.normal(kx, (B, C, H2, W2), jnp.float32)
    y2 = jax.block_until_ready(dwconv3x3(x2, weight, bias))
    y2_ref = jax.block_until_ready(ref_dwconv3x3(x2, weight, bias))
    err2 = float(jnp.max(jnp.abs(y2 - y2_ref)))
    assert jnp.allclose(y2, y2_ref, rtol=1e-4, atol=1e-4), err2

    print("KERNEL_OK")
</pallas_src>

<mosaic_0001>
module attributes {stable_mosaic.version = 11 : i64} {
  func.func @_dwconv3x3_kernel(%arg0: i32, %arg1: i32, %arg2: memref<1x8x16x1x128xf32, #tpu.memory_space<vmem>>, %arg3: memref<1x1x16x1x128xf32, #tpu.memory_space<vmem>>, %arg4: memref<1x1x16x1x128xf32, #tpu.memory_space<vmem>>, %arg5: memref<3x3x1x1x128xf32, #tpu.memory_space<vmem>>, %arg6: memref<1x1x128xf32, #tpu.memory_space<vmem>>, %arg7: memref<1x8x16x1x128xf32, #tpu.memory_space<vmem>>) attributes {dimension_semantics = [#tpu.dimension_semantics<parallel>, #tpu.dimension_semantics<parallel>], iteration_bounds = array<i64: 1, 2>, scalar_prefetch = 0 : i64, scratch_operands = 0 : i64, tpu.core_type = #tpu.core_type<tc>, window_params = [{transform_indices = @transform_0, window_bounds = array<i64: 1, 8, 16, 1, 128>}, {transform_indices = @transform_1, window_bounds = array<i64: 1, 1, 16, 1, 128>}, {transform_indices = @transform_2, window_bounds = array<i64: 1, 1, 16, 1, 128>}, {transform_indices = @transform_3, window_bounds = array<i64: 3, 3, 1, 1, 128>}, {transform_indices = @transform_4, window_bounds = array<i64: 1, 1, 128>}, {transform_indices = @transform_5, window_bounds = array<i64: 1, 8, 16, 1, 128>}]} {
    %c8_i32 = arith.constant 8 : i32
    %0 = arith.muli %arg1, %c8_i32 : i32
    %c0 = arith.constant 0 : index
    %c0_0 = arith.constant 0 : index
    %c0_1 = arith.constant 0 : index
    %c0_2 = arith.constant 0 : index
    %c0_3 = arith.constant 0 : index
    %1 = vector.load %arg5[%c0, %c0_0, %c0_1, %c0_2, %c0_3] : memref<3x3x1x1x128xf32, #tpu.memory_space<vmem>>, vector<3x3x1x1x128xf32>
    %2 = vector.shape_cast %1 : vector<3x3x1x1x128xf32> to vector<3x3x1x128xf32>
    %c0_4 = arith.constant 0 : index
    %c0_5 = arith.constant 0 : index
    %c0_6 = arith.constant 0 : index
    %3 = vector.load %arg6[%c0_4, %c0_5, %c0_6] : memref<1x1x128xf32, #tpu.memory_space<vmem>>, vector<1x1x128xf32>
    %4 = vector.shape_cast %3 : vector<1x1x128xf32> to vector<1x128xf32>
    %c0_7 = arith.constant 0 : index
    %c0_8 = arith.constant 0 : index
    %c0_9 = arith.constant 0 : index
    %c0_10 = arith.constant 0 : index
    %c0_11 = arith.constant 0 : index
    %5 = vector.load %arg2[%c0_7, %c0_8, %c0_9, %c0_10, %c0_11] : memref<1x8x16x1x128xf32, #tpu.memory_space<vmem>>, vector<1x8x16x1x128xf32>
    %6 = vector.shape_cast %5 : vector<1x8x16x1x128xf32> to vector<8x16x1x128xf32>
    %c0_i32 = arith.constant 0 : i32
    %7 = arith.cmpi sgt, %0, %c0_i32 : i32
    %c0_12 = arith.constant 0 : index
    %c0_13 = arith.constant 0 : index
    %c0_14 = arith.constant 0 : index
    %c0_15 = arith.constant 0 : index
    %c0_16 = arith.constant 0 : index
    %8 = vector.load %arg3[%c0_12, %c0_13, %c0_14, %c0_15, %c0_16] : memref<1x1x16x1x128xf32, #tpu.memory_space<vmem>>, vector<1x1x16x1x128xf32>
    %9 = vector.shape_cast %8 : vector<1x1x16x1x128xf32> to vector<1x16x1x128xf32>
    %cst = arith.constant 0.000000e+00 : f32
    %10 = vector.broadcast %cst : f32 to vector<1x16x1x128xf32>
    %11 = arith.select %7, %9, %10 : vector<1x16x1x128xf32>
    %c8_i32_17 = arith.constant 8 : i32
    %12 = arith.addi %0, %c8_i32_17 : i32
    %c16_i32 = arith.constant 16 : i32
    %13 = arith.cmpi slt, %12, %c16_i32 : i32
    %c0_18 = arith.constant 0 : index
    %c0_19 = arith.constant 0 : index
    %c0_20 = arith.constant 0 : index
    %c0_21 = arith.constant 0 : index
    %c0_22 = arith.constant 0 : index
    %14 = vector.load %arg4[%c0_18, %c0_19, %c0_20, %c0_21, %c0_22] : memref<1x1x16x1x128xf32, #tpu.memory_space<vmem>>, vector<1x1x16x1x128xf32>
    %15 = vector.shape_cast %14 : vector<1x1x16x1x128xf32> to vector<1x16x1x128xf32>
    %cst_23 = arith.constant 0.000000e+00 : f32
    %16 = vector.broadcast %cst_23 : f32 to vector<1x16x1x128xf32>
    %17 = arith.select %13, %15, %16 : vector<1x16x1x128xf32>
    %18 = vector.extract_strided_slice %6 {offsets = [0, 0, 0, 0], sizes = [6, 16, 1, 128], strides = [1, 1, 1, 1]} : vector<8x16x1x128xf32> to vector<6x16x1x128xf32>
    %19 = vector.extract_strided_slice %6 {offsets = [1, 0, 0, 0], sizes = [6, 16, 1, 128], strides = [1, 1, 1, 1]} : vector<8x16x1x128xf32> to vector<6x16x1x128xf32>
    %20 = vector.extract_strided_slice %6 {offsets = [2, 0, 0, 0], sizes = [6, 16, 1, 128], strides = [1, 1, 1, 1]} : vector<8x16x1x128xf32> to vector<6x16x1x128xf32>
    %21 = vector.extract_strided_slice %18 {offsets = [0, 0, 0, 0], sizes = [6, 14, 1, 128], strides = [1, 1, 1, 1]} : vector<6x16x1x128xf32> to vector<6x14x1x128xf32>
    %22 = vector.extract_strided_slice %2 {offsets = [0, 0, 0, 0], sizes = [1, 1, 1, 128], strides = [1, 1, 1, 1]} : vector<3x3x1x128xf32> to vector<1x1x1x128xf32>
    %23 = vector.shape_cast %22 : vector<1x1x1x128xf32> to vector<1x128xf32>
    %24 = vector.shape_cast %23 : vector<1x128xf32> to vector<1x1x1x128xf32>
    %25 = vector.broadcast %24 : vector<1x1x1x128xf32> to vector<6x14x1x128xf32>
    %26 = arith.mulf %21, %25 : vector<6x14x1x128xf32>
    %27 = vector.extract_strided_slice %18 {offsets = [0, 1, 0, 0], sizes = [6, 14, 1, 128], strides = [1, 1, 1, 1]} : vector<6x16x1x128xf32> to vector<6x14x1x128xf32>
    %28 = vector.extract_strided_slice %2 {offsets = [0, 1, 0, 0], sizes = [1, 1, 1, 128], strides = [1, 1, 1, 1]} : vector<3x3x1x128xf32> to vector<1x1x1x128xf32>
    %29 = vector.shape_cast %28 : vector<1x1x1x128xf32> to vector<1x128xf32>
    %30 = vector.shape_cast %29 : vector<1x128xf32> to vector<1x1x1x128xf32>
    %31 = vector.broadcast %30 : vector<1x1x1x128xf32> to vector<6x14x1x128xf32>
    %32 = arith.mulf %27, %31 : vector<6x14x1x128xf32>
    %33 = vector.extract_strided_slice %18 {offsets = [0, 2, 0, 0], sizes = [6, 14, 1, 128], strides = [1, 1, 1, 1]} : vector<6x16x1x128xf32> to vector<6x14x1x128xf32>
    %34 = vector.extract_strided_slice %2 {offsets = [0, 2, 0, 0], sizes = [1, 1, 1, 128], strides = [1, 1, 1, 1]} : vector<3x3x1x128xf32> to vector<1x1x1x128xf32>
    %35 = vector.shape_cast %34 : vector<1x1x1x128xf32> to vector<1x128xf32>
    %36 = vector.shape_cast %35 : vector<1x128xf32> to vector<1x1x1x128xf32>
    %37 = vector.broadcast %36 : vector<1x1x1x128xf32> to vector<6x14x1x128xf32>
    %38 = arith.mulf %33, %37 : vector<6x14x1x128xf32>
    %39 = vector.extract_strided_slice %19 {offsets = [0, 0, 0, 0], sizes = [6, 14, 1, 128], strides = [1, 1, 1, 1]} : vector<6x16x1x128xf32> to vector<6x14x1x128xf32>
    %40 = vector.extract_strided_slice %2 {offsets = [1, 0, 0, 0], sizes = [1, 1, 1, 128], strides = [1, 1, 1, 1]} : vector<3x3x1x128xf32> to vector<1x1x1x128xf32>
    %41 = vector.shape_cast %40 : vector<1x1x1x128xf32> to vector<1x128xf32>
    %42 = vector.shape_cast %41 : vector<1x128xf32> to vector<1x1x1x128xf32>
    %43 = vector.broadcast %42 : vector<1x1x1x128xf32> to vector<6x14x1x128xf32>
    %44 = arith.mulf %39, %43 : vector<6x14x1x128xf32>
    %45 = arith.addf %26, %44 : vector<6x14x1x128xf32>
    %46 = vector.extract_strided_slice %19 {offsets = [0, 1, 0, 0], sizes = [6, 14, 1, 128], strides = [1, 1, 1, 1]} : vector<6x16x1x128xf32> to vector<6x14x1x128xf32>
    %47 = vector.extract_strided_slice %2 {offsets = [1, 1, 0, 0], sizes = [1, 1, 1, 128], strides = [1, 1, 1, 1]} : vector<3x3x1x128xf32> to vector<1x1x1x128xf32>
    %48 = vector.shape_cast %47 : vector<1x1x1x128xf32> to vector<1x128xf32>
    %49 = vector.shape_cast %48 : vector<1x128xf32> to vector<1x1x1x128xf32>
    %50 = vector.broadcast %49 : vector<1x1x1x128xf32> to vector<6x14x1x128xf32>
    %51 = arith.mulf %46, %50 : vector<6x14x1x128xf32>
    %52 = arith.addf %32, %51 : vector<6x14x1x128xf32>
    %53 = vector.extract_strided_slice %19 {offsets = [0, 2, 0, 0], sizes = [6, 14, 1, 128], strides = [1, 1, 1, 1]} : vector<6x16x1x128xf32> to vector<6x14x1x128xf32>
    %54 = vector.extract_strided_slice %2 {offsets = [1, 2, 0, 0], sizes = [1, 1, 1, 128], strides = [1, 1, 1, 1]} : vector<3x3x1x128xf32> to vector<1x1x1x128xf32>
    %55 = vector.shape_cast %54 : vector<1x1x1x128xf32> to vector<1x128xf32>
    %56 = vector.shape_cast %55 : vector<1x128xf32> to vector<1x1x1x128xf32>
    %57 = vector.broadcast %56 : vector<1x1x1x128xf32> to vector<6x14x1x128xf32>
    %58 = arith.mulf %53, %57 : vector<6x14x1x128xf32>
    %59 = arith.addf %38, %58 : vector<6x14x1x128xf32>
    %60 = vector.extract_strided_slice %20 {offsets = [0, 0, 0, 0], sizes = [6, 14, 1, 128], strides = [1, 1, 1, 1]} : vector<6x16x1x128xf32> to vector<6x14x1x128xf32>
    %61 = vector.extract_strided_slice %2 {offsets = [2, 0, 0, 0], sizes = [1, 1, 1, 128], strides = [1, 1, 1, 1]} : vector<3x3x1x128xf32> to vector<1x1x1x128xf32>
    %62 = vector.shape_cast %61 : vector<1x1x1x128xf32> to vector<1x128xf32>
    %63 = vector.shape_cast %62 : vector<1x128xf32> to vector<1x1x1x128xf32>
    %64 = vector.broadcast %63 : vector<1x1x1x128xf32> to vector<6x14x1x128xf32>
    %65 = arith.mulf %60, %64 : vector<6x14x1x128xf32>
    %66 = arith.addf %45, %65 : vector<6x14x1x128xf32>
    %67 = vector.extract_strided_slice %20 {offsets = [0, 1, 0, 0], sizes = [6, 14, 1, 128], strides = [1, 1, 1, 1]} : vector<6x16x1x128xf32> to vector<6x14x1x128xf32>
    %68 = vector.extract_strided_slice %2 {offsets = [2, 1, 0, 0], sizes = [1, 1, 1, 128], strides = [1, 1, 1, 1]} : vector<3x3x1x128xf32> to vector<1x1x1x128xf32>
    %69 = vector.shape_cast %68 : vector<1x1x1x128xf32> to vector<1x128xf32>
    %70 = vector.shape_cast %69 : vector<1x128xf32> to vector<1x1x1x128xf32>
    %71 = vector.broadcast %70 : vector<1x1x1x128xf32> to vector<6x14x1x128xf32>
    %72 = arith.mulf %67, %71 : vector<6x14x1x128xf32>
    %73 = arith.addf %52, %72 : vector<6x14x1x128xf32>
    %74 = vector.extract_strided_slice %20 {offsets = [0, 2, 0, 0], sizes = [6, 14, 1, 128], strides = [1, 1, 1, 1]} : vector<6x16x1x128xf32> to vector<6x14x1x128xf32>
    %75 = vector.extract_strided_slice %2 {offsets = [2, 2, 0, 0], sizes = [1, 1, 1, 128], strides = [1, 1, 1, 1]} : vector<3x3x1x128xf32> to vector<1x1x1x128xf32>
    %76 = vector.shape_cast %75 : vector<1x1x1x128xf32> to vector<1x128xf32>
    %77 = vector.shape_cast %76 : vector<1x128xf32> to vector<1x1x1x128xf32>
    %78 = vector.broadcast %77 : vector<1x1x1x128xf32> to vector<6x14x1x128xf32>
    %79 = arith.mulf %74, %78 : vector<6x14x1x128xf32>
    %80 = arith.addf %59, %79 : vector<6x14x1x128xf32>
    %81 = arith.addf %66, %73 : vector<6x14x1x128xf32>
    %82 = vector.shape_cast %4 : vector<1x128xf32> to vector<1x1x1x128xf32>
    %83 = vector.broadcast %82 : vector<1x1x1x128xf32> to vector<6x14x1x128xf32>
    %84 = arith.addf %80, %83 : vector<6x14x1x128xf32>
    %85 = arith.addf %81, %84 : vector<6x14x1x128xf32>
    %c0_24 = arith.constant 0 : index
    %c1 = arith.constant 1 : index
    %c1_25 = arith.constant 1 : index
    %c0_26 = arith.constant 0 : index
    %c0_27 = arith.constant 0 : index
    %86 = vector.load %arg7[%c0_24, %c1, %c1_25, %c0_26, %c0_27] : memref<1x8x16x1x128xf32, #tpu.memory_space<vmem>>, vector<1x6x14x1x128xf32>
    %87 = vector.shape_cast %86 : vector<1x6x14x1x128xf32> to vector<6x14x1x128xf32>
    %88 = vector.shape_cast %85 : vector<6x14x1x128xf32> to vector<1x6x14x1x128xf32>
    tpu.vector_store %arg7[%c0_24, %c1, %c1_25, %c0_26, %c0_27], %88 {strides = array<i32>} : memref<1x8x16x1x128xf32, #tpu.memory_space<vmem>>, vector<1x6x14x1x128xf32>,
    %89 = vector.extract_strided_slice %18 {offsets = [0, 0, 0, 0], sizes = [6, 1, 1, 128], strides = [1, 1, 1, 1]} : vector<6x16x1x128xf32> to vector<6x1x1x128xf32>
    %90 = vector.extract_strided_slice %2 {offsets = [0, 1, 0, 0], sizes = [1, 1, 1, 128], strides = [1, 1, 1, 1]} : vector<3x3x1x128xf32> to vector<1x1x1x128xf32>
    %91 = vector.shape_cast %90 : vector<1x1x1x128xf32> to vector<1x128xf32>
    %92 = vector.shape_cast %91 : vector<1x128xf32> to vector<1x1x1x128xf32>
    %93 = vector.broadcast %92 : vector<1x1x1x128xf32> to vector<6x1x1x128xf32>
    %94 = arith.mulf %89, %93 : vector<6x1x1x128xf32>
    %95 = vector.extract_strided_slice %18 {offsets = [0, 1, 0, 0], sizes = [6, 1, 1, 128], strides = [1, 1, 1, 1]} : vector<6x16x1x128xf32> to vector<6x1x1x128xf32>
    %96 = vector.extract_strided_slice %2 {offsets = [0, 2, 0, 0], sizes = [1, 1, 1, 128], strides = [1, 1, 1, 1]} : vector<3x3x1x128xf32> to vector<1x1x1x128xf32>
    %97 = vector.shape_cast %96 : vector<1x1x1x128xf32> to vector<1x128xf32>
    %98 = vector.shape_cast %97 : vector<1x128xf32> to vector<1x1x1x128xf32>
    %99 = vector.broadcast %98 : vector<1x1x1x128xf32> to vector<6x1x1x128xf32>
    %100 = arith.mulf %95, %99 : vector<6x1x1x128xf32>
    %101 = arith.addf %94, %100 : vector<6x1x1x128xf32>
    %102 = vector.extract_strided_slice %19 {offsets = [0, 0, 0, 0], sizes = [6, 1, 1, 128], strides = [1, 1, 1, 1]} : vector<6x16x1x128xf32> to vector<6x1x1x128xf32>
    %103 = vector.extract_strided_slice %2 {offsets = [1, 1, 0, 0], sizes = [1, 1, 1, 128], strides = [1, 1, 1, 1]} : vector<3x3x1x128xf32> to vector<1x1x1x128xf32>
    %104 = vector.shape_cast %103 : vector<1x1x1x128xf32> to vector<1x128xf32>
    %105 = vector.shape_cast %104 : vector<1x128xf32> to vector<1x1x1x128xf32>
    %106 = vector.broadcast %105 : vector<1x1x1x128xf32> to vector<6x1x1x128xf32>
    %107 = arith.mulf %102, %106 : vector<6x1x1x128xf32>
    %108 = arith.addf %101, %107 : vector<6x1x1x128xf32>
    %109 = vector.extract_strided_slice %19 {offsets = [0, 1, 0, 0], sizes = [6, 1, 1, 128], strides = [1, 1, 1, 1]} : vector<6x16x1x128xf32> to vector<6x1x1x128xf32>
    %110 = vector.extract_strided_slice %2 {offsets = [1, 2, 0, 0], sizes = [1, 1, 1, 128], strides = [1, 1, 1, 1]} : vector<3x3x1x128xf32> to vector<1x1x1x128xf32>
    %111 = vector.shape_cast %110 : vector<1x1x1x128xf32> to vector<1x128xf32>
    %112 = vector.shape_cast %111 : vector<1x128xf32> to vector<1x1x1x128xf32>
    %113 = vector.broadcast %112 : vector<1x1x1x128xf32> to vector<6x1x1x128xf32>
    %114 = arith.mulf %109, %113 : vector<6x1x1x128xf32>
    %115 = arith.addf %108, %114 : vector<6x1x1x128xf32>
    %116 = vector.extract_strided_slice %20 {offsets = [0, 0, 0, 0], sizes = [6, 1, 1, 128], strides = [1, 1, 1, 1]} : vector<6x16x1x128xf32> to vector<6x1x1x128xf32>
    %117 = vector.extract_strided_slice %2 {offsets = [2, 1, 0, 0], sizes = [1, 1, 1, 128], strides = [1, 1, 1, 1]} : vector<3x3x1x128xf32> to vector<1x1x1x128xf32>
    %118 = vector.shape_cast %117 : vector<1x1x1x128xf32> to vector<1x128xf32>
    %119 = vector.shape_cast %118 : vector<1x128xf32> to vector<1x1x1x128xf32>
    %120 = vector.broadcast %119 : vector<1x1x1x128xf32> to vector<6x1x1x128xf32>
    %121 = arith.mulf %116, %120 : vector<6x1x1x128xf32>
    %122 = arith.addf %115, %121 : vector<6x1x1x128xf32>
    %123 = vector.extract_strided_slice %20 {offsets = [0, 1, 0, 0], sizes = [6, 1, 1, 128], strides = [1, 1, 1, 1]} : vector<6x16x1x128xf32> to vector<6x1x1x128xf32>
    %124 = vector.extract_strided_slice %2 {offsets = [2, 2, 0, 0], sizes = [1, 1, 1, 128], strides = [1, 1, 1, 1]} : vector<3x3x1x128xf32> to vector<1x1x1x128xf32>
    %125 = vector.shape_cast %124 : vector<1x1x1x128xf32> to vector<1x128xf32>
    %126 = vector.shape_cast %125 : vector<1x128xf32> to vector<1x1x1x128xf32>
    %127 = vector.broadcast %126 : vector<1x1x1x128xf32> to vector<6x1x1x128xf32>
    %128 = arith.mulf %123, %127 : vector<6x1x1x128xf32>
    %129 = arith.addf %122, %128 : vector<6x1x1x128xf32>
    %130 = vector.shape_cast %4 : vector<1x128xf32> to vector<1x1x1x128xf32>
    %131 = vector.broadcast %130 : vector<1x1x1x128xf32> to vector<6x1x1x128xf32>
    %132 = arith.addf %129, %131 : vector<6x1x1x128xf32>
    %c0_28 = arith.constant 0 : index
    %c1_29 = arith.constant 1 : index
    %c0_30 = arith.constant 0 : index
    %c0_31 = arith.constant 0 : index
    %c0_32 = arith.constant 0 : index
    %133 = vector.load %arg7[%c0_28, %c1_29, %c0_30, %c0_31, %c0_32] : memref<1x8x16x1x128xf32, #tpu.memory_space<vmem>>, vector<1x6x1x1x128xf32>
    %134 = vector.shape_cast %133 : vector<1x6x1x1x128xf32> to vector<6x1x1x128xf32>
    %135 = vector.shape_cast %132 : vector<6x1x1x128xf32> to vector<1x6x1x1x128xf32>
    tpu.vector_store %arg7[%c0_28, %c1_29, %c0_30, %c0_31, %c0_32], %135 {strides = array<i32>} : memref<1x8x16x1x128xf32, #tpu.memory_space<vmem>>, vector<1x6x1x1x128xf32>,
    %136 = vector.extract_strided_slice %18 {offsets = [0, 14, 0, 0], sizes = [6, 1, 1, 128], strides = [1, 1, 1, 1]} : vector<6x16x1x128xf32> to vector<6x1x1x128xf32>
    %137 = vector.extract_strided_slice %2 {offsets = [0, 0, 0, 0], sizes = [1, 1, 1, 128], strides = [1, 1, 1, 1]} : vector<3x3x1x128xf32> to vector<1x1x1x128xf32>
    %138 = vector.shape_cast %137 : vector<1x1x1x128xf32> to vector<1x128xf32>
    %139 = vector.shape_cast %138 : vector<1x128xf32> to vector<1x1x1x128xf32>
    %140 = vector.broadcast %139 : vector<1x1x1x128xf32> to vector<6x1x1x128xf32>
    %141 = arith.mulf %136, %140 : vector<6x1x1x128xf32>
    %142 = vector.extract_strided_slice %18 {offsets = [0, 15, 0, 0], sizes = [6, 1, 1, 128], strides = [1, 1, 1, 1]} : vector<6x16x1x128xf32> to vector<6x1x1x128xf32>
    %143 = vector.extract_strided_slice %2 {offsets = [0, 1, 0, 0], sizes = [1, 1, 1, 128], strides = [1, 1, 1, 1]} : vector<3x3x1x128xf32> to vector<1x1x1x128xf32>
    %144 = vector.shape_cast %143 : vector<1x1x1x128xf32> to vector<1x128xf32>
    %145 = vector.shape_cast %144 : vector<1x128xf32> to vector<1x1x1x128xf32>
    %146 = vector.broadcast %145 : vector<1x1x1x128xf32> to vector<6x1x1x128xf32>
    %147 = arith.mulf %142, %146 : vector<6x1x1x128xf32>
    %148 = arith.addf %141, %147 : vector<6x1x1x128xf32>
    %149 = vector.extract_strided_slice %19 {offsets = [0, 14, 0, 0], sizes = [6, 1, 1, 128], strides = [1, 1, 1, 1]} : vector<6x16x1x128xf32> to vector<6x1x1x128xf32>
    %150 = vector.extract_strided_slice %2 {offsets = [1, 0, 0, 0], sizes = [1, 1, 1, 128], strides = [1, 1, 1, 1]} : vector<3x3x1x128xf32> to vector<1x1x1x128xf32>
    %151 = vector.shape_cast %150 : vector<1x1x1x128xf32> to vector<1x128xf32>
    %152 = vector.shape_cast %151 : vector<1x128xf32> to vector<1x1x1x128xf32>
    %153 = vector.broadcast %152 : vector<1x1x1x128xf32> to vector<6x1x1x128xf32>
    %154 = arith.mulf %149, %153 : vector<6x1x1x128xf32>
    %155 = arith.addf %148, %154 : vector<6x1x1x128xf32>
    %156 = vector.extract_strided_slice %19 {offsets = [0, 15, 0, 0], sizes = [6, 1, 1, 128], strides = [1, 1, 1, 1]} : vector<6x16x1x128xf32> to vector<6x1x1x128xf32>
    %157 = vector.extract_strided_slice %2 {offsets = [1, 1, 0, 0], sizes = [1, 1, 1, 128], strides = [1, 1, 1, 1]} : vector<3x3x1x128xf32> to vector<1x1x1x128xf32>
    %158 = vector.shape_cast %157 : vector<1x1x1x128xf32> to vector<1x128xf32>
    %159 = vector.shape_cast %158 : vector<1x128xf32> to vector<1x1x1x128xf32>
    %160 = vector.broadcast %159 : vector<1x1x1x128xf32> to vector<6x1x1x128xf32>
    %161 = arith.mulf %156, %160 : vector<6x1x1x128xf32>
    %162 = arith.addf %155, %161 : vector<6x1x1x128xf32>
    %163 = vector.extract_strided_slice %20 {offsets = [0, 14, 0, 0], sizes = [6, 1, 1, 128], strides = [1, 1, 1, 1]} : vector<6x16x1x128xf32> to vector<6x1x1x128xf32>
    %164 = vector.extract_strided_slice %2 {offsets = [2, 0, 0, 0], sizes = [1, 1, 1, 128], strides = [1, 1, 1, 1]} : vector<3x3x1x128xf32> to vector<1x1x1x128xf32>
    %165 = vector.shape_cast %164 : vector<1x1x1x128xf32> to vector<1x128xf32>
    %166 = vector.shape_cast %165 : vector<1x128xf32> to vector<1x1x1x128xf32>
    %167 = vector.broadcast %166 : vector<1x1x1x128xf32> to vector<6x1x1x128xf32>
    %168 = arith.mulf %163, %167 : vector<6x1x1x128xf32>
    %169 = arith.addf %162, %168 : vector<6x1x1x128xf32>
    %170 = vector.extract_strided_slice %20 {offsets = [0, 15, 0, 0], sizes = [6, 1, 1, 128], strides = [1, 1, 1, 1]} : vector<6x16x1x128xf32> to vector<6x1x1x128xf32>
    %171 = vector.extract_strided_slice %2 {offsets = [2, 1, 0, 0], sizes = [1, 1, 1, 128], strides = [1, 1, 1, 1]} : vector<3x3x1x128xf32> to vector<1x1x1x128xf32>
    %172 = vector.shape_cast %171 : vector<1x1x1x128xf32> to vector<1x128xf32>
    %173 = vector.shape_cast %172 : vector<1x128xf32> to vector<1x1x1x128xf32>
    %174 = vector.broadcast %173 : vector<1x1x1x128xf32> to vector<6x1x1x128xf32>
    %175 = arith.mulf %170, %174 : vector<6x1x1x128xf32>
    %176 = arith.addf %169, %175 : vector<6x1x1x128xf32>
    %177 = vector.shape_cast %4 : vector<1x128xf32> to vector<1x1x1x128xf32>
    %178 = vector.broadcast %177 : vector<1x1x1x128xf32> to vector<6x1x1x128xf32>
    %179 = arith.addf %176, %178 : vector<6x1x1x128xf32>
    %c0_33 = arith.constant 0 : index
    %c1_34 = arith.constant 1 : index
    %c15 = arith.constant 15 : index
    %c0_35 = arith.constant 0 : index
    %c0_36 = arith.constant 0 : index
    %180 = vector.load %arg7[%c0_33, %c1_34, %c15, %c0_35, %c0_36] : memref<1x8x16x1x128xf32, #tpu.memory_space<vmem>>, vector<1x6x1x1x128xf32>
    %181 = vector.shape_cast %180 : vector<1x6x1x1x128xf32> to vector<6x1x1x128xf32>
    %182 = vector.shape_cast %179 : vector<6x1x1x128xf32> to vector<1x6x1x1x128xf32>
    tpu.vector_store %arg7[%c0_33, %c1_34, %c15, %c0_35, %c0_36], %182 {strides = array<i32>} : memref<1x8x16x1x128xf32, #tpu.memory_space<vmem>>, vector<1x6x1x1x128xf32>,
    %183 = vector.extract_strided_slice %6 {offsets = [0, 0, 0, 0], sizes = [1, 16, 1, 128], strides = [1, 1, 1, 1]} : vector<8x16x1x128xf32> to vector<1x16x1x128xf32>
    %184 = vector.extract_strided_slice %6 {offsets = [1, 0, 0, 0], sizes = [1, 16, 1, 128], strides = [1, 1, 1, 1]} : vector<8x16x1x128xf32> to vector<1x16x1x128xf32>
    %185 = vector.extract_strided_slice %11 {offsets = [0, 0, 0, 0], sizes = [1, 14, 1, 128], strides = [1, 1, 1, 1]} : vector<1x16x1x128xf32> to vector<1x14x1x128xf32>
    %186 = vector.extract_strided_slice %2 {offsets = [0, 0, 0, 0], sizes = [1, 1, 1, 128], strides = [1, 1, 1, 1]} : vector<3x3x1x128xf32> to vector<1x1x1x128xf32>
    %187 = vector.shape_cast %186 : vector<1x1x1x128xf32> to vector<1x128xf32>
    %188 = vector.shape_cast %187 : vector<1x128xf32> to vector<1x1x1x128xf32>
    %189 = vector.broadcast %188 : vector<1x1x1x128xf32> to vector<1x14x1x128xf32>
    %190 = arith.mulf %185, %189 : vector<1x14x1x128xf32>
    %191 = vector.extract_strided_slice %11 {offsets = [0, 1, 0, 0], sizes = [1, 14, 1, 128], strides = [1, 1, 1, 1]} : vector<1x16x1x128xf32> to vector<1x14x1x128xf32>
    %192 = vector.extract_strided_slice %2 {offsets = [0, 1, 0, 0], sizes = [1, 1, 1, 128], strides = [1, 1, 1, 1]} : vector<3x3x1x128xf32> to vector<1x1x1x128xf32>
    %193 = vector.shape_cast %192 : vector<1x1x1x128xf32> to vector<1x128xf32>
    %194 = vector.shape_cast %193 : vector<1x128xf32> to vector<1x1x1x128xf32>
    %195 = vector.broadcast %194 : vector<1x1x1x128xf32> to vector<1x14x1x128xf32>
    %196 = arith.mulf %191, %195 : vector<1x14x1x128xf32>
    %197 = vector.extract_strided_slice %11 {offsets = [0, 2, 0, 0], sizes = [1, 14, 1, 128], strides = [1, 1, 1, 1]} : vector<1x16x1x128xf32> to vector<1x14x1x128xf32>
    %198 = vector.extract_strided_slice %2 {offsets = [0, 2, 0, 0], sizes = [1, 1, 1, 128], strides = [1, 1, 1, 1]} : vector<3x3x1x128xf32> to vector<1x1x1x128xf32>
    %199 = vector.shape_cast %198 : vector<1x1x1x128xf32> to vector<1x128xf32>
    %200 = vector.shape_cast %199 : vector<1x128xf32> to vector<1x1x1x128xf32>
    %201 = vector.broadcast %200 : vector<1x1x1x128xf32> to vector<1x14x1x128xf32>
    %202 = arith.mulf %197, %201 : vector<1x14x1x128xf32>
    %203 = vector.extract_strided_slice %183 {offsets = [0, 0, 0, 0], sizes = [1, 14, 1, 128], strides = [1, 1, 1, 1]} : vector<1x16x1x128xf32> to vector<1x14x1x128xf32>
    %204 = vector.extract_strided_slice %2 {offsets = [1, 0, 0, 0], sizes = [1, 1, 1, 128], strides = [1, 1, 1, 1]} : vector<3x3x1x128xf32> to vector<1x1x1x128xf32>
    %205 = vector.shape_cast %204 : vector<1x1x1x128xf32> to vector<1x128xf32>
    %206 = vector.shape_cast %205 : vector<1x128xf32> to vector<1x1x1x128xf32>
    %207 = vector.broadcast %206 : vector<1x1x1x128xf32> to vector<1x14x1x128xf32>
    %208 = arith.mulf %203, %207 : vector<1x14x1x128xf32>
    %209 = arith.addf %190, %208 : vector<1x14x1x128xf32>
    %210 = vector.extract_strided_slice %183 {offsets = [0, 1, 0, 0], sizes = [1, 14, 1, 128], strides = [1, 1, 1, 1]} : vector<1x16x1x128xf32> to vector<1x14x1x128xf32>
    %211 = vector.extract_strided_slice %2 {offsets = [1, 1, 0, 0], sizes = [1, 1, 1, 128], strides = [1, 1, 1, 1]} : vector<3x3x1x128xf32> to vector<1x1x1x128xf32>
    %212 = vector.shape_cast %211 : vector<1x1x1x128xf32> to vector<1x128xf32>
    %213 = vector.shape_cast %212 : vector<1x128xf32> to vector<1x1x1x128xf32>
    %214 = vector.broadcast %213 : vector<1x1x1x128xf32> to vector<1x14x1x128xf32>
    %215 = arith.mulf %210, %214 : vector<1x14x1x128xf32>
    %216 = arith.addf %196, %215 : vector<1x14x1x128xf32>
    %217 = vector.extract_strided_slice %183 {offsets = [0, 2, 0, 0], sizes = [1, 14, 1, 128], strides = [1, 1, 1, 1]} : vector<1x16x1x128xf32> to vector<1x14x1x128xf32>
    %218 = vector.extract_strided_slice %2 {offsets = [1, 2, 0, 0], sizes = [1, 1, 1, 128], strides = [1, 1, 1, 1]} : vector<3x3x1x128xf32> to vector<1x1x1x128xf32>
    %219 = vector.shape_cast %218 : vector<1x1x1x128xf32> to vector<1x128xf32>
    %220 = vector.shape_cast %219 : vector<1x128xf32> to vector<1x1x1x128xf32>
    %221 = vector.broadcast %220 : vector<1x1x1x128xf32> to vector<1x14x1x128xf32>
    %222 = arith.mulf %217, %221 : vector<1x14x1x128xf32>
    %223 = arith.addf %202, %222 : vector<1x14x1x128xf32>
    %224 = vector.extract_strided_slice %184 {offsets = [0, 0, 0, 0], sizes = [1, 14, 1, 128], strides = [1, 1, 1, 1]} : vector<1x16x1x128xf32> to vector<1x14x1x128xf32>
    %225 = vector.extract_strided_slice %2 {offsets = [2, 0, 0, 0], sizes = [1, 1, 1, 128], strides = [1, 1, 1, 1]} : vector<3x3x1x128xf32> to vector<1x1x1x128xf32>
    %226 = vector.shape_cast %225 : vector<1x1x1x128xf32> to vector<1x128xf32>
    %227 = vector.shape_cast %226 : vector<1x128xf32> to vector<1x1x1x128xf32>
    %228 = vector.broadcast %227 : vector<1x1x1x128xf32> to vector<1x14x1x128xf32>
    %229 = arith.mulf %224, %228 : vector<1x14x1x128xf32>
    %230 = arith.addf %209, %229 : vector<1x14x1x128xf32>
    %231 = vector.extract_strided_slice %184 {offsets = [0, 1, 0, 0], sizes = [1, 14, 1, 128], strides = [1, 1, 1, 1]} : vector<1x16x1x128xf32> to vector<1x14x1x128xf32>
    %232 = vector.extract_strided_slice %2 {offsets = [2, 1, 0, 0], sizes = [1, 1, 1, 128], strides = [1, 1, 1, 1]} : vector<3x3x1x128xf32> to vector<1x1x1x128xf32>
    %233 = vector.shape_cast %232 : vector<1x1x1x128xf32> to vector<1x128xf32>
    %234 = vector.shape_cast %233 : vector<1x128xf32> to vector<1x1x1x128xf32>
    %235 = vector.broadcast %234 : vector<1x1x1x128xf32> to vector<1x14x1x128xf32>
    %236 = arith.mulf %231, %235 : vector<1x14x1x128xf32>
    %237 = arith.addf %216, %236 : vector<1x14x1x128xf32>
    %238 = vector.extract_strided_slice %184 {offsets = [0, 2, 0, 0], sizes = [1, 14, 1, 128], strides = [1, 1, 1, 1]} : vector<1x16x1x128xf32> to vector<1x14x1x128xf32>
    %239 = vector.extract_strided_slice %2 {offsets = [2, 2, 0, 0], sizes = [1, 1, 1, 128], strides = [1, 1, 1, 1]} : vector<3x3x1x128xf32> to vector<1x1x1x128xf32>
    %240 = vector.shape_cast %239 : vector<1x1x1x128xf32> to vector<1x128xf32>
    %241 = vector.shape_cast %240 : vector<1x128xf32> to vector<1x1x1x128xf32>
    %242 = vector.broadcast %241 : vector<1x1x1x128xf32> to vector<1x14x1x128xf32>
    %243 = arith.mulf %238, %242 : vector<1x14x1x128xf32>
    %244 = arith.addf %223, %243 : vector<1x14x1x128xf32>
    %245 = arith.addf %230, %237 : vector<1x14x1x128xf32>
    %246 = vector.shape_cast %4 : vector<1x128xf32> to vector<1x1x1x128xf32>
    %247 = vector.broadcast %246 : vector<1x1x1x128xf32> to vector<1x14x1x128xf32>
    %248 = arith.addf %244, %247 : vector<1x14x1x128xf32>
    %249 = arith.addf %245, %248 : vector<1x14x1x128xf32>
    %c0_37 = arith.constant 0 : index
    %c0_38 = arith.constant 0 : index
    %c1_39 = arith.constant 1 : index
    %c0_40 = arith.constant 0 : index
    %c0_41 = arith.constant 0 : index
    %250 = vector.load %arg7[%c0_37, %c0_38, %c1_39, %c0_40, %c0_41] : memref<1x8x16x1x128xf32, #tpu.memory_space<vmem>>, vector<1x1x14x1x128xf32>
    %251 = vector.shape_cast %250 : vector<1x1x14x1x128xf32> to vector<1x14x1x128xf32>
    %252 = vector.shape_cast %249 : vector<1x14x1x128xf32> to vector<1x1x14x1x128xf32>
    tpu.vector_store %arg7[%c0_37, %c0_38, %c1_39, %c0_40, %c0_41], %252 {strides = array<i32>} : memref<1x8x16x1x128xf32, #tpu.memory_space<vmem>>, vector<1x1x14x1x128xf32>,
    %253 = vector.extract_strided_slice %11 {offsets = [0, 0, 0, 0], sizes = [1, 1, 1, 128], strides = [1, 1, 1, 1]} : vector<1x16x1x128xf32> to vector<1x1x1x128xf32>
    %254 = vector.extract_strided_slice %2 {offsets = [0, 1, 0, 0], sizes = [1, 1, 1, 128], strides = [1, 1, 1, 1]} : vector<3x3x1x128xf32> to vector<1x1x1x128xf32>
    %255 = vector.shape_cast %254 : vector<1x1x1x128xf32> to vector<1x128xf32>
    %256 = vector.shape_cast %255 : vector<1x128xf32> to vector<1x1x1x128xf32>
    %257 = arith.mulf %253, %256 : vector<1x1x1x128xf32>
    %258 = vector.extract_strided_slice %11 {offsets = [0, 1, 0, 0], sizes = [1, 1, 1, 128], strides = [1, 1, 1, 1]} : vector<1x16x1x128xf32> to vector<1x1x1x128xf32>
    %259 = vector.extract_strided_slice %2 {offsets = [0, 2, 0, 0], sizes = [1, 1, 1, 128], strides = [1, 1, 1, 1]} : vector<3x3x1x128xf32> to vector<1x1x1x128xf32>
    %260 = vector.shape_cast %259 : vector<1x1x1x128xf32> to vector<1x128xf32>
    %261 = vector.shape_cast %260 : vector<1x128xf32> to vector<1x1x1x128xf32>
    %262 = arith.mulf %258, %261 : vector<1x1x1x128xf32>
    %263 = arith.addf %257, %262 : vector<1x1x1x128xf32>
    %264 = vector.extract_strided_slice %183 {offsets = [0, 0, 0, 0], sizes = [1, 1, 1, 128], strides = [1, 1, 1, 1]} : vector<1x16x1x128xf32> to vector<1x1x1x128xf32>
    %265 = vector.extract_strided_slice %2 {offsets = [1, 1, 0, 0], sizes = [1, 1, 1, 128], strides = [1, 1, 1, 1]} : vector<3x3x1x128xf32> to vector<1x1x1x128xf32>
    %266 = vector.shape_cast %265 : vector<1x1x1x128xf32> to vector<1x128xf32>
    %267 = vector.shape_cast %266 : vector<1x128xf32> to vector<1x1x1x128xf32>
    %268 = arith.mulf %264, %267 : vector<1x1x1x128xf32>
    %269 = arith.addf %263, %268 : vector<1x1x1x128xf32>
    %270 = vector.extract_strided_slice %183 {offsets = [0, 1, 0, 0], sizes = [1, 1, 1, 128], strides = [1, 1, 1, 1]} : vector<1x16x1x128xf32> to vector<1x1x1x128xf32>
    %271 = vector.extract_strided_slice %2 {offsets = [1, 2, 0, 0], sizes = [1, 1, 1, 128], strides = [1, 1, 1, 1]} : vector<3x3x1x128xf32> to vector<1x1x1x128xf32>
    %272 = vector.shape_cast %271 : vector<1x1x1x128xf32> to vector<1x128xf32>
    %273 = vector.shape_cast %272 : vector<1x128xf32> to vector<1x1x1x128xf32>
    %274 = arith.mulf %270, %273 : vector<1x1x1x128xf32>
    %275 = arith.addf %269, %274 : vector<1x1x1x128xf32>
    %276 = vector.extract_strided_slice %184 {offsets = [0, 0, 0, 0], sizes = [1, 1, 1, 128], strides = [1, 1, 1, 1]} : vector<1x16x1x128xf32> to vector<1x1x1x128xf32>
    %277 = vector.extract_strided_slice %2 {offsets = [2, 1, 0, 0], sizes = [1, 1, 1, 128], strides = [1, 1, 1, 1]} : vector<3x3x1x128xf32> to vector<1x1x1x128xf32>
    %278 = vector.shape_cast %277 : vector<1x1x1x128xf32> to vector<1x128xf32>
    %279 = vector.shape_cast %278 : vector<1x128xf32> to vector<1x1x1x128xf32>
    %280 = arith.mulf %276, %279 : vector<1x1x1x128xf32>
    %281 = arith.addf %275, %280 : vector<1x1x1x128xf32>
    %282 = vector.extract_strided_slice %184 {offsets = [0, 1, 0, 0], sizes = [1, 1, 1, 128], strides = [1, 1, 1, 1]} : vector<1x16x1x128xf32> to vector<1x1x1x128xf32>
    %283 = vector.extract_strided_slice %2 {offsets = [2, 2, 0, 0], sizes = [1, 1, 1, 128], strides = [1, 1, 1, 1]} : vector<3x3x1x128xf32> to vector<1x1x1x128xf32>
    %284 = vector.shape_cast %283 : vector<1x1x1x128xf32> to vector<1x128xf32>
    %285 = vector.shape_cast %284 : vector<1x128xf32> to vector<1x1x1x128xf32>
    %286 = arith.mulf %282, %285 : vector<1x1x1x128xf32>
    %287 = arith.addf %281, %286 : vector<1x1x1x128xf32>
    %288 = vector.shape_cast %4 : vector<1x128xf32> to vector<1x1x1x128xf32>
    %289 = arith.addf %287, %288 : vector<1x1x1x128xf32>
    %c0_42 = arith.constant 0 : index
    %c0_43 = arith.constant 0 : index
    %c0_44 = arith.constant 0 : index
    %c0_45 = arith.constant 0 : index
    %c0_46 = arith.constant 0 : index
    %290 = vector.load %arg7[%c0_42, %c0_43, %c0_44, %c0_45, %c0_46] : memref<1x8x16x1x128xf32, #tpu.memory_space<vmem>>, vector<1x1x1x1x128xf32>
    %291 = vector.shape_cast %290 : vector<1x1x1x1x128xf32> to vector<1x1x1x128xf32>
    %292 = vector.shape_cast %289 : vector<1x1x1x128xf32> to vector<1x1x1x1x128xf32>
    tpu.vector_store %arg7[%c0_42, %c0_43, %c0_44, %c0_45, %c0_46], %292 {strides = array<i32>} : memref<1x8x16x1x128xf32, #tpu.memory_space<vmem>>, vector<1x1x1x1x128xf32>,
    %293 = vector.extract_strided_slice %11 {offsets = [0, 14, 0, 0], sizes = [1, 1, 1, 128], strides = [1, 1, 1, 1]} : vector<1x16x1x128xf32> to vector<1x1x1x128xf32>
    %294 = vector.extract_strided_slice %2 {offsets = [0, 0, 0, 0], sizes = [1, 1, 1, 128], strides = [1, 1, 1, 1]} : vector<3x3x1x128xf32> to vector<1x1x1x128xf32>
    %295 = vector.shape_cast %294 : vector<1x1x1x128xf32> to vector<1x128xf32>
    %296 = vector.shape_cast %295 : vector<1x128xf32> to vector<1x1x1x128xf32>
    %297 = arith.mulf %293, %296 : vector<1x1x1x128xf32>
    %298 = vector.extract_strided_slice %11 {offsets = [0, 15, 0, 0], sizes = [1, 1, 1, 128], strides = [1, 1, 1, 1]} : vector<1x16x1x128xf32> to vector<1x1x1x128xf32>
    %299 = vector.extract_strided_slice %2 {offsets = [0, 1, 0, 0], sizes = [1, 1, 1, 128], strides = [1, 1, 1, 1]} : vector<3x3x1x128xf32> to vector<1x1x1x128xf32>
    %300 = vector.shape_cast %299 : vector<1x1x1x128xf32> to vector<1x128xf32>
    %301 = vector.shape_cast %300 : vector<1x128xf32> to vector<1x1x1x128xf32>
    %302 = arith.mulf %298, %301 : vector<1x1x1x128xf32>
    %303 = arith.addf %297, %302 : vector<1x1x1x128xf32>
    %304 = vector.extract_strided_slice %183 {offsets = [0, 14, 0, 0], sizes = [1, 1, 1, 128], strides = [1, 1, 1, 1]} : vector<1x16x1x128xf32> to vector<1x1x1x128xf32>
    %305 = vector.extract_strided_slice %2 {offsets = [1, 0, 0, 0], sizes = [1, 1, 1, 128], strides = [1, 1, 1, 1]} : vector<3x3x1x128xf32> to vector<1x1x1x128xf32>
    %306 = vector.shape_cast %305 : vector<1x1x1x128xf32> to vector<1x128xf32>
    %307 = vector.shape_cast %306 : vector<1x128xf32> to vector<1x1x1x128xf32>
    %308 = arith.mulf %304, %307 : vector<1x1x1x128xf32>
    %309 = arith.addf %303, %308 : vector<1x1x1x128xf32>
    %310 = vector.extract_strided_slice %183 {offsets = [0, 15, 0, 0], sizes = [1, 1, 1, 128], strides = [1, 1, 1, 1]} : vector<1x16x1x128xf32> to vector<1x1x1x128xf32>
    %311 = vector.extract_strided_slice %2 {offsets = [1, 1, 0, 0], sizes = [1, 1, 1, 128], strides = [1, 1, 1, 1]} : vector<3x3x1x128xf32> to vector<1x1x1x128xf32>
    %312 = vector.shape_cast %311 : vector<1x1x1x128xf32> to vector<1x128xf32>
    %313 = vector.shape_cast %312 : vector<1x128xf32> to vector<1x1x1x128xf32>
    %314 = arith.mulf %310, %313 : vector<1x1x1x128xf32>
    %315 = arith.addf %309, %314 : vector<1x1x1x128xf32>
    %316 = vector.extract_strided_slice %184 {offsets = [0, 14, 0, 0], sizes = [1, 1, 1, 128], strides = [1, 1, 1, 1]} : vector<1x16x1x128xf32> to vector<1x1x1x128xf32>
    %317 = vector.extract_strided_slice %2 {offsets = [2, 0, 0, 0], sizes = [1, 1, 1, 128], strides = [1, 1, 1, 1]} : vector<3x3x1x128xf32> to vector<1x1x1x128xf32>
    %318 = vector.shape_cast %317 : vector<1x1x1x128xf32> to vector<1x128xf32>
    %319 = vector.shape_cast %318 : vector<1x128xf32> to vector<1x1x1x128xf32>
    %320 = arith.mulf %316, %319 : vector<1x1x1x128xf32>
    %321 = arith.addf %315, %320 : vector<1x1x1x128xf32>
    %322 = vector.extract_strided_slice %184 {offsets = [0, 15, 0, 0], sizes = [1, 1, 1, 128], strides = [1, 1, 1, 1]} : vector<1x16x1x128xf32> to vector<1x1x1x128xf32>
    %323 = vector.extract_strided_slice %2 {offsets = [2, 1, 0, 0], sizes = [1, 1, 1, 128], strides = [1, 1, 1, 1]} : vector<3x3x1x128xf32> to vector<1x1x1x128xf32>
    %324 = vector.shape_cast %323 : vector<1x1x1x128xf32> to vector<1x128xf32>
    %325 = vector.shape_cast %324 : vector<1x128xf32> to vector<1x1x1x128xf32>
    %326 = arith.mulf %322, %325 : vector<1x1x1x128xf32>
    %327 = arith.addf %321, %326 : vector<1x1x1x128xf32>
    %328 = vector.shape_cast %4 : vector<1x128xf32> to vector<1x1x1x128xf32>
    %329 = arith.addf %327, %328 : vector<1x1x1x128xf32>
    %c0_47 = arith.constant 0 : index
    %c0_48 = arith.constant 0 : index
    %c15_49 = arith.constant 15 : index
    %c0_50 = arith.constant 0 : index
    %c0_51 = arith.constant 0 : index
    %330 = vector.load %arg7[%c0_47, %c0_48, %c15_49, %c0_50, %c0_51] : memref<1x8x16x1x128xf32, #tpu.memory_space<vmem>>, vector<1x1x1x1x128xf32>
    %331 = vector.shape_cast %330 : vector<1x1x1x1x128xf32> to vector<1x1x1x128xf32>
    %332 = vector.shape_cast %329 : vector<1x1x1x128xf32> to vector<1x1x1x1x128xf32>
    tpu.vector_store %arg7[%c0_47, %c0_48, %c15_49, %c0_50, %c0_51], %332 {strides = array<i32>} : memref<1x8x16x1x128xf32, #tpu.memory_space<vmem>>, vector<1x1x1x1x128xf32>,
    %333 = vector.extract_strided_slice %6 {offsets = [6, 0, 0, 0], sizes = [1, 16, 1, 128], strides = [1, 1, 1, 1]} : vector<8x16x1x128xf32> to vector<1x16x1x128xf32>
    %334 = vector.extract_strided_slice %6 {offsets = [7, 0, 0, 0], sizes = [1, 16, 1, 128], strides = [1, 1, 1, 1]} : vector<8x16x1x128xf32> to vector<1x16x1x128xf32>
    %335 = vector.extract_strided_slice %333 {offsets = [0, 0, 0, 0], sizes = [1, 14, 1, 128], strides = [1, 1, 1, 1]} : vector<1x16x1x128xf32> to vector<1x14x1x128xf32>
    %336 = vector.extract_strided_slice %2 {offsets = [0, 0, 0, 0], sizes = [1, 1, 1, 128], strides = [1, 1, 1, 1]} : vector<3x3x1x128xf32> to vector<1x1x1x128xf32>
    %337 = vector.shape_cast %336 : vector<1x1x1x128xf32> to vector<1x128xf32>
    %338 = vector.shape_cast %337 : vector<1x128xf32> to vector<1x1x1x128xf32>
    %339 = vector.broadcast %338 : vector<1x1x1x128xf32> to vector<1x14x1x128xf32>
    %340 = arith.mulf %335, %339 : vector<1x14x1x128xf32>
    %341 = vector.extract_strided_slice %333 {offsets = [0, 1, 0, 0], sizes = [1, 14, 1, 128], strides = [1, 1, 1, 1]} : vector<1x16x1x128xf32> to vector<1x14x1x128xf32>
    %342 = vector.extract_strided_slice %2 {offsets = [0, 1, 0, 0], sizes = [1, 1, 1, 128], strides = [1, 1, 1, 1]} : vector<3x3x1x128xf32> to vector<1x1x1x128xf32>
    %343 = vector.shape_cast %342 : vector<1x1x1x128xf32> to vector<1x128xf32>
    %344 = vector.shape_cast %343 : vector<1x128xf32> to vector<1x1x1x128xf32>
    %345 = vector.broadcast %344 : vector<1x1x1x128xf32> to vector<1x14x1x128xf32>
    %346 = arith.mulf %341, %345 : vector<1x14x1x128xf32>
    %347 = vector.extract_strided_slice %333 {offsets = [0, 2, 0, 0], sizes = [1, 14, 1, 128], strides = [1, 1, 1, 1]} : vector<1x16x1x128xf32> to vector<1x14x1x128xf32>
    %348 = vector.extract_strided_slice %2 {offsets = [0, 2, 0, 0], sizes = [1, 1, 1, 128], strides = [1, 1, 1, 1]} : vector<3x3x1x128xf32> to vector<1x1x1x128xf32>
    %349 = vector.shape_cast %348 : vector<1x1x1x128xf32> to vector<1x128xf32>
    %350 = vector.shape_cast %349 : vector<1x128xf32> to vector<1x1x1x128xf32>
    %351 = vector.broadcast %350 : vector<1x1x1x128xf32> to vector<1x14x1x128xf32>
    %352 = arith.mulf %347, %351 : vector<1x14x1x128xf32>
    %353 = vector.extract_strided_slice %334 {offsets = [0, 0, 0, 0], sizes = [1, 14, 1, 128], strides = [1, 1, 1, 1]} : vector<1x16x1x128xf32> to vector<1x14x1x128xf32>
    %354 = vector.extract_strided_slice %2 {offsets = [1, 0, 0, 0], sizes = [1, 1, 1, 128], strides = [1, 1, 1, 1]} : vector<3x3x1x128xf32> to vector<1x1x1x128xf32>
    %355 = vector.shape_cast %354 : vector<1x1x1x128xf32> to vector<1x128xf32>
    %356 = vector.shape_cast %355 : vector<1x128xf32> to vector<1x1x1x128xf32>
    %357 = vector.broadcast %356 : vector<1x1x1x128xf32> to vector<1x14x1x128xf32>
    %358 = arith.mulf %353, %357 : vector<1x14x1x128xf32>
    %359 = arith.addf %340, %358 : vector<1x14x1x128xf32>
    %360 = vector.extract_strided_slice %334 {offsets = [0, 1, 0, 0], sizes = [1, 14, 1, 128], strides = [1, 1, 1, 1]} : vector<1x16x1x128xf32> to vector<1x14x1x128xf32>
    %361 = vector.extract_strided_slice %2 {offsets = [1, 1, 0, 0], sizes = [1, 1, 1, 128], strides = [1, 1, 1, 1]} : vector<3x3x1x128xf32> to vector<1x1x1x128xf32>
    %362 = vector.shape_cast %361 : vector<1x1x1x128xf32> to vector<1x128xf32>
    %363 = vector.shape_cast %362 : vector<1x128xf32> to vector<1x1x1x128xf32>
    %364 = vector.broadcast %363 : vector<1x1x1x128xf32> to vector<1x14x1x128xf32>
    %365 = arith.mulf %360, %364 : vector<1x14x1x128xf32>
    %366 = arith.addf %346, %365 : vector<1x14x1x128xf32>
    %367 = vector.extract_strided_slice %334 {offsets = [0, 2, 0, 0], sizes = [1, 14, 1, 128], strides = [1, 1, 1, 1]} : vector<1x16x1x128xf32> to vector<1x14x1x128xf32>
    %368 = vector.extract_strided_slice %2 {offsets = [1, 2, 0, 0], sizes = [1, 1, 1, 128], strides = [1, 1, 1, 1]} : vector<3x3x1x128xf32> to vector<1x1x1x128xf32>
    %369 = vector.shape_cast %368 : vector<1x1x1x128xf32> to vector<1x128xf32>
    %370 = vector.shape_cast %369 : vector<1x128xf32> to vector<1x1x1x128xf32>
    %371 = vector.broadcast %370 : vector<1x1x1x128xf32> to vector<1x14x1x128xf32>
    %372 = arith.mulf %367, %371 : vector<1x14x1x128xf32>
    %373 = arith.addf %352, %372 : vector<1x14x1x128xf32>
    %374 = vector.extract_strided_slice %17 {offsets = [0, 0, 0, 0], sizes = [1, 14, 1, 128], strides = [1, 1, 1, 1]} : vector<1x16x1x128xf32> to vector<1x14x1x128xf32>
    %375 = vector.extract_strided_slice %2 {offsets = [2, 0, 0, 0], sizes = [1, 1, 1, 128], strides = [1, 1, 1, 1]} : vector<3x3x1x128xf32> to vector<1x1x1x128xf32>
    %376 = vector.shape_cast %375 : vector<1x1x1x128xf32> to vector<1x128xf32>
    %377 = vector.shape_cast %376 : vector<1x128xf32> to vector<1x1x1x128xf32>
    %378 = vector.broadcast %377 : vector<1x1x1x128xf32> to vector<1x14x1x128xf32>
    %379 = arith.mulf %374, %378 : vector<1x14x1x128xf32>
    %380 = arith.addf %359, %379 : vector<1x14x1x128xf32>
    %381 = vector.extract_strided_slice %17 {offsets = [0, 1, 0, 0], sizes = [1, 14, 1, 128], strides = [1, 1, 1, 1]} : vector<1x16x1x128xf32> to vector<1x14x1x128xf32>
    %382 = vector.extract_strided_slice %2 {offsets = [2, 1, 0, 0], sizes = [1, 1, 1, 128], strides = [1, 1, 1, 1]} : vector<3x3x1x128xf32> to vector<1x1x1x128xf32>
    %383 = vector.shape_cast %382 : vector<1x1x1x128xf32> to vector<1x128xf32>
    %384 = vector.shape_cast %383 : vector<1x128xf32> to vector<1x1x1x128xf32>
    %385 = vector.broadcast %384 : vector<1x1x1x128xf32> to vector<1x14x1x128xf32>
    %386 = arith.mulf %381, %385 : vector<1x14x1x128xf32>
    %387 = arith.addf %366, %386 : vector<1x14x1x128xf32>
    %388 = vector.extract_strided_slice %17 {offsets = [0, 2, 0, 0], sizes = [1, 14, 1, 128], strides = [1, 1, 1, 1]} : vector<1x16x1x128xf32> to vector<1x14x1x128xf32>
    %389 = vector.extract_strided_slice %2 {offsets = [2, 2, 0, 0], sizes = [1, 1, 1, 128], strides = [1, 1, 1, 1]} : vector<3x3x1x128xf32> to vector<1x1x1x128xf32>
    %390 = vector.shape_cast %389 : vector<1x1x1x128xf32> to vector<1x128xf32>
    %391 = vector.shape_cast %390 : vector<1x128xf32> to vector<1x1x1x128xf32>
    %392 = vector.broadcast %391 : vector<1x1x1x128xf32> to vector<1x14x1x128xf32>
    %393 = arith.mulf %388, %392 : vector<1x14x1x128xf32>
    %394 = arith.addf %373, %393 : vector<1x14x1x128xf32>
    %395 = arith.addf %380, %387 : vector<1x14x1x128xf32>
    %396 = vector.shape_cast %4 : vector<1x128xf32> to vector<1x1x1x128xf32>
    %397 = vector.broadcast %396 : vector<1x1x1x128xf32> to vector<1x14x1x128xf32>
    %398 = arith.addf %394, %397 : vector<1x14x1x128xf32>
    %399 = arith.addf %395, %398 : vector<1x14x1x128xf32>
    %c0_52 = arith.constant 0 : index
    %c7 = arith.constant 7 : index
    %c1_53 = arith.constant 1 : index
    %c0_54 = arith.constant 0 : index
    %c0_55 = arith.constant 0 : index
    %400 = vector.load %arg7[%c0_52, %c7, %c1_53, %c0_54, %c0_55] : memref<1x8x16x1x128xf32, #tpu.memory_space<vmem>>, vector<1x1x14x1x128xf32>
    %401 = vector.shape_cast %400 : vector<1x1x14x1x128xf32> to vector<1x14x1x128xf32>
    %402 = vector.shape_cast %399 : vector<1x14x1x128xf32> to vector<1x1x14x1x128xf32>
    tpu.vector_store %arg7[%c0_52, %c7, %c1_53, %c0_54, %c0_55], %402 {strides = array<i32>} : memref<1x8x16x1x128xf32, #tpu.memory_space<vmem>>, vector<1x1x14x1x128xf32>,
    %403 = vector.extract_strided_slice %333 {offsets = [0, 0, 0, 0], sizes = [1, 1, 1, 128], strides = [1, 1, 1, 1]} : vector<1x16x1x128xf32> to vector<1x1x1x128xf32>
    %404 = vector.extract_strided_slice %2 {offsets = [0, 1, 0, 0], sizes = [1, 1, 1, 128], strides = [1, 1, 1, 1]} : vector<3x3x1x128xf32> to vector<1x1x1x128xf32>
    %405 = vector.shape_cast %404 : vector<1x1x1x128xf32> to vector<1x128xf32>
    %406 = vector.shape_cast %405 : vector<1x128xf32> to vector<1x1x1x128xf32>
    %407 = arith.mulf %403, %406 : vector<1x1x1x128xf32>
    %408 = vector.extract_strided_slice %333 {offsets = [0, 1, 0, 0], sizes = [1, 1, 1, 128], strides = [1, 1, 1, 1]} : vector<1x16x1x128xf32> to vector<1x1x1x128xf32>
    %409 = vector.extract_strided_slice %2 {offsets = [0, 2, 0, 0], sizes = [1, 1, 1, 128], strides = [1, 1, 1, 1]} : vector<3x3x1x128xf32> to vector<1x1x1x128xf32>
    %410 = vector.shape_cast %409 : vector<1x1x1x128xf32> to vector<1x128xf32>
    %411 = vector.shape_cast %410 : vector<1x128xf32> to vector<1x1x1x128xf32>
    %412 = arith.mulf %408, %411 : vector<1x1x1x128xf32>
    %413 = arith.addf %407, %412 : vector<1x1x1x128xf32>
    %414 = vector.extract_strided_slice %334 {offsets = [0, 0, 0, 0], sizes = [1, 1, 1, 128], strides = [1, 1, 1, 1]} : vector<1x16x1x128xf32> to vector<1x1x1x128xf32>
    %415 = vector.extract_strided_slice %2 {offsets = [1, 1, 0, 0], sizes = [1, 1, 1, 128], strides = [1, 1, 1, 1]} : vector<3x3x1x128xf32> to vector<1x1x1x128xf32>
    %416 = vector.shape_cast %415 : vector<1x1x1x128xf32> to vector<1x128xf32>
    %417 = vector.shape_cast %416 : vector<1x128xf32> to vector<1x1x1x128xf32>
    %418 = arith.mulf %414, %417 : vector<1x1x1x128xf32>
    %419 = arith.addf %413, %418 : vector<1x1x1x128xf32>
    %420 = vector.extract_strided_slice %334 {offsets = [0, 1, 0, 0], sizes = [1, 1, 1, 128], strides = [1, 1, 1, 1]} : vector<1x16x1x128xf32> to vector<1x1x1x128xf32>
    %421 = vector.extract_strided_slice %2 {offsets = [1, 2, 0, 0], sizes = [1, 1, 1, 128], strides = [1, 1, 1, 1]} : vector<3x3x1x128xf32> to vector<1x1x1x128xf32>
    %422 = vector.shape_cast %421 : vector<1x1x1x128xf32> to vector<1x128xf32>
    %423 = vector.shape_cast %422 : vector<1x128xf32> to vector<1x1x1x128xf32>
    %424 = arith.mulf %420, %423 : vector<1x1x1x128xf32>
    %425 = arith.addf %419, %424 : vector<1x1x1x128xf32>
    %426 = vector.extract_strided_slice %17 {offsets = [0, 0, 0, 0], sizes = [1, 1, 1, 128], strides = [1, 1, 1, 1]} : vector<1x16x1x128xf32> to vector<1x1x1x128xf32>
    %427 = vector.extract_strided_slice %2 {offsets = [2, 1, 0, 0], sizes = [1, 1, 1, 128], strides = [1, 1, 1, 1]} : vector<3x3x1x128xf32> to vector<1x1x1x128xf32>
    %428 = vector.shape_cast %427 : vector<1x1x1x128xf32> to vector<1x128xf32>
    %429 = vector.shape_cast %428 : vector<1x128xf32> to vector<1x1x1x128xf32>
    %430 = arith.mulf %426, %429 : vector<1x1x1x128xf32>
    %431 = arith.addf %425, %430 : vector<1x1x1x128xf32>
    %432 = vector.extract_strided_slice %17 {offsets = [0, 1, 0, 0], sizes = [1, 1, 1, 128], strides = [1, 1, 1, 1]} : vector<1x16x1x128xf32> to vector<1x1x1x128xf32>
    %433 = vector.extract_strided_slice %2 {offsets = [2, 2, 0, 0], sizes = [1, 1, 1, 128], strides = [1, 1, 1, 1]} : vector<3x3x1x128xf32> to vector<1x1x1x128xf32>
    %434 = vector.shape_cast %433 : vector<1x1x1x128xf32> to vector<1x128xf32>
    %435 = vector.shape_cast %434 : vector<1x128xf32> to vector<1x1x1x128xf32>
    %436 = arith.mulf %432, %435 : vector<1x1x1x128xf32>
    %437 = arith.addf %431, %436 : vector<1x1x1x128xf32>
    %438 = vector.shape_cast %4 : vector<1x128xf32> to vector<1x1x1x128xf32>
    %439 = arith.addf %437, %438 : vector<1x1x1x128xf32>
    %c0_56 = arith.constant 0 : index
    %c7_57 = arith.constant 7 : index
    %c0_58 = arith.constant 0 : index
    %c0_59 = arith.constant 0 : index
    %c0_60 = arith.constant 0 : index
    %440 = vector.load %arg7[%c0_56, %c7_57, %c0_58, %c0_59, %c0_60] : memref<1x8x16x1x128xf32, #tpu.memory_space<vmem>>, vector<1x1x1x1x128xf32>
    %441 = vector.shape_cast %440 : vector<1x1x1x1x128xf32> to vector<1x1x1x128xf32>
    %442 = vector.shape_cast %439 : vector<1x1x1x128xf32> to vector<1x1x1x1x128xf32>
    tpu.vector_store %arg7[%c0_56, %c7_57, %c0_58, %c0_59, %c0_60], %442 {strides = array<i32>} : memref<1x8x16x1x128xf32, #tpu.memory_space<vmem>>, vector<1x1x1x1x128xf32>,
    %443 = vector.extract_strided_slice %333 {offsets = [0, 14, 0, 0], sizes = [1, 1, 1, 128], strides = [1, 1, 1, 1]} : vector<1x16x1x128xf32> to vector<1x1x1x128xf32>
    %444 = vector.extract_strided_slice %2 {offsets = [0, 0, 0, 0], sizes = [1, 1, 1, 128], strides = [1, 1, 1, 1]} : vector<3x3x1x128xf32> to vector<1x1x1x128xf32>
    %445 = vector.shape_cast %444 : vector<1x1x1x128xf32> to vector<1x128xf32>
    %446 = vector.shape_cast %445 : vector<1x128xf32> to vector<1x1x1x128xf32>
    %447 = arith.mulf %443, %446 : vector<1x1x1x128xf32>
    %448 = vector.extract_strided_slice %333 {offsets = [0, 15, 0, 0], sizes = [1, 1, 1, 128], strides = [1, 1, 1, 1]} : vector<1x16x1x128xf32> to vector<1x1x1x128xf32>
    %449 = vector.extract_strided_slice %2 {offsets = [0, 1, 0, 0], sizes = [1, 1, 1, 128], strides = [1, 1, 1, 1]} : vector<3x3x1x128xf32> to vector<1x1x1x128xf32>
    %450 = vector.shape_cast %449 : vector<1x1x1x128xf32> to vector<1x128xf32>
    %451 = vector.shape_cast %450 : vector<1x128xf32> to vector<1x1x1x128xf32>
    %452 = arith.mulf %448, %451 : vector<1x1x1x128xf32>
    %453 = arith.addf %447, %452 : vector<1x1x1x128xf32>
    %454 = vector.extract_strided_slice %334 {offsets = [0, 14, 0, 0], sizes = [1, 1, 1, 128], strides = [1, 1, 1, 1]} : vector<1x16x1x128xf32> to vector<1x1x1x128xf32>
    %455 = vector.extract_strided_slice %2 {offsets = [1, 0, 0, 0], sizes = [1, 1, 1, 128], strides = [1, 1, 1, 1]} : vector<3x3x1x128xf32> to vector<1x1x1x128xf32>
    %456 = vector.shape_cast %455 : vector<1x1x1x128xf32> to vector<1x128xf32>
    %457 = vector.shape_cast %456 : vector<1x128xf32> to vector<1x1x1x128xf32>
    %458 = arith.mulf %454, %457 : vector<1x1x1x128xf32>
    %459 = arith.addf %453, %458 : vector<1x1x1x128xf32>
    %460 = vector.extract_strided_slice %334 {offsets = [0, 15, 0, 0], sizes = [1, 1, 1, 128], strides = [1, 1, 1, 1]} : vector<1x16x1x128xf32> to vector<1x1x1x128xf32>
    %461 = vector.extract_strided_slice %2 {offsets = [1, 1, 0, 0], sizes = [1, 1, 1, 128], strides = [1, 1, 1, 1]} : vector<3x3x1x128xf32> to vector<1x1x1x128xf32>
    %462 = vector.shape_cast %461 : vector<1x1x1x128xf32> to vector<1x128xf32>
    %463 = vector.shape_cast %462 : vector<1x128xf32> to vector<1x1x1x128xf32>
    %464 = arith.mulf %460, %463 : vector<1x1x1x128xf32>
    %465 = arith.addf %459, %464 : vector<1x1x1x128xf32>
    %466 = vector.extract_strided_slice %17 {offsets = [0, 14, 0, 0], sizes = [1, 1, 1, 128], strides = [1, 1, 1, 1]} : vector<1x16x1x128xf32> to vector<1x1x1x128xf32>
    %467 = vector.extract_strided_slice %2 {offsets = [2, 0, 0, 0], sizes = [1, 1, 1, 128], strides = [1, 1, 1, 1]} : vector<3x3x1x128xf32> to vector<1x1x1x128xf32>
    %468 = vector.shape_cast %467 : vector<1x1x1x128xf32> to vector<1x128xf32>
    %469 = vector.shape_cast %468 : vector<1x128xf32> to vector<1x1x1x128xf32>
    %470 = arith.mulf %466, %469 : vector<1x1x1x128xf32>
    %471 = arith.addf %465, %470 : vector<1x1x1x128xf32>
    %472 = vector.extract_strided_slice %17 {offsets = [0, 15, 0, 0], sizes = [1, 1, 1, 128], strides = [1, 1, 1, 1]} : vector<1x16x1x128xf32> to vector<1x1x1x128xf32>
    %473 = vector.extract_strided_slice %2 {offsets = [2, 1, 0, 0], sizes = [1, 1, 1, 128], strides = [1, 1, 1, 1]} : vector<3x3x1x128xf32> to vector<1x1x1x128xf32>
    %474 = vector.shape_cast %473 : vector<1x1x1x128xf32> to vector<1x128xf32>
    %475 = vector.shape_cast %474 : vector<1x128xf32> to vector<1x1x1x128xf32>
    %476 = arith.mulf %472, %475 : vector<1x1x1x128xf32>
    %477 = arith.addf %471, %476 : vector<1x1x1x128xf32>
    %478 = vector.shape_cast %4 : vector<1x128xf32> to vector<1x1x1x128xf32>
    %479 = arith.addf %477, %478 : vector<1x1x1x128xf32>
    %c0_61 = arith.constant 0 : index
    %c7_62 = arith.constant 7 : index
    %c15_63 = arith.constant 15 : index
    %c0_64 = arith.constant 0 : index
    %c0_65 = arith.constant 0 : index
    %480 = vector.load %arg7[%c0_61, %c7_62, %c15_63, %c0_64, %c0_65] : memref<1x8x16x1x128xf32, #tpu.memory_space<vmem>>, vector<1x1x1x1x128xf32>
    %481 = vector.shape_cast %480 : vector<1x1x1x1x128xf32> to vector<1x1x1x128xf32>
    %482 = vector.shape_cast %479 : vector<1x1x1x128xf32> to vector<1x1x1x1x128xf32>
    tpu.vector_store %arg7[%c0_61, %c7_62, %c15_63, %c0_64, %c0_65], %482 {strides = array<i32>} : memref<1x8x16x1x128xf32, #tpu.memory_space<vmem>>, vector<1x1x1x1x128xf32>,
    return
  }
  func.func @transform_0(%arg0: i32, %arg1: i32) -> (i32, i32, i32, i32, i32) {
    %c0_i32 = arith.constant 0 : i32
    %c0_i32_0 = arith.constant 0 : i32
    %c0_i32_1 = arith.constant 0 : i32
    %c0_i32_2 = arith.constant 0 : i32
    return %arg0, %arg1, %c0_i32, %c0_i32_0, %c0_i32_1 : i32, i32, i32, i32, i32
  }
  func.func @transform_1(%arg0: i32, %arg1: i32) -> (i32, i32, i32, i32, i32) {
    %c8_i32 = arith.constant 8 : i32
    %0 = arith.muli %arg1, %c8_i32 : i32
    %c1_i32 = arith.constant 1 : i32
    %1 = arith.subi %0, %c1_i32 : i32
    %c0_i32 = arith.constant 0 : i32
    %2 = arith.maxsi %1, %c0_i32 : i32
    %c0_i32_0 = arith.constant 0 : i32
    %c0_i32_1 = arith.constant 0 : i32
    %c0_i32_2 = arith.constant 0 : i32
    %c0_i32_3 = arith.constant 0 : i32
    return %arg0, %2, %c0_i32_0, %c0_i32_1, %c0_i32_2 : i32, i32, i32, i32, i32
  }
  func.func @transform_2(%arg0: i32, %arg1: i32) -> (i32, i32, i32, i32, i32) {
    %c1_i32 = arith.constant 1 : i32
    %0 = arith.addi %arg1, %c1_i32 : i32
    %c8_i32 = arith.constant 8 : i32
    %1 = arith.muli %0, %c8_i32 : i32
    %c15_i32 = arith.constant 15 : i32
    %2 = arith.minsi %1, %c15_i32 : i32
    %c0_i32 = arith.constant 0 : i32
    %c0_i32_0 = arith.constant 0 : i32
    %c0_i32_1 = arith.constant 0 : i32
    %c0_i32_2 = arith.constant 0 : i32
    return %arg0, %2, %c0_i32, %c0_i32_0, %c0_i32_1 : i32, i32, i32, i32, i32
  }
  func.func @transform_3(%arg0: i32, %arg1: i32) -> (i32, i32, i32, i32, i32) {
    %c0_i32 = arith.constant 0 : i32
    %c0_i32_0 = arith.constant 0 : i32
    %c0_i32_1 = arith.constant 0 : i32
    %c0_i32_2 = arith.constant 0 : i32
    %c0_i32_3 = arith.constant 0 : i32
    return %c0_i32, %c0_i32_0, %arg0, %c0_i32_1, %c0_i32_2 : i32, i32, i32, i32, i32
  }
  func.func @transform_4(%arg0: i32, %arg1: i32) -> (i32, i32, i32) {
    %c0_i32 = arith.constant 0 : i32
    %c0_i32_0 = arith.constant 0 : i32
    %c0_i32_1 = arith.constant 0 : i32
    return %arg0, %c0_i32, %c0_i32_0 : i32, i32, i32
  }
  func.func @transform_5(%arg0: i32, %arg1: i32) -> (i32, i32, i32, i32, i32) {
    %c0_i32 = arith.constant 0 : i32
    %c0_i32_0 = arith.constant 0 : i32
    %c0_i32_1 = arith.constant 0 : i32
    %c0_i32_2 = arith.constant 0 : i32
    return %arg0, %arg1, %c0_i32, %c0_i32_0, %c0_i32_1 : i32, i32, i32, i32, i32
  }
}

</mosaic_0001>

<llo_original>
// kernel: tile.19
$region0: #{tile.19}
  %s0 = inlined_call_operand.vmem [shape: f32[2,4], index: 0, kind: input, shape index: {}]
  %s1 = inlined_call_operand.vmem [shape: f32[8], index: 1, kind: output, shape index: {}]
  $region1: #{tile.19} parent=0
    #allocation0 [shape = 'u8[4096]{0}', space=vmem, size = 0x1000, scoped, tag = 'scoped mem for output reshape']
    #allocation1 [shape = 'u8[4096]{0}', space=vmem, size = 0x1000, scoped, tag = 'scoped mem for input reshape']
    %s3 = ssub.s32 4, 1
    %v4 = vld [vmem:[%s0] sm:%s3]
    %5 = vst [vmem:[#allocation1] sm:%s3] %v4
    %v6 = vld [vmem:[#allocation1] sm:$0x1]
    %vm7 = vcmask 31744
    %8 = vst.msk [vmem:[#allocation0] sm:$0x1] %vm7, %v6
    %s9 = scalar_lea.vmem [#allocation1], 1
    %v10 = vld [vmem:[%s9] sm:$0x1]
    %11 = vrot.lane.b32.xlu0 %v10, 4
    %v12 = vpop.permute.xlu0 %11
    %vm13 = vcmask 64544
    %14 = vst.msk [vmem:[#allocation0] sm:$0x1] %vm13, %v12
    %s16 = ssub.s32 2, 1
    %v17 = vld [vmem:[#allocation0] sm:%s16]
    %s19 = ssub.s32 2, 1
    %20 = vst [vmem:[%s1] sm:%s19] %v17

// kernel: tile.18
$region0: #{tile.18}
  #allocation0 [shape = 's32[1]{0}', space=sflag, size = 0x4, scoped, tag = 'scoped memory for tile.18']
  %s0 = inlined_call_operand.vmem [shape: f32[4], index: 0, kind: input, shape index: {}]
  %s1 = inlined_call_operand.vmem [shape: f32[2,4], index: 1, kind: output, shape index: {}]
  // Predicated region
  $region2: #{tile.18} parent=0 // pred_check
    _
  $region3: #{tile.18} parent=0 // pred_check_branch
    %3 = sbr.rel (0) target = $region5
  $region4: #{tile.18} parent=0 // pred_region
    _
  $region5: #{tile.18} parent=0 // pred_fallthru
    _
  %v4 = vld [vmem:[%s0] ss:$0 sm:$0xff]
  %5 = vst [vmem:[%s1] sm:$0x3] %v4

// kernel: tile.14
$region0: #{tile.14}
  %s0 = inlined_call_operand.vmem [shape: f32[3,3,2,4], index: 0, kind: input, shape index: {}]
  %s1 = inlined_call_operand.vmem [shape: f32[3,3,8], index: 1, kind: output, shape index: {}]
  $region1: #{tile.14} parent=0
    #allocation0 [shape = 'u8[12288]{0}', space=vmem, size = 0x3000, scoped, tag = 'scoped mem for output reshape']
    #allocation1 [shape = 'u8[36864]{0}', space=vmem, size = 0x9000, scoped, tag = 'scoped mem for input reshape']
    %s3 = ssub.s32 4, 1
    %s4 = scalar_lea.vmem %s0, 16
    %v5 = vld [vmem:[%s4] sm:%s3]
    %s6 = scalar_lea.vmem [#allocation1], 64
    %7 = vst [vmem:[%s6] sm:%s3] %v5
    %s8 = scalar_lea.vmem %s0, 14
    %v9 = vld [vmem:[%s8] sm:%s3]
    %s10 = scalar_lea.vmem [#allocation1], 56
    %11 = vst [vmem:[%s10] sm:%s3] %v9
    %s12 = scalar_lea.vmem %s0, 12
    %v13 = vld [vmem:[%s12] sm:%s3]
    %s14 = scalar_lea.vmem [#allocation1], 48
    %15 = vst [vmem:[%s14] sm:%s3] %v13
    %s16 = scalar_lea.vmem %s0, 10
    %v17 = vld [vmem:[%s16] sm:%s3]
    %s18 = scalar_lea.vmem [#allocation1], 40
    %19 = vst [vmem:[%s18] sm:%s3] %v17
    %s20 = scalar_lea.vmem %s0, 8
    %v21 = vld [vmem:[%s20] sm:%s3]
    %s22 = scalar_lea.vmem [#allocation1], 32
    %23 = vst [vmem:[%s22] sm:%s3] %v21
    %s24 = scalar_lea.vmem %s0, 6
    %v25 = vld [vmem:[%s24] sm:%s3]
    %s26 = scalar_lea.vmem [#allocation1], 24
    %27 = vst [vmem:[%s26] sm:%s3] %v25
    %s28 = scalar_lea.vmem %s0, 4
    %v29 = vld [vmem:[%s28] sm:%s3]
    %s30 = scalar_lea.vmem [#allocation1], 16
    %31 = vst [vmem:[%s30] sm:%s3] %v29
    %s32 = scalar_lea.vmem %s0, 2
    %v33 = vld [vmem:[%s32] sm:%s3]
    %s34 = scalar_lea.vmem [#allocation1], 8
    %35 = vst [vmem:[%s34] sm:%s3] %v33
    %v36 = vld [vmem:[%s0] sm:%s3]
    %37 = vst [vmem:[#allocation1] sm:%s3] %v36
    %v38 = vld [vmem:[#allocation1] ss:$8 sm:$0xf]
    %v39 = vld [vmem:[#allocation1] ss:$8 sm:$0xf0]
    %vm40 = vcmask 1047556
    %v41 = vsel %vm40, %v39, %v38
    %vm42 = vcmask 31744
    %43 = vst.msk [vmem:[#allocation0] sm:$0x7] %vm42, %v41
    %s44 = scalar_lea.vmem [#allocation0], 5
    %45 = vst.msk [vmem:[%s44] sm:$0x38] %vm42, %v41
    %s46 = scalar_lea.vmem [#allocation0], 10
    %47 = vst.msk [vmem:[%s46] sm:$0xc0] %vm42, %v41
    %s48 = scalar_lea.vmem [#allocation1], 64
    %v49 = vld [vmem:[%s48] sm:$0x1]
    %vm50 = vcmask 31744
    %s51 = scalar_lea.vmem [#allocation0], 18
    %52 = vst.msk [vmem:[%s51] sm:$0x1] %vm50, %v49
    %s53 = scalar_lea.vmem [#allocation1], 1
    %v54 = vld [vmem:[%s53] ss:$8 sm:$0xf]
    %s55 = scalar_lea.vmem [#allocation1], 1
    %v56 = vld [vmem:[%s55] ss:$8 sm:$0xf0]
    %vm57 = vcmask 1047556
    %v58 = vsel %vm57, %v56, %v54
    %59 = vrot.lane.b32.xlu0 %v58, 4
    %v60 = vpop.permute.xlu0 %59
    %vm61 = vcmask 64544
    %62 = vst.msk [vmem:[#allocation0] sm:$0x7] %vm61, %v60
    %s63 = scalar_lea.vmem [#allocation0], 5
    %64 = vst.msk [vmem:[%s63] sm:$0x38] %vm61, %v60
    %s65 = scalar_lea.vmem [#allocation0], 10
    %66 = vst.msk [vmem:[%s65] sm:$0xc0] %vm61, %v60
    %s67 = scalar_lea.vmem [#allocation1], 65
    %v68 = vld [vmem:[%s67] sm:$0x1]
    %69 = vrot.lane.b32.xlu0 %v68, 4
    %v70 = vpop.permute.xlu0 %69
    %vm71 = vcmask 64544
    %s72 = scalar_lea.vmem [#allocation0], 18
    %73 = vst.msk [vmem:[%s72] sm:$0x1] %vm71, %v70
    %s75 = ssub.s32 16, 1
    %v76 = vld [vmem:[#allocation0] sm:%s75]
    %s78 = ssub.s32 16, 1
    %79 = vst [vmem:[%s1] sm:%s78] %v76
    %s80 = scalar_lea.vmem [#allocation0], 8
    %v81 = vld [vmem:[%s80] sm:%s75]
    %s83 = ssub.s32 16, 1
    %s84 = scalar_lea.vmem %s1, 4
    %85 = vst [vmem:[%s84] sm:%s83] %v81
    %s86 = scalar_lea.vmem [#allocation0], 16
    %v87 = vld [vmem:[%s86] sm:%s75]
    %s89 = ssub.s32 16, 1
    %s90 = scalar_lea.vmem %s1, 8
    %91 = vst [vmem:[%s90] sm:%s89] %v87

// kernel: _dwconv3x3_nchw.1
$region0: #{_dwconv3x3_nchw.1}
  #allocation0 [shape = 'u32[]', space=smem, size = 0x4, offset = 0x4, fixed_abs, tag = 'smem constant byte address 0x4 - core index']
  #allocation1 [shape = 'u32[72,128]{1,0:T(1,128)}', space=vmem, size = 0x9000, scoped, tag = 'internal scratch']
  %s0 = inlined_call_operand.vmem [shape: f32[1,16,16,1,128], index: 0, kind: input, shape index: {}, may-alias: {0,1,2}]
  %s1 = inlined_call_operand.vmem [shape: f32[1,16,16,1,128], index: 1, kind: input, shape index: {}, may-alias: {0,1,2}]
  %s2 = inlined_call_operand.vmem [shape: f32[1,16,16,1,128], index: 2, kind: input, shape index: {}, may-alias: {0,1,2}]
  %s3 = inlined_call_operand.vmem [shape: f32[3,3,1,1,128], index: 3, kind: input, shape index: {}]
  %s4 = inlined_call_operand.vmem [shape: f32[1,1,128], index: 4, kind: input, shape index: {}]
  %s5 = inlined_call_operand.vmem [shape: f32[1,16,16,1,128], index: 5, kind: output, shape index: {}]
  %s6 = sld [smem:[#allocation0]]
  $region53: #{_dwconv3x3_nchw.1} parent=0
    _
  %s8 = ssub.s32 1, %s6
  %s9 = scalar_select 0, %s8, %s6
  loop: start=0, step=1, limit=4
  $region2: #{_dwconv3x3_nchw.1} parent=0 // loop_pre_header
    _
  $region3: #{_dwconv3x3_nchw.1} parent=0 // loop_header
    %s11 = sphi 0, %s15
    %p12 = scmp.ge.s32.totalorder %s11, 4
    %s18 = sphi 0, %s30
    %s19 = sphi 0, %s26
    %s20 = sphi 0, %s18
    %s21 = sphi 0, %s19
    %s22 = sphi 0, %s20
    %s23 = sphi 0, %s21
    %s35 = sphi 0, %s37
    %s38 = sphi 0, %s35
    %s39 = sphi 0, %s38
    %s55 = sphi 0, %s39
    %s71 = sphi 0, %s73
    %s74 = sphi 0, %s71
    %s75 = sphi 0, %s74
    %s91 = sphi 0, %s75
    %s107 = sphi 0, %s109
    %s110 = sphi 0, %s107
    %s111 = sphi 0, %s110
    %s127 = sphi 0, %s111
    %s133 = sphi 0, %s135
    %s136 = sphi 0, %s133
    %s137 = sphi 0, %s136
    %s153 = sphi 0, %s137
    %s159 = sphi 0, %s161
    %s162 = sphi 0, %s159
    %s163 = sphi 0, %s162
    %s179 = sphi 0, %s163
    %s187 = sphi 0, %s189
    %s190 = sphi 0, %s187
    %s191 = sphi 0, %s190
    %s207 = sphi 0, %s191
  $region4: #{_dwconv3x3_nchw.1} parent=0 // loop_header_branch
    %14 = sbr.rel (%p12) target = $region8
  $region5: #{_dwconv3x3_nchw.1} parent=0 // loop_body
    %s16 = ssub.s32 %s11, 1
    %s17 = ssub.s32 %s11, 2
    %s24 = sadd.s32 1, %s19
    %p25 = scmp.ge.s32.totalorder %s24, 2
    %s26 = scalar_select %p25, 0, %s24
    %s27 = sadd.s32 1, %s18
    %s28 = scalar_select %p25, %s27, %s18
    %p29 = scmp.ge.s32.totalorder %s28, 1
    %s30 = scalar_select %p29, 0, %s28
    %s31 = ssub.s32 %s18, %s30
    %s32 = ssub.s32 %s19, %s26
    %s33 = sor.u32 %s31, %s32
    %p34 = scmp.eq.s32.totalorder %s33, 0
    %s36 = sadd.s32 %s35, 1
    %s37 = scalar_select %p34, %s35, %s36
    %p40 = pneg %p34
    %p41 = scmp.eq.s32.totalorder %s11, 1
    %p42 = por %p40, %p41
    %p43 = scmp.ne.s32.totalorder %s35, %s38
    %p44 = scmp.eq.s32.totalorder %s11, 0
    %p45 = por %p43, %p44
    %p46 = scmp.ne.s32.totalorder %s35, %s38
    %p47 = scmp.eq.s32.totalorder %s16, 1
    %p48 = por %p46, %p47
    %p49 = scmp.ne.s32.totalorder %s38, %s39
    %p50 = scmp.eq.s32.totalorder %s16, 0
    %p51 = por %p49, %p50
    %p52 = scmp.ne.s32.totalorder %s38, %s39
    %p53 = scmp.eq.s32.totalorder %s17, 1
    %p54 = por %p52, %p53
    %p56 = scmp.ne.s32.totalorder %s39, %s55
    %p57 = scmp.eq.s32.totalorder %s17, 0
    %p58 = por %p56, %p57
    %s59 = smul.u32 %s19, 8
    %s60 = ssub.s32 %s59, 1
    %p61 = scmp.gt.s32.totalorder %s60, 0
    %s62 = scalar_select %p61, %s60, 0
    %s63 = smul.u32 %s26, 8
    %s64 = ssub.s32 %s63, 1
    %p65 = scmp.gt.s32.totalorder %s64, 0
    %s66 = scalar_select %p65, %s64, 0
    %s67 = ssub.s32 %s18, %s30
    %s68 = ssub.s32 %s62, %s66
    %s69 = sor.u32 %s67, %s68
    %p70 = scmp.eq.s32.totalorder %s69, 0
    %s72 = sadd.s32 %s71, 1
    %s73 = scalar_select %p70, %s71, %s72
    %p76 = pneg %p70
    %p77 = scmp.eq.s32.totalorder %s11, 1
    %p78 = por %p76, %p77
    %p79 = scmp.ne.s32.totalorder %s71, %s74
    %p80 = scmp.eq.s32.totalorder %s11, 0
    %p81 = por %p79, %p80
    %p82 = scmp.ne.s32.totalorder %s71, %s74
    %p83 = scmp.eq.s32.totalorder %s16, 1
    %p84 = por %p82, %p83
    %p85 = scmp.ne.s32.totalorder %s74, %s75
    %p86 = scmp.eq.s32.totalorder %s16, 0
    %p87 = por %p85, %p86
    %p88 = scmp.ne.s32.totalorder %s74, %s75
    %p89 = scmp.eq.s32.totalorder %s17, 1
    %p90 = por %p88, %p89
    %p92 = scmp.ne.s32.totalorder %s75, %s91
    %p93 = scmp.eq.s32.totalorder %s17, 0
    %p94 = por %p92, %p93
    %s95 = sadd.s32 %s19, 1
    %s96 = smul.u32 %s95, 8
    %p97 = scmp.lt.s32.totalorder %s96, 15
    %s98 = scalar_select %p97, %s96, 15
    %s99 = sadd.s32 %s26, 1
    %s100 = smul.u32 %s99, 8
    %p101 = scmp.lt.s32.totalorder %s100, 15
    %s102 = scalar_select %p101, %s100, 15
    %s103 = ssub.s32 %s18, %s30
    %s104 = ssub.s32 %s98, %s102
    %s105 = sor.u32 %s103, %s104
    %p106 = scmp.eq.s32.totalorder %s105, 0
    %s108 = sadd.s32 %s107, 1
    %s109 = scalar_select %p106, %s107, %s108
    %p112 = pneg %p106
    %p113 = scmp.eq.s32.totalorder %s11, 1
    %p114 = por %p112, %p113
    %p115 = scmp.ne.s32.totalorder %s107, %s110
    %p116 = scmp.eq.s32.totalorder %s11, 0
    %p117 = por %p115, %p116
    %p118 = scmp.ne.s32.totalorder %s107, %s110
    %p119 = scmp.eq.s32.totalorder %s16, 1
    %p120 = por %p118, %p119
    %p121 = scmp.ne.s32.totalorder %s110, %s111
    %p122 = scmp.eq.s32.totalorder %s16, 0
    %p123 = por %p121, %p122
    %p124 = scmp.ne.s32.totalorder %s110, %s111
    %p125 = scmp.eq.s32.totalorder %s17, 1
    %p126 = por %p124, %p125
    %p128 = scmp.ne.s32.totalorder %s111, %s127
    %p129 = scmp.eq.s32.totalorder %s17, 0
    %p130 = por %p128, %p129
    %s131 = ssub.s32 %s18, %s30
    %p132 = scmp.eq.s32.totalorder %s131, 0
    %s134 = sadd.s32 %s133, 1
    %s135 = scalar_select %p132, %s133, %s134
    %p138 = pneg %p132
    %p139 = scmp.eq.s32.totalorder %s11, 1
    %p140 = por %p138, %p139
    %p141 = scmp.ne.s32.totalorder %s133, %s136
    %p142 = scmp.eq.s32.totalorder %s11, 0
    %p143 = por %p141, %p142
    %p144 = scmp.ne.s32.totalorder %s133, %s136
    %p145 = scmp.eq.s32.totalorder %s16, 1
    %p146 = por %p144, %p145
    %p147 = scmp.ne.s32.totalorder %s136, %s137
    %p148 = scmp.eq.s32.totalorder %s16, 0
    %p149 = por %p147, %p148
    %p150 = scmp.ne.s32.totalorder %s136, %s137
    %p151 = scmp.eq.s32.totalorder %s17, 1
    %p152 = por %p150, %p151
    %p154 = scmp.ne.s32.totalorder %s137, %s153
    %p155 = scmp.eq.s32.totalorder %s17, 0
    %p156 = por %p154, %p155
    %s157 = ssub.s32 %s18, %s30
    %p158 = scmp.eq.s32.totalorder %s157, 0
    %s160 = sadd.s32 %s159, 1
    %s161 = scalar_select %p158, %s159, %s160
    %p164 = pneg %p158
    %p165 = scmp.eq.s32.totalorder %s11, 1
    %p166 = por %p164, %p165
    %p167 = scmp.ne.s32.totalorder %s159, %s162
    %p168 = scmp.eq.s32.totalorder %s11, 0
    %p169 = por %p167, %p168
    %p170 = scmp.ne.s32.totalorder %s159, %s162
    %p171 = scmp.eq.s32.totalorder %s16, 1
    %p172 = por %p170, %p171
    %p173 = scmp.ne.s32.totalorder %s162, %s163
    %p174 = scmp.eq.s32.totalorder %s16, 0
    %p175 = por %p173, %p174
    %p176 = scmp.ne.s32.totalorder %s162, %s163
    %p177 = scmp.eq.s32.totalorder %s17, 1
    %p178 = por %p176, %p177
    %p180 = scmp.ne.s32.totalorder %s163, %s179
    %p181 = scmp.eq.s32.totalorder %s17, 0
    %p182 = por %p180, %p181
    %s183 = ssub.s32 %s18, %s30
    %s184 = ssub.s32 %s19, %s26
    %s185 = sor.u32 %s183, %s184
    %p186 = scmp.eq.s32.totalorder %s185, 0
    %s188 = sadd.s32 %s187, 1
    %s189 = scalar_select %p186, %s187, %s188
    %p192 = pneg %p186
    %p193 = scmp.eq.s32.totalorder %s11, 1
    %p194 = por %p192, %p193
    %p195 = scmp.ne.s32.totalorder %s187, %s190
    %p196 = scmp.eq.s32.totalorder %s11, 0
    %p197 = por %p195, %p196
    %p198 = scmp.ne.s32.totalorder %s187, %s190
    %p199 = scmp.eq.s32.totalorder %s16, 1
    %p200 = por %p198, %p199
    %p201 = scmp.ne.s32.totalorder %s190, %s191
    %p202 = scmp.eq.s32.totalorder %s16, 0
    %p203 = por %p201, %p202
    %p204 = scmp.ne.s32.totalorder %s190, %s191
    %p205 = scmp.eq.s32.totalorder %s17, 1
    %p206 = por %p204, %p205
    %p208 = scmp.ne.s32.totalorder %s191, %s207
    %p209 = scmp.eq.s32.totalorder %s17, 0
    %p210 = por %p208, %p209
    %p211 = scmp.le.s32.totalorder 1, %s11
    %p212 = scmp.lt.s32.totalorder %s11, 3
    %p213 = pnand %p211, %p212
    %p214 = pneg %p213
    // Predicated region
    $region9: #{_dwconv3x3_nchw.1} parent=5 // pred_check
      _
    $region10: #{_dwconv3x3_nchw.1} parent=5 // pred_check_branch
      %216 = sbr.rel (%p213) target = $region12
    $region11: #{_dwconv3x3_nchw.1} parent=5 // pred_region
      %s217 = ssub.s32 %s11, 1
      // Predicated region
      $region13: #{_dwconv3x3_nchw.1} parent=11 // pred_check
        %p218 = pneg %p149
      $region14: #{_dwconv3x3_nchw.1} parent=11 // pred_check_branch
        %220 = sbr.rel (%p218) target = $region16
      $region15: #{_dwconv3x3_nchw.1} parent=11 // pred_region
        %p221 = scmp.lt.s32.totalorder %s20, 0
        %s222 = scalar_select %p221, %s20, 0
        %s223 = scalar_lea.vmem %s3, %s222
      $region16: #{_dwconv3x3_nchw.1} parent=11 // pred_fallthru
        _
      // Predicated region
      $region17: #{_dwconv3x3_nchw.1} parent=11 // pred_check
        %p224 = pneg %p175
      $region18: #{_dwconv3x3_nchw.1} parent=11 // pred_check_branch
        %226 = sbr.rel (%p224) target = $region20
      $region19: #{_dwconv3x3_nchw.1} parent=11 // pred_region
        %p227 = scmp.lt.s32.totalorder %s20, 0
        %s228 = scalar_select %p227, %s20, 0
        %s229 = scalar_lea.vmem %s4, %s228
      $region20: #{_dwconv3x3_nchw.1} parent=11 // pred_fallthru
        _
    $region12: #{_dwconv3x3_nchw.1} parent=5 // pred_fallthru
      _
    %p230 = scmp.lt.s32.totalorder %s11, 2
    // Predicated region
    $region21: #{_dwconv3x3_nchw.1} parent=5 // pred_check
      %p231 = pneg %p230
    $region22: #{_dwconv3x3_nchw.1} parent=5 // pred_check_branch
      %233 = sbr.rel (%p231) target = $region24
    $region23: #{_dwconv3x3_nchw.1} parent=5 // pred_region
      // Predicated region
      $region25: #{_dwconv3x3_nchw.1} parent=23 // pred_check
        %p234 = pneg %p45
      $region26: #{_dwconv3x3_nchw.1} parent=23 // pred_check_branch
        %236 = sbr.rel (%p234) target = $region28
      $region27: #{_dwconv3x3_nchw.1} parent=23 // pred_region
        %s237 = smul.u32 8, %s19
        %p238 = scmp.lt.s32.totalorder %s18, 0
        %s239 = scalar_select %p238, %s18, 0
        %p240 = scmp.lt.s32.totalorder %s237, 15
        %s241 = scalar_select %p240, %s237, 15
        %s242 = smul.addr %s241, 16
        %s243 = smul.addr %s239, 256
        %s244 = sadd.s32 %s242, %s243
        %s245 = scalar_lea.vmem %s0, %s244
        %s246 = smul.u32 8, %s19
      $region28: #{_dwconv3x3_nchw.1} parent=23 // pred_fallthru
        _
      // Predicated region
      $region29: #{_dwconv3x3_nchw.1} parent=23 // pred_check
        %p247 = pneg %p81
      $region30: #{_dwconv3x3_nchw.1} parent=23 // pred_check_branch
        %249 = sbr.rel (%p247) target = $region32
      $region31: #{_dwconv3x3_nchw.1} parent=23 // pred_region
        %s250 = smul.u32 %s19, 8
        %s251 = ssub.s32 %s250, 1
        %p252 = scmp.gt.s32.totalorder %s251, 0
        %s253 = scalar_select %p252, %s251, 0
        %p254 = scmp.lt.s32.totalorder %s18, 0
        %s255 = scalar_select %p254, %s18, 0
        %p256 = scmp.lt.s32.totalorder %s253, 15
        %s257 = scalar_select %p256, %s253, 15
        %s258 = smul.addr %s257, 16
        %s259 = smul.addr %s255, 256
        %s260 = sadd.s32 %s258, %s259
        %s261 = scalar_lea.vmem %s1, %s260
        %s262 = smul.u32 %s19, 8
        %s263 = ssub.s32 %s262, 1
        %p264 = scmp.gt.s32.totalorder %s263, 0
        %s265 = scalar_select %p264, %s263, 0
      $region32: #{_dwconv3x3_nchw.1} parent=23 // pred_fallthru
        _
      // Predicated region
      $region33: #{_dwconv3x3_nchw.1} parent=23 // pred_check
        %p266 = pneg %p117
      $region34: #{_dwconv3x3_nchw.1} parent=23 // pred_check_branch
        %268 = sbr.rel (%p266) target = $region36
      $region35: #{_dwconv3x3_nchw.1} parent=23 // pred_region
        %s269 = sadd.s32 %s19, 1
        %s270 = smul.u32 %s269, 8
        %p271 = scmp.lt.s32.totalorder %s270, 15
        %s272 = scalar_select %p271, %s270, 15
        %p273 = scmp.lt.s32.totalorder %s18, 0
        %s274 = scalar_select %p273, %s18, 0
        %p275 = scmp.lt.s32.totalorder %s272, 15
        %s276 = scalar_select %p275, %s272, 15
        %s277 = smul.addr %s276, 16
        %s278 = smul.addr %s274, 256
        %s279 = sadd.s32 %s277, %s278
        %s280 = scalar_lea.vmem %s2, %s279
        %s281 = sadd.s32 %s19, 1
        %s282 = smul.u32 %s281, 8
        %p283 = scmp.lt.s32.totalorder %s282, 15
        %s284 = scalar_select %p283, %s282, 15
      $region36: #{_dwconv3x3_nchw.1} parent=23 // pred_fallthru
        _
    $region24: #{_dwconv3x3_nchw.1} parent=5 // pred_fallthru
      _
    %p285 = scmp.le.s32.totalorder 1, %s11
    %p286 = scmp.lt.s32.totalorder %s11, 3
    %p287 = pnand %p285, %p286
    %p288 = pneg %p287
    // Predicated region
    $region37: #{_dwconv3x3_nchw.1} parent=5 // pred_check
      _
    $region38: #{_dwconv3x3_nchw.1} parent=5 // pred_check_branch
      %290 = sbr.rel (%p287) target = $region40
    $region39: #{_dwconv3x3_nchw.1} parent=5 // pred_region
      %s291 = ssub.s32 %s11, 1
      %s292 = smul.u32 8, %s21
      %p293 = scmp.lt.s32.totalorder %s20, 0
      %s294 = scalar_select %p293, %s20, 0
      %p295 = scmp.lt.s32.totalorder %s292, 15
      %s296 = scalar_select %p295, %s292, 15
      %s297 = smul.addr %s296, 16
      %s298 = smul.addr %s294, 256
      %s299 = sadd.s32 %s297, %s298
      %s300 = scalar_lea.vmem %s0, %s299
      %p301 = pneg %p51
      %p302 = pneg %p48
      %s303 = smul.u32 %s21, 8
      %s304 = ssub.s32 %s303, 1
      %p305 = scmp.gt.s32.totalorder %s304, 0
      %s306 = scalar_select %p305, %s304, 0
      %p307 = scmp.lt.s32.totalorder %s20, 0
      %s308 = scalar_select %p307, %s20, 0
      %p309 = scmp.lt.s32.totalorder %s306, 15
      %s310 = scalar_select %p309, %s306, 15
      %s311 = smul.addr %s310, 16
      %s312 = smul.addr %s308, 256
      %s313 = sadd.s32 %s311, %s312
      %s314 = scalar_lea.vmem %s1, %s313
      %p315 = pneg %p87
      %p316 = pneg %p84
      %s317 = sadd.s32 %s21, 1
      %s318 = smul.u32 %s317, 8
      %p319 = scmp.lt.s32.totalorder %s318, 15
      %s320 = scalar_select %p319, %s318, 15
      %p321 = scmp.lt.s32.totalorder %s20, 0
      %s322 = scalar_select %p321, %s20, 0
      %p323 = scmp.lt.s32.totalorder %s320, 15
      %s324 = scalar_select %p323, %s320, 15
      %s325 = smul.addr %s324, 16
      %s326 = smul.addr %s322, 256
      %s327 = sadd.s32 %s325, %s326
      %s328 = scalar_lea.vmem %s2, %s327
      %p329 = pneg %p123
      %p330 = pneg %p120
      %p331 = scmp.lt.s32.totalorder %s20, 0
      %s332 = scalar_select %p331, %s20, 0
      %s333 = scalar_lea.vmem %s3, %s332
      %p334 = pneg %p149
      %p335 = pneg %p146
      %p336 = scmp.lt.s32.totalorder %s20, 0
      %s337 = scalar_select %p336, %s20, 0
      %s338 = scalar_lea.vmem %s4, %s337
      %p339 = pneg %p175
      %p340 = pneg %p172
      %p341 = pneg %p203
      %p342 = pneg %p200
      %s343 = smul.u32 8, %s21
      %p344 = scmp.lt.s32.totalorder %s20, 0
      %s345 = scalar_select %p344, %s20, 0
      %p346 = scmp.lt.s32.totalorder %s343, 15
      %s347 = scalar_select %p346, %s343, 15
      %s348 = smul.addr %s347, 16
      %s349 = smul.addr %s345, 256
      %s350 = sadd.s32 %s348, %s349
      %s351 = scalar_lea.vmem %s5, %s350
      %s352 = smul.u32 8, %s21
      %p353 = scmp.lt.s32.totalorder %s20, 0
      %s354 = scalar_select %p353, %s20, 0
      %p355 = scmp.lt.s32.totalorder %s352, 15
      %s356 = scalar_select %p355, %s352, 15
      %s357 = smul.addr %s356, 16
      %s358 = smul.addr %s354, 256
      %s359 = sadd.s32 %s357, %s358
      %s360 = scalar_lea.vmem %s0, %s359
      %s361 = smul.u32 8, %s21
      %s362 = smul.u32 %s21, 8
      %s363 = ssub.s32 %s362, 1
      %p364 = scmp.gt.s32.totalorder %s363, 0
      %s365 = scalar_select %p364, %s363, 0
      %p366 = scmp.lt.s32.totalorder %s20, 0
      %s367 = scalar_select %p366, %s20, 0
      %p368 = scmp.lt.s32.totalorder %s365, 15
      %s369 = scalar_select %p368, %s365, 15
      %s370 = smul.addr %s369, 16
      %s371 = smul.addr %s367, 256
      %s372 = sadd.s32 %s370, %s371
      %s373 = scalar_lea.vmem %s1, %s372
      %s374 = smul.u32 %s21, 8
      %s375 = ssub.s32 %s374, 1
      %p376 = scmp.gt.s32.totalorder %s375, 0
      %s377 = scalar_select %p376, %s375, 0
      %s378 = sadd.s32 %s21, 1
      %s379 = smul.u32 %s378, 8
      %p380 = scmp.lt.s32.totalorder %s379, 15
      %s381 = scalar_select %p380, %s379, 15
      %p382 = scmp.lt.s32.totalorder %s20, 0
      %s383 = scalar_select %p382, %s20, 0
      %p384 = scmp.lt.s32.totalorder %s381, 15
      %s385 = scalar_select %p384, %s381, 15
      %s386 = smul.addr %s385, 16
      %s387 = smul.addr %s383, 256
      %s388 = sadd.s32 %s386, %s387
      %s389 = scalar_lea.vmem %s2, %s388
      %s390 = sadd.s32 %s21, 1
      %s391 = smul.u32 %s390, 8
      %p392 = scmp.lt.s32.totalorder %s391, 15
      %s393 = scalar_select %p392, %s391, 15
      %p394 = scmp.lt.s32.totalorder %s20, 0
      %s395 = scalar_select %p394, %s20, 0
      %s396 = scalar_lea.vmem %s3, %s395
      %p397 = scmp.lt.s32.totalorder %s20, 0
      %s398 = scalar_select %p397, %s20, 0
      %s399 = scalar_lea.vmem %s4, %s398
      %s400 = smul.u32 8, %s21
      %p401 = scmp.lt.s32.totalorder %s20, 0
      %s402 = scalar_select %p401, %s20, 0
      %p403 = scmp.lt.s32.totalorder %s400, 15
      %s404 = scalar_select %p403, %s400, 15
      %s405 = smul.addr %s404, 16
      %s406 = smul.addr %s402, 256
      %s407 = sadd.s32 %s405, %s406
      %s408 = scalar_lea.vmem %s5, %s407
      %s409 = smul.u32 8, %s21
      %s410 = smul.u32 %s21, 8
      %v411 = vld [vmem:[%s396] sm:$0x1]
      %v412 = vld [vmem:[%s396 + $0x1] sm:$0x1]
      %v413 = vld [vmem:[%s396 + $0x2] sm:$0x1]
      %v414 = vld [vmem:[%s396 + $0x3] sm:$0x1]
      %v415 = vld [vmem:[%s396 + $0x4] sm:$0x1]
      %v416 = vld [vmem:[%s396 + $0x5] sm:$0x1]
      %v417 = vld [vmem:[%s396 + $0x6] sm:$0x1]
      %v418 = vld [vmem:[%s396 + $0x7] sm:$0x1]
      %v419 = vld [vmem:[%s396 + $0x8] sm:$0x1]
      %v420 = vld [vmem:[%s399] sm:$0x1]
      %v421 = vld [vmem:[%s360] sm:$0x1]
      %v422 = vld [vmem:[%s360 + $0x1] sm:$0x1]
      %v423 = vld [vmem:[%s360 + $0x2] sm:$0x1]
      %v424 = vld [vmem:[%s360 + $0x3] sm:$0x1]
      %v425 = vld [vmem:[%s360 + $0x4] sm:$0x1]
      %v426 = vld [vmem:[%s360 + $0x5] sm:$0x1]
      %v427 = vld [vmem:[%s360 + $0x6] sm:$0x1]
      %v428 = vld [vmem:[%s360 + $0x7] sm:$0x1]
      %v429 = vld [vmem:[%s360 + $0x8] sm:$0x1]
      %v430 = vld [vmem:[%s360 + $0x9] sm:$0x1]
      %v431 = vld [vmem:[%s360 + $0xa] sm:$0x1]
      %v432 = vld [vmem:[%s360 + $0xb] sm:$0x1]
      %v433 = vld [vmem:[%s360 + $0xc] sm:$0x1]
      %v434 = vld [vmem:[%s360 + $0xd] sm:$0x1]
      %v435 = vld [vmem:[%s360 + $0xe] sm:$0x1]
      %v436 = vld [vmem:[%s360 + $0xf] sm:$0x1]
      %v437 = vld [vmem:[%s360 + $0x10] sm:$0x1]
      %v438 = vld [vmem:[%s360 + $0x11] sm:$0x1]
      %v439 = vld [vmem:[%s360 + $0x12] sm:$0x1]
      %v440 = vld [vmem:[%s360 + $0x13] sm:$0x1]
      %v441 = vld [vmem:[%s360 + $0x14] sm:$0x1]
      %v442 = vld [vmem:[%s360 + $0x15] sm:$0x1]
      %v443 = vld [vmem:[%s360 + $0x16] sm:$0x1]
      %v444 = vld [vmem:[%s360 + $0x17] sm:$0x1]
      %v445 = vld [vmem:[%s360 + $0x18] sm:$0x1]
      %v446 = vld [vmem:[%s360 + $0x19] sm:$0x1]
      %v447 = vld [vmem:[%s360 + $0x1a] sm:$0x1]
      %v448 = vld [vmem:[%s360 + $0x1b] sm:$0x1]
      %v449 = vld [vmem:[%s360 + $0x1c] sm:$0x1]
      %v450 = vld [vmem:[%s360 + $0x1d] sm:$0x1]
      %v451 = vld [vmem:[%s360 + $0x1e] sm:$0x1]
      %v452 = vld [vmem:[%s360 + $0x1f] sm:$0x1]
      %v453 = vld [vmem:[%s360 + $0x20] sm:$0x1]
      %v454 = vld [vmem:[%s360 + $0x21] sm:$0x1]
      %v455 = vld [vmem:[%s360 + $0x22] sm:$0x1]
      %v456 = vld [vmem:[%s360 + $0x23] sm:$0x1]
      %v457 = vld [vmem:[%s360 + $0x24] sm:$0x1]
      %v458 = vld [vmem:[%s360 + $0x25] sm:$0x1]
      %v459 = vld [vmem:[%s360 + $0x26] sm:$0x1]
      %v460 = vld [vmem:[%s360 + $0x27] sm:$0x1]
      %v461 = vld [vmem:[%s360 + $0x28] sm:$0x1]
      %v462 = vld [vmem:[%s360 + $0x29] sm:$0x1]
      %v463 = vld [vmem:[%s360 + $0x2a] sm:$0x1]
      %v464 = vld [vmem:[%s360 + $0x2b] sm:$0x1]
      %v465 = vld [vmem:[%s360 + $0x2c] sm:$0x1]
      %v466 = vld [vmem:[%s360 + $0x2d] sm:$0x1]
      %v467 = vld [vmem:[%s360 + $0x2e] sm:$0x1]
      %v468 = vld [vmem:[%s360 + $0x2f] sm:$0x1]
      %v469 = vld [vmem:[%s360 + $0x30] sm:$0x1]
      %v470 = vld [vmem:[%s360 + $0x31] sm:$0x1]
      %v471 = vld [vmem:[%s360 + $0x32] sm:$0x1]
      %v472 = vld [vmem:[%s360 + $0x33] sm:$0x1]
      %v473 = vld [vmem:[%s360 + $0x34] sm:$0x1]
      %v474 = vld [vmem:[%s360 + $0x35] sm:$0x1]
      %v475 = vld [vmem:[%s360 + $0x36] sm:$0x1]
      %v476 = vld [vmem:[%s360 + $0x37] sm:$0x1]
      %v477 = vld [vmem:[%s360 + $0x38] sm:$0x1]
      %v478 = vld [vmem:[%s360 + $0x39] sm:$0x1]
      %v479 = vld [vmem:[%s360 + $0x3a] sm:$0x1]
      %v480 = vld [vmem:[%s360 + $0x3b] sm:$0x1]
      %v481 = vld [vmem:[%s360 + $0x3c] sm:$0x1]
      %v482 = vld [vmem:[%s360 + $0x3d] sm:$0x1]
      %v483 = vld [vmem:[%s360 + $0x3e] sm:$0x1]
      %v484 = vld [vmem:[%s360 + $0x3f] sm:$0x1]
      %v485 = vld [vmem:[%s360 + $0x40] sm:$0x1]
      %v486 = vld [vmem:[%s360 + $0x41] sm:$0x1]
      %v487 = vld [vmem:[%s360 + $0x42] sm:$0x1]
      %v488 = vld [vmem:[%s360 + $0x43] sm:$0x1]
      %v489 = vld [vmem:[%s360 + $0x44] sm:$0x1]
      %v490 = vld [vmem:[%s360 + $0x45] sm:$0x1]
      %v491 = vld [vmem:[%s360 + $0x46] sm:$0x1]
      %v492 = vld [vmem:[%s360 + $0x47] sm:$0x1]
      %v493 = vld [vmem:[%s360 + $0x48] sm:$0x1]
      %v494 = vld [vmem:[%s360 + $0x49] sm:$0x1]
      %v495 = vld [vmem:[%s360 + $0x4a] sm:$0x1]
      %v496 = vld [vmem:[%s360 + $0x4b] sm:$0x1]
      %v497 = vld [vmem:[%s360 + $0x4c] sm:$0x1]
      %v498 = vld [vmem:[%s360 + $0x4d] sm:$0x1]
      %v499 = vld [vmem:[%s360 + $0x4e] sm:$0x1]
      %v500 = vld [vmem:[%s360 + $0x4f] sm:$0x1]
      %v501 = vld [vmem:[%s360 + $0x50] sm:$0x1]
      %v502 = vld [vmem:[%s360 + $0x51] sm:$0x1]
      %v503 = vld [vmem:[%s360 + $0x52] sm:$0x1]
      %v504 = vld [vmem:[%s360 + $0x53] sm:$0x1]
      %v505 = vld [vmem:[%s360 + $0x54] sm:$0x1]
      %v506 = vld [vmem:[%s360 + $0x55] sm:$0x1]
      %v507 = vld [vmem:[%s360 + $0x56] sm:$0x1]
      %v508 = vld [vmem:[%s360 + $0x57] sm:$0x1]
      %v509 = vld [vmem:[%s360 + $0x58] sm:$0x1]
      %v510 = vld [vmem:[%s360 + $0x59] sm:$0x1]
      %v511 = vld [vmem:[%s360 + $0x5a] sm:$0x1]
      %v512 = vld [vmem:[%s360 + $0x5b] sm:$0x1]
      %v513 = vld [vmem:[%s360 + $0x5c] sm:$0x1]
      %v514 = vld [vmem:[%s360 + $0x5d] sm:$0x1]
      %v515 = vld [vmem:[%s360 + $0x5e] sm:$0x1]
      %v516 = vld [vmem:[%s360 + $0x5f] sm:$0x1]
      %v517 = vld [vmem:[%s360 + $0x60] sm:$0x1]
      %v518 = vld [vmem:[%s360 + $0x61] sm:$0x1]
      %v519 = vld [vmem:[%s360 + $0x62] sm:$0x1]
      %v520 = vld [vmem:[%s360 + $0x63] sm:$0x1]
      %v521 = vld [vmem:[%s360 + $0x64] sm:$0x1]
      %v522 = vld [vmem:[%s360 + $0x65] sm:$0x1]
      %v523 = vld [vmem:[%s360 + $0x66] sm:$0x1]
      %v524 = vld [vmem:[%s360 + $0x67] sm:$0x1]
      %v525 = vld [vmem:[%s360 + $0x68] sm:$0x1]
      %v526 = vld [vmem:[%s360 + $0x69] sm:$0x1]
      %v527 = vld [vmem:[%s360 + $0x6a] sm:$0x1]
      %v528 = vld [vmem:[%s360 + $0x6b] sm:$0x1]
      %v529 = vld [vmem:[%s360 + $0x6c] sm:$0x1]
      %v530 = vld [vmem:[%s360 + $0x6d] sm:$0x1]
      %v531 = vld [vmem:[%s360 + $0x6e] sm:$0x1]
      %v532 = vld [vmem:[%s360 + $0x6f] sm:$0x1]
      %v533 = vld [vmem:[%s360 + $0x70] sm:$0x1]
      %v534 = vld [vmem:[%s360 + $0x71] sm:$0x1]
      %v535 = vld [vmem:[%s360 + $0x72] sm:$0x1]
      %v536 = vld [vmem:[%s360 + $0x73] sm:$0x1]
      %v537 = vld [vmem:[%s360 + $0x74] sm:$0x1]
      %v538 = vld [vmem:[%s360 + $0x75] sm:$0x1]
      %v539 = vld [vmem:[%s360 + $0x76] sm:$0x1]
      %v540 = vld [vmem:[%s360 + $0x77] sm:$0x1]
      %v541 = vld [vmem:[%s360 + $0x78] sm:$0x1]
      %v542 = vld [vmem:[%s360 + $0x79] sm:$0x1]
      %v543 = vld [vmem:[%s360 + $0x7a] sm:$0x1]
      %v544 = vld [vmem:[%s360 + $0x7b] sm:$0x1]
      %v545 = vld [vmem:[%s360 + $0x7c] sm:$0x1]
      %v546 = vld [vmem:[%s360 + $0x7d] sm:$0x1]
      %v547 = vld [vmem:[%s360 + $0x7e] sm:$0x1]
      %v548 = vld [vmem:[%s360 + $0x7f] sm:$0x1]
      %p549 = scmp.gt.s32.totalorder %s410, 0
      %v550 = vld [vmem:[%s373] sm:$0x1]
      %v551 = vld [vmem:[%s373 + $0x1] sm:$0x1]
      %v552 = vld [vmem:[%s373 + $0x2] sm:$0x1]
      %v553 = vld [vmem:[%s373 + $0x3] sm:$0x1]
      %v554 = vld [vmem:[%s373 + $0x4] sm:$0x1]
      %v555 = vld [vmem:[%s373 + $0x5] sm:$0x1]
      %v556 = vld [vmem:[%s373 + $0x6] sm:$0x1]
      %v557 = vld [vmem:[%s373 + $0x7] sm:$0x1]
      %v558 = vld [vmem:[%s373 + $0x8] sm:$0x1]
      %v559 = vld [vmem:[%s373 + $0x9] sm:$0x1]
      %v560 = vld [vmem:[%s373 + $0xa] sm:$0x1]
      %v561 = vld [vmem:[%s373 + $0xb] sm:$0x1]
      %v562 = vld [vmem:[%s373 + $0xc] sm:$0x1]
      %v563 = vld [vmem:[%s373 + $0xd] sm:$0x1]
      %v564 = vld [vmem:[%s373 + $0xe] sm:$0x1]
      %v565 = vld [vmem:[%s373 + $0xf] sm:$0x1]
      %s566 = scalar_select %p549, 1, 0
      %v567 = vstv %s566
      %vm568 = vcmp.eq.s32.totalorder %v567, 1
      %v569 = vsel %vm568, %v550, 0.0
      %v570 = vsel %vm568, %v551, 0.0
      %v571 = vsel %vm568, %v552, 0.0
      %v572 = vsel %vm568, %v553, 0.0
      %v573 = vsel %vm568, %v554, 0.0
      %v574 = vsel %vm568, %v555, 0.0
      %v575 = vsel %vm568, %v556, 0.0
      %v576 = vsel %vm568, %v557, 0.0
      %v577 = vsel %vm568, %v558, 0.0
      %v578 = vsel %vm568, %v559, 0.0
      %v579 = vsel %vm568, %v560, 0.0
      %v580 = vsel %vm568, %v561, 0.0
      %v581 = vsel %vm568, %v562, 0.0
      %v582 = vsel %vm568, %v563, 0.0
      %v583 = vsel %vm568, %v564, 0.0
      %v584 = vsel %vm568, %v565, 0.0
      %s585 = sadd.s32 %s410, 8
      %p586 = scmp.lt.s32.totalorder %s585, 16
      %v587 = vld [vmem:[%s389] sm:$0x1]
      %v588 = vld [vmem:[%s389 + $0x1] sm:$0x1]
      %v589 = vld [vmem:[%s389 + $0x2] sm:$0x1]
      %v590 = vld [vmem:[%s389 + $0x3] sm:$0x1]
      %v591 = vld [vmem:[%s389 + $0x4] sm:$0x1]
      %v592 = vld [vmem:[%s389 + $0x5] sm:$0x1]
      %v593 = vld [vmem:[%s389 + $0x6] sm:$0x1]
      %v594 = vld [vmem:[%s389 + $0x7] sm:$0x1]
      %v595 = vld [vmem:[%s389 + $0x8] sm:$0x1]
      %v596 = vld [vmem:[%s389 + $0x9] sm:$0x1]
      %v597 = vld [vmem:[%s389 + $0xa] sm:$0x1]
      %v598 = vld [vmem:[%s389 + $0xb] sm:$0x1]
      %v599 = vld [vmem:[%s389 + $0xc] sm:$0x1]
      %v600 = vld [vmem:[%s389 + $0xd] sm:$0x1]
      %v601 = vld [vmem:[%s389 + $0xe] sm:$0x1]
      %v602 = vld [vmem:[%s389 + $0xf] sm:$0x1]
      %s603 = scalar_select %p586, 1, 0
      %v604 = vstv %s603
      %vm605 = vcmp.eq.s32.totalorder %v604, 1
      %v606 = vsel %vm605, %v587, 0.0
      %v607 = vsel %vm605, %v588, 0.0
      %v608 = vsel %vm605, %v589, 0.0
      %v609 = vsel %vm605, %v590, 0.0
      %v610 = vsel %vm605, %v591, 0.0
      %v611 = vsel %vm605, %v592, 0.0
      %v612 = vsel %vm605, %v593, 0.0
      %v613 = vsel %vm605, %v594, 0.0
      %v614 = vsel %vm605, %v595, 0.0
      %v615 = vsel %vm605, %v596, 0.0
      %v616 = vsel %vm605, %v597, 0.0
      %v617 = vsel %vm605, %v598, 0.0
      %v618 = vsel %vm605, %v599, 0.0
      %v619 = vsel %vm605, %v600, 0.0
      %v620 = vsel %vm605, %v601, 0.0
      %v621 = vsel %vm605, %v602, 0.0
      %v622 = vmul.f32 %v421, %v411
      %v623 = vmul.f32 %v422, %v411
      %v624 = vmul.f32 %v423, %v411
      %v625 = vmul.f32 %v424, %v411
      %v626 = vmul.f32 %v425, %v411
      %v627 = vmul.f32 %v426, %v411
      %v628 = vmul.f32 %v427, %v411
      %v629 = vmul.f32 %v428, %v411
      %v630 = vmul.f32 %v429, %v411
      %v631 = vmul.f32 %v430, %v411
      %v632 = vmul.f32 %v431, %v411
      %v633 = vmul.f32 %v432, %v411
      %v634 = vmul.f32 %v433, %v411
      %v635 = vmul.f32 %v434, %v411
      %v636 = vmul.f32 %v437, %v411
      %v637 = vmul.f32 %v438, %v411
      %v638 = vmul.f32 %v439, %v411
      %v639 = vmul.f32 %v440, %v411
      %v640 = vmul.f32 %v441, %v411
      %v641 = vmul.f32 %v442, %v411
      %v642 = vmul.f32 %v443, %v411
      %v643 = vmul.f32 %v444, %v411
      %v644 = vmul.f32 %v445, %v411
      %v645 = vmul.f32 %v446, %v411
      %v646 = vmul.f32 %v447, %v411
      %v647 = vmul.f32 %v448, %v411
      %v648 = vmul.f32 %v449, %v411
      %v649 = vmul.f32 %v450, %v411
      %v650 = vmul.f32 %v453, %v411
      %v651 = vmul.f32 %v454, %v411
      %v652 = vmul.f32 %v455, %v411
      %v653 = vmul.f32 %v456, %v411
      %v654 = vmul.f32 %v457, %v411
      %v655 = vmul.f32 %v458, %v411
      %v656 = vmul.f32 %v459, %v411
      %v657 = vmul.f32 %v460, %v411
      %v658 = vmul.f32 %v461, %v411
      %v659 = vmul.f32 %v462, %v411
      %v660 = vmul.f32 %v463, %v411
      %v661 = vmul.f32 %v464, %v411
      %v662 = vmul.f32 %v465, %v411
      %v663 = vmul.f32 %v466, %v411
      %v664 = vmul.f32 %v469, %v411
      %v665 = vmul.f32 %v470, %v411
      %v666 = vmul.f32 %v471, %v411
      %v667 = vmul.f32 %v472, %v411
      %v668 = vmul.f32 %v473, %v411
      %v669 = vmul.f32 %v474, %v411
      %v670 = vmul.f32 %v475, %v411
      %v671 = vmul.f32 %v476, %v411
      %v672 = vmul.f32 %v477, %v411
      %v673 = vmul.f32 %v478, %v411
      %v674 = vmul.f32 %v479, %v411
      %v675 = vmul.f32 %v480, %v411
      %v676 = vmul.f32 %v481, %v411
      %v677 = vmul.f32 %v482, %v411
      %v678 = vmul.f32 %v485, %v411
      %v679 = vmul.f32 %v486, %v411
      %v680 = vmul.f32 %v487, %v411
      %v681 = vmul.f32 %v488, %v411
      %v682 = vmul.f32 %v489, %v411
      %v683 = vmul.f32 %v490, %v411
      %v684 = vmul.f32 %v491, %v411
      %v685 = vmul.f32 %v492, %v411
      %v686 = vmul.f32 %v493, %v411
      %v687 = vmul.f32 %v494, %v411
      %v688 = vmul.f32 %v495, %v411
      %v689 = vmul.f32 %v496, %v411
      %v690 = vmul.f32 %v497, %v411
      %v691 = vmul.f32 %v498, %v411
      %v692 = vmul.f32 %v501, %v411
      %v693 = vmul.f32 %v502, %v411
      %v694 = vmul.f32 %v503, %v411
      %v695 = vmul.f32 %v504, %v411
      %v696 = vmul.f32 %v505, %v411
      %v697 = vmul.f32 %v506, %v411
      %v698 = vmul.f32 %v507, %v411
      %v699 = vmul.f32 %v508, %v411
      %v700 = vmul.f32 %v509, %v411
      %v701 = vmul.f32 %v510, %v411
      %v702 = vmul.f32 %v511, %v411
      %v703 = vmul.f32 %v512, %v411
      %v704 = vmul.f32 %v513, %v411
      %v705 = vmul.f32 %v514, %v411
      %v706 = vmul.f32 %v422, %v412
      %v707 = vmul.f32 %v423, %v412
      %v708 = vmul.f32 %v424, %v412
      %v709 = vmul.f32 %v425, %v412
      %v710 = vmul.f32 %v426, %v412
      %v711 = vmul.f32 %v427, %v412
      %v712 = vmul.f32 %v428, %v412
      %v713 = vmul.f32 %v429, %v412
      %v714 = vmul.f32 %v430, %v412
      %v715 = vmul.f32 %v431, %v412
      %v716 = vmul.f32 %v432, %v412
      %v717 = vmul.f32 %v433, %v412
      %v718 = vmul.f32 %v434, %v412
      %v719 = vmul.f32 %v435, %v412
      %v720 = vmul.f32 %v438, %v412
      %v721 = vmul.f32 %v439, %v412
      %v722 = vmul.f32 %v440, %v412
      %v723 = vmul.f32 %v441, %v412
      %v724 = vmul.f32 %v442, %v412
      %v725 = vmul.f32 %v443, %v412
      %v726 = vmul.f32 %v444, %v412
      %v727 = vmul.f32 %v445, %v412
      %v728 = vmul.f32 %v446, %v412
      %v729 = vmul.f32 %v447, %v412
      %v730 = vmul.f32 %v448, %v412
      %v731 = vmul.f32 %v449, %v412
      %v732 = vmul.f32 %v450, %v412
      %v733 = vmul.f32 %v451, %v412
      %v734 = vmul.f32 %v454, %v412
      %v735 = vmul.f32 %v455, %v412
      %v736 = vmul.f32 %v456, %v412
      %v737 = vmul.f32 %v457, %v412
      %v738 = vmul.f32 %v458, %v412
      %v739 = vmul.f32 %v459, %v412
      %v740 = vmul.f32 %v460, %v412
      %v741 = vmul.f32 %v461, %v412
      %v742 = vmul.f32 %v462, %v412
      %v743 = vmul.f32 %v463, %v412
      %v744 = vmul.f32 %v464, %v412
      %v745 = vmul.f32 %v465, %v412
      %v746 = vmul.f32 %v466, %v412
      %v747 = vmul.f32 %v467, %v412
      %v748 = vmul.f32 %v470, %v412
      %v749 = vmul.f32 %v471, %v412
      %v750 = vmul.f32 %v472, %v412
      %v751 = vmul.f32 %v473, %v412
      %v752 = vmul.f32 %v474, %v412
      %v753 = vmul.f32 %v475, %v412
      %v754 = vmul.f32 %v476, %v412
      %v755 = vmul.f32 %v477, %v412
      %v756 = vmul.f32 %v478, %v412
      %v757 = vmul.f32 %v479, %v412
      %v758 = vmul.f32 %v480, %v412
      %v759 = vmul.f32 %v481, %v412
      %v760 = vmul.f32 %v482, %v412
      %v761 = vmul.f32 %v483, %v412
      %v762 = vmul.f32 %v486, %v412
      %v763 = vmul.f32 %v487, %v412
      %v764 = vmul.f32 %v488, %v412
      %v765 = vmul.f32 %v489, %v412
      %v766 = vmul.f32 %v490, %v412
      %v767 = vmul.f32 %v491, %v412
      %v768 = vmul.f32 %v492, %v412
      %v769 = vmul.f32 %v493, %v412
      %v770 = vmul.f32 %v494, %v412
      %v771 = vmul.f32 %v495, %v412
      %v772 = vmul.f32 %v496, %v412
      %v773 = vmul.f32 %v497, %v412
      %v774 = vmul.f32 %v498, %v412
      %v775 = vmul.f32 %v499, %v412
      %v776 = vmul.f32 %v502, %v412
      %v777 = vmul.f32 %v503, %v412
      %v778 = vmul.f32 %v504, %v412
      %v779 = vmul.f32 %v505, %v412
      %v780 = vmul.f32 %v506, %v412
      %v781 = vmul.f32 %v507, %v412
      %v782 = vmul.f32 %v508, %v412
      %v783 = vmul.f32 %v509, %v412
      %v784 = vmul.f32 %v510, %v412
      %v785 = vmul.f32 %v511, %v412
      %v786 = vmul.f32 %v512, %v412
      %v787 = vmul.f32 %v513, %v412
      %v788 = vmul.f32 %v514, %v412
      %v789 = vmul.f32 %v515, %v412
      %v790 = vmul.f32 %v423, %v413
      %v791 = vmul.f32 %v424, %v413
      %v792 = vmul.f32 %v425, %v413
      %v793 = vmul.f32 %v426, %v413
      %v794 = vmul.f32 %v427, %v413
      %v795 = vmul.f32 %v428, %v413
      %v796 = vmul.f32 %v429, %v413
      %v797 = vmul.f32 %v430, %v413
      %v798 = vmul.f32 %v431, %v413
      %v799 = vmul.f32 %v432, %v413
      %v800 = vmul.f32 %v433, %v413
      %v801 = vmul.f32 %v434, %v413
      %v802 = vmul.f32 %v435, %v413
      %v803 = vmul.f32 %v436, %v413
      %v804 = vmul.f32 %v439, %v413
      %v805 = vmul.f32 %v440, %v413
      %v806 = vmul.f32 %v441, %v413
      %v807 = vmul.f32 %v442, %v413
      %v808 = vmul.f32 %v443, %v413
      %v809 = vmul.f32 %v444, %v413
      %v810 = vmul.f32 %v445, %v413
      %v811 = vmul.f32 %v446, %v413
      %v812 = vmul.f32 %v447, %v413
      %v813 = vmul.f32 %v448, %v413
      %v814 = vmul.f32 %v449, %v413
      %v815 = vmul.f32 %v450, %v413
      %v816 = vmul.f32 %v451, %v413
      %v817 = vmul.f32 %v452, %v413
      %v818 = vmul.f32 %v455, %v413
      %v819 = vmul.f32 %v456, %v413
      %v820 = vmul.f32 %v457, %v413
      %v821 = vmul.f32 %v458, %v413
      %v822 = vmul.f32 %v459, %v413
      %v823 = vmul.f32 %v460, %v413
      %v824 = vmul.f32 %v461, %v413
      %v825 = vmul.f32 %v462, %v413
      %v826 = vmul.f32 %v463, %v413
      %v827 = vmul.f32 %v464, %v413
      %v828 = vmul.f32 %v465, %v413
      %v829 = vmul.f32 %v466, %v413
      %v830 = vmul.f32 %v467, %v413
      %v831 = vmul.f32 %v468, %v413
      %v832 = vmul.f32 %v471, %v413
      %v833 = vmul.f32 %v472, %v413
      %v834 = vmul.f32 %v473, %v413
      %v835 = vmul.f32 %v474, %v413
      %v836 = vmul.f32 %v475, %v413
      %v837 = vmul.f32 %v476, %v413
      %v838 = vmul.f32 %v477, %v413
      %v839 = vmul.f32 %v478, %v413
      %v840 = vmul.f32 %v479, %v413
      %v841 = vmul.f32 %v480, %v413
      %v842 = vmul.f32 %v481, %v413
      %v843 = vmul.f32 %v482, %v413
      %v844 = vmul.f32 %v483, %v413
      %v845 = vmul.f32 %v484, %v413
      %v846 = vmul.f32 %v487, %v413
      %v847 = vmul.f32 %v488, %v413
      %v848 = vmul.f32 %v489, %v413
      %v849 = vmul.f32 %v490, %v413
      %v850 = vmul.f32 %v491, %v413
      %v851 = vmul.f32 %v492, %v413
      %v852 = vmul.f32 %v493, %v413
      %v853 = vmul.f32 %v494, %v413
      %v854 = vmul.f32 %v495, %v413
      %v855 = vmul.f32 %v496, %v413
      %v856 = vmul.f32 %v497, %v413
      %v857 = vmul.f32 %v498, %v413
      %v858 = vmul.f32 %v499, %v413
      %v859 = vmul.f32 %v500, %v413
      %v860 = vmul.f32 %v503, %v413
      %v861 = vmul.f32 %v504, %v413
      %v862 = vmul.f32 %v505, %v413
      %v863 = vmul.f32 %v506, %v413
      %v864 = vmul.f32 %v507, %v413
      %v865 = vmul.f32 %v508, %v413
      %v866 = vmul.f32 %v509, %v413
      %v867 = vmul.f32 %v510, %v413
      %v868 = vmul.f32 %v511, %v413
      %v869 = vmul.f32 %v512, %v413
      %v870 = vmul.f32 %v513, %v413
      %v871 = vmul.f32 %v514, %v413
      %v872 = vmul.f32 %v515, %v413
      %v873 = vmul.f32 %v516, %v413
      %v874 = vmul.f32 %v437, %v414
      %v875 = vmul.f32 %v438, %v414
      %v876 = vmul.f32 %v439, %v414
      %v877 = vmul.f32 %v440, %v414
      %v878 = vmul.f32 %v441, %v414
      %v879 = vmul.f32 %v442, %v414
      %v880 = vmul.f32 %v443, %v414
      %v881 = vmul.f32 %v444, %v414
      %v882 = vmul.f32 %v445, %v414
      %v883 = vmul.f32 %v446, %v414
      %v884 = vmul.f32 %v447, %v414
      %v885 = vmul.f32 %v448, %v414
      %v886 = vmul.f32 %v449, %v414
      %v887 = vmul.f32 %v450, %v414
      %v888 = vmul.f32 %v453, %v414
      %v889 = vmul.f32 %v454, %v414
      %v890 = vmul.f32 %v455, %v414
      %v891 = vmul.f32 %v456, %v414
      %v892 = vmul.f32 %v457, %v414
      %v893 = vmul.f32 %v458, %v414
      %v894 = vmul.f32 %v459, %v414
      %v895 = vmul.f32 %v460, %v414
      %v896 = vmul.f32 %v461, %v414
      %v897 = vmul.f32 %v462, %v414
      %v898 = vmul.f32 %v463, %v414
      %v899 = vmul.f32 %v464, %v414
      %v900 = vmul.f32 %v465, %v414
      %v901 = vmul.f32 %v466, %v414
      %v902 = vmul.f32 %v469, %v414
      %v903 = vmul.f32 %v470, %v414
      %v904 = vmul.f32 %v471, %v414
      %v905 = vmul.f32 %v472, %v414
      %v906 = vmul.f32 %v473, %v414
      %v907 = vmul.f32 %v474, %v414
      %v908 = vmul.f32 %v475, %v414
      %v909 = vmul.f32 %v476, %v414
      %v910 = vmul.f32 %v477, %v414
      %v911 = vmul.f32 %v478, %v414
      %v912 = vmul.f32 %v479, %v414
      %v913 = vmul.f32 %v480, %v414
      %v914 = vmul.f32 %v481, %v414
      %v915 = vmul.f32 %v482, %v414
      %v916 = vmul.f32 %v485, %v414
      %v917 = vmul.f32 %v486, %v414
      %v918 = vmul.f32 %v487, %v414
      %v919 = vmul.f32 %v488, %v414
      %v920 = vmul.f32 %v489, %v414
      %v921 = vmul.f32 %v490, %v414
      %v922 = vmul.f32 %v491, %v414
      %v923 = vmul.f32 %v492, %v414
      %v924 = vmul.f32 %v493, %v414
      %v925 = vmul.f32 %v494, %v414
      %v926 = vmul.f32 %v495, %v414
      %v927 = vmul.f32 %v496, %v414
      %v928 = vmul.f32 %v497, %v414
      %v929 = vmul.f32 %v498, %v414
      %v930 = vmul.f32 %v501, %v414
      %v931 = vmul.f32 %v502, %v414
      %v932 = vmul.f32 %v503, %v414
      %v933 = vmul.f32 %v504, %v414
      %v934 = vmul.f32 %v505, %v414
      %v935 = vmul.f32 %v506, %v414
      %v936 = vmul.f32 %v507, %v414
      %v937 = vmul.f32 %v508, %v414
      %v938 = vmul.f32 %v509, %v414
      %v939 = vmul.f32 %v510, %v414
      %v940 = vmul.f32 %v511, %v414
      %v941 = vmul.f32 %v512, %v414
      %v942 = vmul.f32 %v513, %v414
      %v943 = vmul.f32 %v514, %v414
      %v944 = vmul.f32 %v517, %v414
      %v945 = vmul.f32 %v518, %v414
      %v946 = vmul.f32 %v519, %v414
      %v947 = vmul.f32 %v520, %v414
      %v948 = vmul.f32 %v521, %v414
      %v949 = vmul.f32 %v522, %v414
      %v950 = vmul.f32 %v523, %v414
      %v951 = vmul.f32 %v524, %v414
      %v952 = vmul.f32 %v525, %v414
      %v953 = vmul.f32 %v526, %v414
      %v954 = vmul.f32 %v527, %v414
      %v955 = vmul.f32 %v528, %v414
      %v956 = vmul.f32 %v529, %v414
      %v957 = vmul.f32 %v530, %v414
      %v958 = vadd.f32 %v622, %v874
      %v959 = vadd.f32 %v623, %v875
      %v960 = vadd.f32 %v624, %v876
      %v961 = vadd.f32 %v625, %v877
      %v962 = vadd.f32 %v626, %v878
      %v963 = vadd.f32 %v627, %v879
      %v964 = vadd.f32 %v628, %v880
      %v965 = vadd.f32 %v629, %v881
      %v966 = vadd.f32 %v630, %v882
      %v967 = vadd.f32 %v631, %v883
      %v968 = vadd.f32 %v632, %v884
      %v969 = vadd.f32 %v633, %v885
      %v970 = vadd.f32 %v634, %v886
      %v971 = vadd.f32 %v635, %v887
      %v972 = vadd.f32 %v636, %v888
      %v973 = vadd.f32 %v637, %v889
      %v974 = vadd.f32 %v638, %v890
      %v975 = vadd.f32 %v639, %v891
      %v976 = vadd.f32 %v640, %v892
      %v977 = vadd.f32 %v641, %v893
      %v978 = vadd.f32 %v642, %v894
      %v979 = vadd.f32 %v643, %v895
      %v980 = vadd.f32 %v644, %v896
      %v981 = vadd.f32 %v645, %v897
      %v982 = vadd.f32 %v646, %v898
      %v983 = vadd.f32 %v647, %v899
      %v984 = vadd.f32 %v648, %v900
      %v985 = vadd.f32 %v649, %v901
      %v986 = vadd.f32 %v650, %v902
      %v987 = vadd.f32 %v651, %v903
      %v988 = vadd.f32 %v652, %v904
      %v989 = vadd.f32 %v653, %v905
      %v990 = vadd.f32 %v654, %v906
      %v991 = vadd.f32 %v655, %v907
      %v992 = vadd.f32 %v656, %v908
      %v993 = vadd.f32 %v657, %v909
      %v994 = vadd.f32 %v658, %v910
      %v995 = vadd.f32 %v659, %v911
      %v996 = vadd.f32 %v660, %v912
      %v997 = vadd.f32 %v661, %v913
      %v998 = vadd.f32 %v662, %v914
      %v999 = vadd.f32 %v663, %v915
      %v1000 = vadd.f32 %v664, %v916
      %v1001 = vadd.f32 %v665, %v917
      %v1002 = vadd.f32 %v666, %v918
      %v1003 = vadd.f32 %v667, %v919
      %v1004 = vadd.f32 %v668, %v920
      %v1005 = vadd.f32 %v669, %v921
      %v1006 = vadd.f32 %v670, %v922
      %v1007 = vadd.f32 %v671, %v923
      %v1008 = vadd.f32 %v672, %v924
      %v1009 = vadd.f32 %v673, %v925
      %v1010 = vadd.f32 %v674, %v926
      %v1011 = vadd.f32 %v675, %v927
      %v1012 = vadd.f32 %v676, %v928
      %v1013 = vadd.f32 %v677, %v929
      %v1014 = vadd.f32 %v678, %v930
      %v1015 = vadd.f32 %v679, %v931
      %v1016 = vadd.f32 %v680, %v932
      %v1017 = vadd.f32 %v681, %v933
      %v1018 = vadd.f32 %v682, %v934
      %v1019 = vadd.f32 %v683, %v935
      %v1020 = vadd.f32 %v684, %v936
      %v1021 = vadd.f32 %v685, %v937
      %v1022 = vadd.f32 %v686, %v938
      %v1023 = vadd.f32 %v687, %v939
      %v1024 = vadd.f32 %v688, %v940
      %v1025 = vadd.f32 %v689, %v941
      %v1026 = vadd.f32 %v690, %v942
      %v1027 = vadd.f32 %v691, %v943
      %v1028 = vadd.f32 %v692, %v944
      %v1029 = vadd.f32 %v693, %v945
      %v1030 = vadd.f32 %v694, %v946
      %v1031 = vadd.f32 %v695, %v947
      %v1032 = vadd.f32 %v696, %v948
      %v1033 = vadd.f32 %v697, %v949
      %v1034 = vadd.f32 %v698, %v950
      %v1035 = vadd.f32 %v699, %v951
      %v1036 = vadd.f32 %v700, %v952
      %v1037 = vadd.f32 %v701, %v953
      %v1038 = vadd.f32 %v702, %v954
      %v1039 = vadd.f32 %v703, %v955
      %v1040 = vadd.f32 %v704, %v956
      %v1041 = vadd.f32 %v705, %v957
      %v1042 = vmul.f32 %v438, %v415
      %v1043 = vmul.f32 %v439, %v415
      %v1044 = vmul.f32 %v440, %v415
      %v1045 = vmul.f32 %v441, %v415
      %v1046 = vmul.f32 %v442, %v415
      %v1047 = vmul.f32 %v443, %v415
      %v1048 = vmul.f32 %v444, %v415
      %v1049 = vmul.f32 %v445, %v415
      %v1050 = vmul.f32 %v446, %v415
      %v1051 = vmul.f32 %v447, %v415
      %v1052 = vmul.f32 %v448, %v415
      %v1053 = vmul.f32 %v449, %v415
      %v1054 = vmul.f32 %v450, %v415
      %v1055 = vmul.f32 %v451, %v415
      %v1056 = vmul.f32 %v454, %v415
      %v1057 = vmul.f32 %v455, %v415
      %v1058 = vmul.f32 %v456, %v415
      %v1059 = vmul.f32 %v457, %v415
      %v1060 = vmul.f32 %v458, %v415
      %v1061 = vmul.f32 %v459, %v415
      %v1062 = vmul.f32 %v460, %v415
      %v1063 = vmul.f32 %v461, %v415
      %v1064 = vmul.f32 %v462, %v415
      %v1065 = vmul.f32 %v463, %v415
      %v1066 = vmul.f32 %v464, %v415
      %v1067 = vmul.f32 %v465, %v415
      %v1068 = vmul.f32 %v466, %v415
      %v1069 = vmul.f32 %v467, %v415
      %v1070 = vmul.f32 %v470, %v415
      %v1071 = vmul.f32 %v471, %v415
      %v1072 = vmul.f32 %v472, %v415
      %v1073 = vmul.f32 %v473, %v415
      %v1074 = vmul.f32 %v474, %v415
      %v1075 = vmul.f32 %v475, %v415
      %v1076 = vmul.f32 %v476, %v415
      %v1077 = vmul.f32 %v477, %v415
      %v1078 = vmul.f32 %v478, %v415
      %v1079 = vmul.f32 %v479, %v415
      %v1080 = vmul.f32 %v480, %v415
      %v1081 = vmul.f32 %v481, %v415
      %v1082 = vmul.f32 %v482, %v415
      %v1083 = vmul.f32 %v483, %v415
      %v1084 = vmul.f32 %v486, %v415
      %v1085 = vmul.f32 %v487, %v415
      %v1086 = vmul.f32 %v488, %v415
      %v1087 = vmul.f32 %v489, %v415
      %v1088 = vmul.f32 %v490, %v415
      %v1089 = vmul.f32 %v491, %v415
      %v1090 = vmul.f32 %v492, %v415
      %v1091 = vmul.f32 %v493, %v415
      %v1092 = vmul.f32 %v494, %v415
      %v1093 = vmul.f32 %v495, %v415
      %v1094 = vmul.f32 %v496, %v415
      %v1095 = vmul.f32 %v497, %v415
      %v1096 = vmul.f32 %v498, %v415
      %v1097 = vmul.f32 %v499, %v415
      %v1098 = vmul.f32 %v502, %v415
      %v1099 = vmul.f32 %v503, %v415
      %v1100 = vmul.f32 %v504, %v415
      %v1101 = vmul.f32 %v505, %v415
      %v1102 = vmul.f32 %v506, %v415
      %v1103 = vmul.f32 %v507, %v415
      %v1104 = vmul.f32 %v508, %v415
      %v1105 = vmul.f32 %v509, %v415
      %v1106 = vmul.f32 %v510, %v415
      %v1107 = vmul.f32 %v511, %v415
      %v1108 = vmul.f32 %v512, %v415
      %v1109 = vmul.f32 %v513, %v415
      %v1110 = vmul.f32 %v514, %v415
      %v1111 = vmul.f32 %v515, %v415
      %v1112 = vmul.f32 %v518, %v415
      %v1113 = vmul.f32 %v519, %v415
      %v1114 = vmul.f32 %v520, %v415
      %v1115 = vmul.f32 %v521, %v415
      %v1116 = vmul.f32 %v522, %v415
      %v1117 = vmul.f32 %v523, %v415
      %v1118 = vmul.f32 %v524, %v415
      %v1119 = vmul.f32 %v525, %v415
      %v1120 = vmul.f32 %v526, %v415
      %v1121 = vmul.f32 %v527, %v415
      %v1122 = vmul.f32 %v528, %v415
      %v1123 = vmul.f32 %v529, %v415
      %v1124 = vmul.f32 %v530, %v415
      %v1125 = vmul.f32 %v531, %v415
      %v1126 = vadd.f32 %v706, %v1042
      %v1127 = vadd.f32 %v707, %v1043
      %v1128 = vadd.f32 %v708, %v1044
      %v1129 = vadd.f32 %v709, %v1045
      %v1130 = vadd.f32 %v710, %v1046
      %v1131 = vadd.f32 %v711, %v1047
      %v1132 = vadd.f32 %v712, %v1048
      %v1133 = vadd.f32 %v713, %v1049
      %v1134 = vadd.f32 %v714, %v1050
      %v1135 = vadd.f32 %v715, %v1051
      %v1136 = vadd.f32 %v716, %v1052
      %v1137 = vadd.f32 %v717, %v1053
      %v1138 = vadd.f32 %v718, %v1054
      %v1139 = vadd.f32 %v719, %v1055
      %v1140 = vadd.f32 %v720, %v1056
      %v1141 = vadd.f32 %v721, %v1057
      %v1142 = vadd.f32 %v722, %v1058
      %v1143 = vadd.f32 %v723, %v1059
      %v1144 = vadd.f32 %v724, %v1060
      %v1145 = vadd.f32 %v725, %v1061
      %v1146 = vadd.f32 %v726, %v1062
      %v1147 = vadd.f32 %v727, %v1063
      %v1148 = vadd.f32 %v728, %v1064
      %v1149 = vadd.f32 %v729, %v1065
      %v1150 = vadd.f32 %v730, %v1066
      %v1151 = vadd.f32 %v731, %v1067
      %v1152 = vadd.f32 %v732, %v1068
      %v1153 = vadd.f32 %v733, %v1069
      %v1154 = vadd.f32 %v734, %v1070
      %v1155 = vadd.f32 %v735, %v1071
      %v1156 = vadd.f32 %v736, %v1072
      %v1157 = vadd.f32 %v737, %v1073
      %v1158 = vadd.f32 %v738, %v1074
      %v1159 = vadd.f32 %v739, %v1075
      %v1160 = vadd.f32 %v740, %v1076
      %v1161 = vadd.f32 %v741, %v1077
      %v1162 = vadd.f32 %v742, %v1078
      %v1163 = vadd.f32 %v743, %v1079
      %v1164 = vadd.f32 %v744, %v1080
      %v1165 = vadd.f32 %v745, %v1081
      %v1166 = vadd.f32 %v746, %v1082
      %v1167 = vadd.f32 %v747, %v1083
      %v1168 = vadd.f32 %v748, %v1084
      %v1169 = vadd.f32 %v749, %v1085
      %v1170 = vadd.f32 %v750, %v1086
      %v1171 = vadd.f32 %v751, %v1087
      %v1172 = vadd.f32 %v752, %v1088
      %v1173 = vadd.f32 %v753, %v1089
      %v1174 = vadd.f32 %v754, %v1090
      %v1175 = vadd.f32 %v755, %v1091
      %v1176 = vadd.f32 %v756, %v1092
      %v1177 = vadd.f32 %v757, %v1093
      %v1178 = vadd.f32 %v758, %v1094
      %v1179 = vadd.f32 %v759, %v1095
      %v1180 = vadd.f32 %v760, %v1096
      %v1181 = vadd.f32 %v761, %v1097
      %v1182 = vadd.f32 %v762, %v1098
      %v1183 = vadd.f32 %v763, %v1099
      %v1184 = vadd.f32 %v764, %v1100
      %v1185 = vadd.f32 %v765, %v1101
      %v1186 = vadd.f32 %v766, %v1102
      %v1187 = vadd.f32 %v767, %v1103
      %v1188 = vadd.f32 %v768, %v1104
      %v1189 = vadd.f32 %v769, %v1105
      %v1190 = vadd.f32 %v770, %v1106
      %v1191 = vadd.f32 %v771, %v1107
      %v1192 = vadd.f32 %v772, %v1108
      %v1193 = vadd.f32 %v773, %v1109
      %v1194 = vadd.f32 %v774, %v1110
      %v1195 = vadd.f32 %v775, %v1111
      %v1196 = vadd.f32 %v776, %v1112
      %v1197 = vadd.f32 %v777, %v1113
      %v1198 = vadd.f32 %v778, %v1114
      %v1199 = vadd.f32 %v779, %v1115
      %v1200 = vadd.f32 %v780, %v1116
      %v1201 = vadd.f32 %v781, %v1117
      %v1202 = vadd.f32 %v782, %v1118
      %v1203 = vadd.f32 %v783, %v1119
      %v1204 = vadd.f32 %v784, %v1120
      %v1205 = vadd.f32 %v785, %v1121
      %v1206 = vadd.f32 %v786, %v1122
      %v1207 = vadd.f32 %v787, %v1123
      %v1208 = vadd.f32 %v788, %v1124
      %v1209 = vadd.f32 %v789, %v1125
      %v1210 = vmul.f32 %v439, %v416
      %v1211 = vmul.f32 %v440, %v416
      %v1212 = vmul.f32 %v441, %v416
      %v1213 = vmul.f32 %v442, %v416
      %v1214 = vmul.f32 %v443, %v416
      %v1215 = vmul.f32 %v444, %v416
      %v1216 = vmul.f32 %v445, %v416
      %v1217 = vmul.f32 %v446, %v416
      %v1218 = vmul.f32 %v447, %v416
      %v1219 = vmul.f32 %v448, %v416
      %v1220 = vmul.f32 %v449, %v416
      %v1221 = vmul.f32 %v450, %v416
      %v1222 = vmul.f32 %v451, %v416
      %v1223 = vmul.f32 %v452, %v416
      %v1224 = vmul.f32 %v455, %v416
      %v1225 = vmul.f32 %v456, %v416
      %v1226 = vmul.f32 %v457, %v416
      %v1227 = vmul.f32 %v458, %v416
      %v1228 = vmul.f32 %v459, %v416
      %v1229 = vmul.f32 %v460, %v416
      %v1230 = vmul.f32 %v461, %v416
      %v1231 = vmul.f32 %v462, %v416
      %v1232 = vmul.f32 %v463, %v416
      %v1233 = vmul.f32 %v464, %v416
      %v1234 = vmul.f32 %v465, %v416
      %v1235 = vmul.f32 %v466, %v416
      %v1236 = vmul.f32 %v467, %v416
      %v1237 = vmul.f32 %v468, %v416
      %v1238 = vmul.f32 %v471, %v416
      %v1239 = vmul.f32 %v472, %v416
      %v1240 = vmul.f32 %v473, %v416
      %v1241 = vmul.f32 %v474, %v416
      %v1242 = vmul.f32 %v475, %v416
      %v1243 = vmul.f32 %v476, %v416
      %v1244 = vmul.f32 %v477, %v416
      %v1245 = vmul.f32 %v478, %v416
      %v1246 = vmul.f32 %v479, %v416
      %v1247 = vmul.f32 %v480, %v416
      %v1248 = vmul.f32 %v481, %v416
      %v1249 = vmul.f32 %v482, %v416
      %v1250 = vmul.f32 %v483, %v416
      %v1251 = vmul.f32 %v484, %v416
      %v1252 = vmul.f32 %v487, %v416
      %v1253 = vmul.f32 %v488, %v416
      %v1254 = vmul.f32 %v489, %v416
      %v1255 = vmul.f32 %v490, %v416
      %v1256 = vmul.f32 %v491, %v416
      %v1257 = vmul.f32 %v492, %v416
      %v1258 = vmul.f32 %v493, %v416
      %v1259 = vmul.f32 %v494, %v416
      %v1260 = vmul.f32 %v495, %v416
      %v1261 = vmul.f32 %v496, %v416
      %v1262 = vmul.f32 %v497, %v416
      %v1263 = vmul.f32 %v498, %v416
      %v1264 = vmul.f32 %v499, %v416
      %v1265 = vmul.f32 %v500, %v416
      %v1266 = vmul.f32 %v503, %v416
      %v1267 = vmul.f32 %v504, %v416
      %v1268 = vmul.f32 %v505, %v416
      %v1269 = vmul.f32 %v506, %v416
      %v1270 = vmul.f32 %v507, %v416
      %v1271 = vmul.f32 %v508, %v416
      %v1272 = vmul.f32 %v509, %v416
      %v1273 = vmul.f32 %v510, %v416
      %v1274 = vmul.f32 %v511, %v416
      %v1275 = vmul.f32 %v512, %v416
      %v1276 = vmul.f32 %v513, %v416
      %v1277 = vmul.f32 %v514, %v416
      %v1278 = vmul.f32 %v515, %v416
      %v1279 = vmul.f32 %v516, %v416
      %v1280 = vmul.f32 %v519, %v416
      %v1281 = vmul.f32 %v520, %v416
      %v1282 = vmul.f32 %v521, %v416
      %v1283 = vmul.f32 %v522, %v416
      %v1284 = vmul.f32 %v523, %v416
      %v1285 = vmul.f32 %v524, %v416
      %v1286 = vmul.f32 %v525, %v416
      %v1287 = vmul.f32 %v526, %v416
      %v1288 = vmul.f32 %v527, %v416
      %v1289 = vmul.f32 %v528, %v416
      %v1290 = vmul.f32 %v529, %v416
      %v1291 = vmul.f32 %v530, %v416
      %v1292 = vmul.f32 %v531, %v416
      %v1293 = vmul.f32 %v532, %v416
      %v1294 = vadd.f32 %v790, %v1210
      %v1295 = vadd.f32 %v791, %v1211
      %v1296 = vadd.f32 %v792, %v1212
      %v1297 = vadd.f32 %v793, %v1213
      %v1298 = vadd.f32 %v794, %v1214
      %v1299 = vadd.f32 %v795, %v1215
      %v1300 = vadd.f32 %v796, %v1216
      %v1301 = vadd.f32 %v797, %v1217
      %v1302 = vadd.f32 %v798, %v1218
      %v1303 = vadd.f32 %v799, %v1219
      %v1304 = vadd.f32 %v800, %v1220
      %v1305 = vadd.f32 %v801, %v1221
      %v1306 = vadd.f32 %v802, %v1222
      %v1307 = vadd.f32 %v803, %v1223
      %v1308 = vadd.f32 %v804, %v1224
      %v1309 = vadd.f32 %v805, %v1225
      %v1310 = vadd.f32 %v806, %v1226
      %v1311 = vadd.f32 %v807, %v1227
      %v1312 = vadd.f32 %v808, %v1228
      %v1313 = vadd.f32 %v809, %v1229
      %v1314 = vadd.f32 %v810, %v1230
      %v1315 = vadd.f32 %v811, %v1231
      %v1316 = vadd.f32 %v812, %v1232
      %v1317 = vadd.f32 %v813, %v1233
      %v1318 = vadd.f32 %v814, %v1234
      %v1319 = vadd.f32 %v815, %v1235
      %v1320 = vadd.f32 %v816, %v1236
      %v1321 = vadd.f32 %v817, %v1237
      %v1322 = vadd.f32 %v818, %v1238
      %v1323 = vadd.f32 %v819, %v1239
      %v1324 = vadd.f32 %v820, %v1240
      %v1325 = vadd.f32 %v821, %v1241
      %v1326 = vadd.f32 %v822, %v1242
      %v1327 = vadd.f32 %v823, %v1243
      %v1328 = vadd.f32 %v824, %v1244
      %v1329 = vadd.f32 %v825, %v1245
      %v1330 = vadd.f32 %v826, %v1246
      %v1331 = vadd.f32 %v827, %v1247
      %v1332 = vadd.f32 %v828, %v1248
      %v1333 = vadd.f32 %v829, %v1249
      %v1334 = vadd.f32 %v830, %v1250
      %v1335 = vadd.f32 %v831, %v1251
      %v1336 = vadd.f32 %v832, %v1252
      %v1337 = vadd.f32 %v833, %v1253
      %v1338 = vadd.f32 %v834, %v1254
      %v1339 = vadd.f32 %v835, %v1255
      %v1340 = vadd.f32 %v836, %v1256
      %v1341 = vadd.f32 %v837, %v1257
      %v1342 = vadd.f32 %v838, %v1258
      %v1343 = vadd.f32 %v839, %v1259
      %v1344 = vadd.f32 %v840, %v1260
      %v1345 = vadd.f32 %v841, %v1261
      %v1346 = vadd.f32 %v842, %v1262
      %v1347 = vadd.f32 %v843, %v1263
      %v1348 = vadd.f32 %v844, %v1264
      %v1349 = vadd.f32 %v845, %v1265
      %v1350 = vadd.f32 %v846, %v1266
      %v1351 = vadd.f32 %v847, %v1267
      %v1352 = vadd.f32 %v848, %v1268
      %v1353 = vadd.f32 %v849, %v1269
      %v1354 = vadd.f32 %v850, %v1270
      %v1355 = vadd.f32 %v851, %v1271
      %v1356 = vadd.f32 %v852, %v1272
      %v1357 = vadd.f32 %v853, %v1273
      %v1358 = vadd.f32 %v854, %v1274
      %v1359 = vadd.f32 %v855, %v1275
      %v1360 = vadd.f32 %v856, %v1276
      %v1361 = vadd.f32 %v857, %v1277
      %v1362 = vadd.f32 %v858, %v1278
      %v1363 = vadd.f32 %v859, %v1279
      %v1364 = vadd.f32 %v860, %v1280
      %v1365 = vadd.f32 %v861, %v1281
      %v1366 = vadd.f32 %v862, %v1282
      %v1367 = vadd.f32 %v863, %v1283
      %v1368 = vadd.f32 %v864, %v1284
      %v1369 = vadd.f32 %v865, %v1285
      %v1370 = vadd.f32 %v866, %v1286
      %v1371 = vadd.f32 %v867, %v1287
      %v1372 = vadd.f32 %v868, %v1288
      %v1373 = vadd.f32 %v869, %v1289
      %v1374 = vadd.f32 %v870, %v1290
      %v1375 = vadd.f32 %v871, %v1291
      %v1376 = vadd.f32 %v872, %v1292
      %v1377 = vadd.f32 %v873, %v1293
      %v1378 = vmul.f32 %v453, %v417
      %v1379 = vmul.f32 %v454, %v417
      %v1380 = vmul.f32 %v455, %v417
      %v1381 = vmul.f32 %v456, %v417
      %v1382 = vmul.f32 %v457, %v417
      %v1383 = vmul.f32 %v458, %v417
      %v1384 = vmul.f32 %v459, %v417
      %v1385 = vmul.f32 %v460, %v417
      %v1386 = vmul.f32 %v461, %v417
      %v1387 = vmul.f32 %v462, %v417
      %v1388 = vmul.f32 %v463, %v417
      %v1389 = vmul.f32 %v464, %v417
      %v1390 = vmul.f32 %v465, %v417
      %v1391 = vmul.f32 %v466, %v417
      %v1392 = vmul.f32 %v469, %v417
      %v1393 = vmul.f32 %v470, %v417
      %v1394 = vmul.f32 %v471, %v417
      %v1395 = vmul.f32 %v472, %v417
      %v1396 = vmul.f32 %v473, %v417
      %v1397 = vmul.f32 %v474, %v417
      %v1398 = vmul.f32 %v475, %v417
      %v1399 = vmul.f32 %v476, %v417
      %v1400 = vmul.f32 %v477, %v417
      %v1401 = vmul.f32 %v478, %v417
      %v1402 = vmul.f32 %v479, %v417
      %v1403 = vmul.f32 %v480, %v417
      %v1404 = vmul.f32 %v481, %v417
      %v1405 = vmul.f32 %v482, %v417
      %v1406 = vmul.f32 %v485, %v417
      %v1407 = vmul.f32 %v486, %v417
      %v1408 = vmul.f32 %v487, %v417
      %v1409 = vmul.f32 %v488, %v417
      %v1410 = vmul.f32 %v489, %v417
      %v1411 = vmul.f32 %v490, %v417
      %v1412 = vmul.f32 %v491, %v417
      %v1413 = vmul.f32 %v492, %v417
      %v1414 = vmul.f32 %v493, %v417
      %v1415 = vmul.f32 %v494, %v417
      %v1416 = vmul.f32 %v495, %v417
      %v1417 = vmul.f32 %v496, %v417
      %v1418 = vmul.f32 %v497, %v417
      %v1419 = vmul.f32 %v498, %v417
      %v1420 = vmul.f32 %v501, %v417
      %v1421 = vmul.f32 %v502, %v417
      %v1422 = vmul.f32 %v503, %v417
      %v1423 = vmul.f32 %v504, %v417
      %v1424 = vmul.f32 %v505, %v417
      %v1425 = vmul.f32 %v506, %v417
      %v1426 = vmul.f32 %v507, %v417
      %v1427 = vmul.f32 %v508, %v417
      %v1428 = vmul.f32 %v509, %v417
      %v1429 = vmul.f32 %v510, %v417
      %v1430 = vmul.f32 %v511, %v417
      %v1431 = vmul.f32 %v512, %v417
      %v1432 = vmul.f32 %v513, %v417
      %v1433 = vmul.f32 %v514, %v417
      %v1434 = vmul.f32 %v517, %v417
      %v1435 = vmul.f32 %v518, %v417
      %v1436 = vmul.f32 %v519, %v417
      %v1437 = vmul.f32 %v520, %v417
      %v1438 = vmul.f32 %v521, %v417
      %v1439 = vmul.f32 %v522, %v417
      %v1440 = vmul.f32 %v523, %v417
      %v1441 = vmul.f32 %v524, %v417
      %v1442 = vmul.f32 %v525, %v417
      %v1443 = vmul.f32 %v526, %v417
      %v1444 = vmul.f32 %v527, %v417
      %v1445 = vmul.f32 %v528, %v417
      %v1446 = vmul.f32 %v529, %v417
      %v1447 = vmul.f32 %v530, %v417
      %v1448 = vmul.f32 %v533, %v417
      %v1449 = vmul.f32 %v534, %v417
      %v1450 = vmul.f32 %v535, %v417
      %v1451 = vmul.f32 %v536, %v417
      %v1452 = vmul.f32 %v537, %v417
      %v1453 = vmul.f32 %v538, %v417
      %v1454 = vmul.f32 %v539, %v417
      %v1455 = vmul.f32 %v540, %v417
      %v1456 = vmul.f32 %v541, %v417
      %v1457 = vmul.f32 %v542, %v417
      %v1458 = vmul.f32 %v543, %v417
      %v1459 = vmul.f32 %v544, %v417
      %v1460 = vmul.f32 %v545, %v417
      %v1461 = vmul.f32 %v546, %v417
      %v1462 = vadd.f32 %v958, %v1378
      %v1463 = vadd.f32 %v959, %v1379
      %v1464 = vadd.f32 %v960, %v1380
      %v1465 = vadd.f32 %v961, %v1381
      %v1466 = vadd.f32 %v962, %v1382
      %v1467 = vadd.f32 %v963, %v1383
      %v1468 = vadd.f32 %v964, %v1384
      %v1469 = vadd.f32 %v965, %v1385
      %v1470 = vadd.f32 %v966, %v1386
      %v1471 = vadd.f32 %v967, %v1387
      %v1472 = vadd.f32 %v968, %v1388
      %v1473 = vadd.f32 %v969, %v1389
      %v1474 = vadd.f32 %v970, %v1390
      %v1475 = vadd.f32 %v971, %v1391
      %v1476 = vadd.f32 %v972, %v1392
      %v1477 = vadd.f32 %v973, %v1393
      %v1478 = vadd.f32 %v974, %v1394
      %v1479 = vadd.f32 %v975, %v1395
      %v1480 = vadd.f32 %v976, %v1396
      %v1481 = vadd.f32 %v977, %v1397
      %v1482 = vadd.f32 %v978, %v1398
      %v1483 = vadd.f32 %v979, %v1399
      %v1484 = vadd.f32 %v980, %v1400
      %v1485 = vadd.f32 %v981, %v1401
      %v1486 = vadd.f32 %v982, %v1402
      %v1487 = vadd.f32 %v983, %v1403
      %v1488 = vadd.f32 %v984, %v1404
      %v1489 = vadd.f32 %v985, %v1405
      %v1490 = vadd.f32 %v986, %v1406
      %v1491 = vadd.f32 %v987, %v1407
      %v1492 = vadd.f32 %v988, %v1408
      %v1493 = vadd.f32 %v989, %v1409
      %v1494 = vadd.f32 %v990, %v1410
      %v1495 = vadd.f32 %v991, %v1411
      %v1496 = vadd.f32 %v992, %v1412
      %v1497 = vadd.f32 %v993, %v1413
      %v1498 = vadd.f32 %v994, %v1414
      %v1499 = vadd.f32 %v995, %v1415
      %v1500 = vadd.f32 %v996, %v1416
      %v1501 = vadd.f32 %v997, %v1417
      %v1502 = vadd.f32 %v998, %v1418
      %v1503 = vadd.f32 %v999, %v1419
      %v1504 = vadd.f32 %v1000, %v1420
      %v1505 = vadd.f32 %v1001, %v1421
      %v1506 = vadd.f32 %v1002, %v1422
      %v1507 = vadd.f32 %v1003, %v1423
      %v1508 = vadd.f32 %v1004, %v1424
      %v1509 = vadd.f32 %v1005, %v1425
      %v1510 = vadd.f32 %v1006, %v1426
      %v1511 = vadd.f32 %v1007, %v1427
      %v1512 = vadd.f32 %v1008, %v1428
      %v1513 = vadd.f32 %v1009, %v1429
      %v1514 = vadd.f32 %v1010, %v1430
      %v1515 = vadd.f32 %v1011, %v1431
      %v1516 = vadd.f32 %v1012, %v1432
      %v1517 = vadd.f32 %v1013, %v1433
      %v1518 = vadd.f32 %v1014, %v1434
      %v1519 = vadd.f32 %v1015, %v1435
      %v1520 = vadd.f32 %v1016, %v1436
      %v1521 = vadd.f32 %v1017, %v1437
      %v1522 = vadd.f32 %v1018, %v1438
      %v1523 = vadd.f32 %v1019, %v1439
      %v1524 = vadd.f32 %v1020, %v1440
      %v1525 = vadd.f32 %v1021, %v1441
      %v1526 = vadd.f32 %v1022, %v1442
      %v1527 = vadd.f32 %v1023, %v1443
      %v1528 = vadd.f32 %v1024, %v1444
      %v1529 = vadd.f32 %v1025, %v1445
      %v1530 = vadd.f32 %v1026, %v1446
      %v1531 = vadd.f32 %v1027, %v1447
      %v1532 = vadd.f32 %v1028, %v1448
      %v1533 = vadd.f32 %v1029, %v1449
      %v1534 = vadd.f32 %v1030, %v1450
      %v1535 = vadd.f32 %v1031, %v1451
      %v1536 = vadd.f32 %v1032, %v1452
      %v1537 = vadd.f32 %v1033, %v1453
      %v1538 = vadd.f32 %v1034, %v1454
      %v1539 = vadd.f32 %v1035, %v1455
      %v1540 = vadd.f32 %v1036, %v1456
      %v1541 = vadd.f32 %v1037, %v1457
      %v1542 = vadd.f32 %v1038, %v1458
      %v1543 = vadd.f32 %v1039, %v1459
      %v1544 = vadd.f32 %v1040, %v1460
      %v1545 = vadd.f32 %v1041, %v1461
      %v1546 = vmul.f32 %v454, %v418
      %v1547 = vmul.f32 %v455, %v418
      %v1548 = vmul.f32 %v456, %v418
      %v1549 = vmul.f32 %v457, %v418
      %v1550 = vmul.f32 %v458, %v418
      %v1551 = vmul.f32 %v459, %v418
      %v1552 = vmul.f32 %v460, %v418
      %v1553 = vmul.f32 %v461, %v418
      %v1554 = vmul.f32 %v462, %v418
      %v1555 = vmul.f32 %v463, %v418
      %v1556 = vmul.f32 %v464, %v418
      %v1557 = vmul.f32 %v465, %v418
      %v1558 = vmul.f32 %v466, %v418
      %v1559 = vmul.f32 %v467, %v418
      %v1560 = vmul.f32 %v470, %v418
      %v1561 = vmul.f32 %v471, %v418
      %v1562 = vmul.f32 %v472, %v418
      %v1563 = vmul.f32 %v473, %v418
      %v1564 = vmul.f32 %v474, %v418
      %v1565 = vmul.f32 %v475, %v418
      %v1566 = vmul.f32 %v476, %v418
      %v1567 = vmul.f32 %v477, %v418
      %v1568 = vmul.f32 %v478, %v418
      %v1569 = vmul.f32 %v479, %v418
      %v1570 = vmul.f32 %v480, %v418
      %v1571 = vmul.f32 %v481, %v418
      %v1572 = vmul.f32 %v482, %v418
      %v1573 = vmul.f32 %v483, %v418
      %v1574 = vmul.f32 %v486, %v418
      %v1575 = vmul.f32 %v487, %v418
      %v1576 = vmul.f32 %v488, %v418
      %v1577 = vmul.f32 %v489, %v418
      %v1578 = vmul.f32 %v490, %v418
      %v1579 = vmul.f32 %v491, %v418
      %v1580 = vmul.f32 %v492, %v418
      %v1581 = vmul.f32 %v493, %v418
      %v1582 = vmul.f32 %v494, %v418
      %v1583 = vmul.f32 %v495, %v418
      %v1584 = vmul.f32 %v496, %v418
      %v1585 = vmul.f32 %v497, %v418
      %v1586 = vmul.f32 %v498, %v418
      %v1587 = vmul.f32 %v499, %v418
      %v1588 = vmul.f32 %v502, %v418
      %v1589 = vmul.f32 %v503, %v418
      %v1590 = vmul.f32 %v504, %v418
      %v1591 = vmul.f32 %v505, %v418
      %v1592 = vmul.f32 %v506, %v418
      %v1593 = vmul.f32 %v507, %v418
      %v1594 = vmul.f32 %v508, %v418
      %v1595 = vmul.f32 %v509, %v418
      %v1596 = vmul.f32 %v510, %v418
      %v1597 = vmul.f32 %v511, %v418
      %v1598 = vmul.f32 %v512, %v418
      %v1599 = vmul.f32 %v513, %v418
      %v1600 = vmul.f32 %v514, %v418
      %v1601 = vmul.f32 %v515, %v418
      %v1602 = vmul.f32 %v518, %v418
      %v1603 = vmul.f32 %v519, %v418
      %v1604 = vmul.f32 %v520, %v418
      %v1605 = vmul.f32 %v521, %v418
      %v1606 = vmul.f32 %v522, %v418
      %v1607 = vmul.f32 %v523, %v418
      %v1608 = vmul.f32 %v524, %v418
      %v1609 = vmul.f32 %v525, %v418
      %v1610 = vmul.f32 %v526, %v418
      %v1611 = vmul.f32 %v527, %v418
      %v1612 = vmul.f32 %v528, %v418
      %v1613 = vmul.f32 %v529, %v418
      %v1614 = vmul.f32 %v530, %v418
      %v1615 = vmul.f32 %v531, %v418
      %v1616 = vmul.f32 %v534, %v418
      %v1617 = vmul.f32 %v535, %v418
      %v1618 = vmul.f32 %v536, %v418
      %v1619 = vmul.f32 %v537, %v418
      %v1620 = vmul.f32 %v538, %v418
      %v1621 = vmul.f32 %v539, %v418
      %v1622 = vmul.f32 %v540, %v418
      %v1623 = vmul.f32 %v541, %v418
      %v1624 = vmul.f32 %v542, %v418
      %v1625 = vmul.f32 %v543, %v418
      %v1626 = vmul.f32 %v544, %v418
      %v1627 = vmul.f32 %v545, %v418
      %v1628 = vmul.f32 %v546, %v418
      %v1629 = vmul.f32 %v547, %v418
      %v1630 = vadd.f32 %v1126, %v1546
      %v1631 = vadd.f32 %v1127, %v1547
      %v1632 = vadd.f32 %v1128, %v1548
      %v1633 = vadd.f32 %v1129, %v1549
      %v1634 = vadd.f32 %v1130, %v1550
      %v1635 = vadd.f32 %v1131, %v1551
      %v1636 = vadd.f32 %v1132, %v1552
      %v1637 = vadd.f32 %v1133, %v1553
      %v1638 = vadd.f32 %v1134, %v1554
      %v1639 = vadd.f32 %v1135, %v1555
      %v1640 = vadd.f32 %v1136, %v1556
      %v1641 = vadd.f32 %v1137, %v1557
      %v1642 = vadd.f32 %v1138, %v1558
      %v1643 = vadd.f32 %v1139, %v1559
      %v1644 = vadd.f32 %v1140, %v1560
      %v1645 = vadd.f32 %v1141, %v1561
      %v1646 = vadd.f32 %v1142, %v1562
      %v1647 = vadd.f32 %v1143, %v1563
      %v1648 = vadd.f32 %v1144, %v1564
      %v1649 = vadd.f32 %v1145, %v1565
      %v1650 = vadd.f32 %v1146, %v1566
      %v1651 = vadd.f32 %v1147, %v1567
      %v1652 = vadd.f32 %v1148, %v1568
      %v1653 = vadd.f32 %v1149, %v1569
      %v1654 = vadd.f32 %v1150, %v1570
      %v1655 = vadd.f32 %v1151, %v1571
      %v1656 = vadd.f32 %v1152, %v1572
      %v1657 = vadd.f32 %v1153, %v1573
      %v1658 = vadd.f32 %v1154, %v1574
      %v1659 = vadd.f32 %v1155, %v1575
      %v1660 = vadd.f32 %v1156, %v1576
      %v1661 = vadd.f32 %v1157, %v1577
      %v1662 = vadd.f32 %v1158, %v1578
      %v1663 = vadd.f32 %v1159, %v1579
      %v1664 = vadd.f32 %v1160, %v1580
      %v1665 = vadd.f32 %v1161, %v1581
      %v1666 = vadd.f32 %v1162, %v1582
      %v1667 = vadd.f32 %v1163, %v1583
      %v1668 = vadd.f32 %v1164, %v1584
      %v1669 = vadd.f32 %v1165, %v1585
      %v1670 = vadd.f32 %v1166, %v1586
      %v1671 = vadd.f32 %v1167, %v1587
      %v1672 = vadd.f32 %v1168, %v1588
      %v1673 = vadd.f32 %v1169, %v1589
      %v1674 = vadd.f32 %v1170, %v1590
      %v1675 = vadd.f32 %v1171, %v1591
      %v1676 = vadd.f32 %v1172, %v1592
      %v1677 = vadd.f32 %v1173, %v1593
      %v1678 = vadd.f32 %v1174, %v1594
      %v1679 = vadd.f32 %v1175, %v1595
      %v1680 = vadd.f32 %v1176, %v1596
      %v1681 = vadd.f32 %v1177, %v1597
      %v1682 = vadd.f32 %v1178, %v1598
      %v1683 = vadd.f32 %v1179, %v1599
      %v1684 = vadd.f32 %v1180, %v1600
      %v1685 = vadd.f32 %v1181, %v1601
      %v1686 = vadd.f32 %v1182, %v1602
      %v1687 = vadd.f32 %v1183, %v1603
      %v1688 = vadd.f32 %v1184, %v1604
      %v1689 = vadd.f32 %v1185, %v1605
      %v1690 = vadd.f32 %v1186, %v1606
      %v1691 = vadd.f32 %v1187, %v1607
      %v1692 = vadd.f32 %v1188, %v1608
      %v1693 = vadd.f32 %v1189, %v1609
      %v1694 = vadd.f32 %v1190, %v1610
      %v1695 = vadd.f32 %v1191, %v1611
      %v1696 = vadd.f32 %v1192, %v1612
      %v1697 = vadd.f32 %v1193, %v1613
      %v1698 = vadd.f32 %v1194, %v1614
      %v1699 = vadd.f32 %v1195, %v1615
      %v1700 = vadd.f32 %v1196, %v1616
      %v1701 = vadd.f32 %v1197, %v1617
      %v1702 = vadd.f32 %v1198, %v1618
      %v1703 = vadd.f32 %v1199, %v1619
      %v1704 = vadd.f32 %v1200, %v1620
      %v1705 = vadd.f32 %v1201, %v1621
      %v1706 = vadd.f32 %v1202, %v1622
      %v1707 = vadd.f32 %v1203, %v1623
      %v1708 = vadd.f32 %v1204, %v1624
      %v1709 = vadd.f32 %v1205, %v1625
      %v1710 = vadd.f32 %v1206, %v1626
      %v1711 = vadd.f32 %v1207, %v1627
      %v1712 = vadd.f32 %v1208, %v1628
      %v1713 = vadd.f32 %v1209, %v1629
      %v1714 = vmul.f32 %v455, %v419
      %v1715 = vmul.f32 %v456, %v419
      %v1716 = vmul.f32 %v457, %v419
      %v1717 = vmul.f32 %v458, %v419
      %v1718 = vmul.f32 %v459, %v419
      %v1719 = vmul.f32 %v460, %v419
      %v1720 = vmul.f32 %v461, %v419
      %v1721 = vmul.f32 %v462, %v419
      %v1722 = vmul.f32 %v463, %v419
      %v1723 = vmul.f32 %v464, %v419
      %v1724 = vmul.f32 %v465, %v419
      %v1725 = vmul.f32 %v466, %v419
      %v1726 = vmul.f32 %v467, %v419
      %v1727 = vmul.f32 %v468, %v419
      %v1728 = vmul.f32 %v471, %v419
      %v1729 = vmul.f32 %v472, %v419
      %v1730 = vmul.f32 %v473, %v419
      %v1731 = vmul.f32 %v474, %v419
      %v1732 = vmul.f32 %v475, %v419
      %v1733 = vmul.f32 %v476, %v419
      %v1734 = vmul.f32 %v477, %v419
      %v1735 = vmul.f32 %v478, %v419
      %v1736 = vmul.f32 %v479, %v419
      %v1737 = vmul.f32 %v480, %v419
      %v1738 = vmul.f32 %v481, %v419
      %v1739 = vmul.f32 %v482, %v419
      %v1740 = vmul.f32 %v483, %v419
      %v1741 = vmul.f32 %v484, %v419
      %v1742 = vmul.f32 %v487, %v419
      %v1743 = vmul.f32 %v488, %v419
      %v1744 = vmul.f32 %v489, %v419
      %v1745 = vmul.f32 %v490, %v419
      %v1746 = vmul.f32 %v491, %v419
      %v1747 = vmul.f32 %v492, %v419
      %v1748 = vmul.f32 %v493, %v419
      %v1749 = vmul.f32 %v494, %v419
      %v1750 = vmul.f32 %v495, %v419
      %v1751 = vmul.f32 %v496, %v419
      %v1752 = vmul.f32 %v497, %v419
      %v1753 = vmul.f32 %v498, %v419
      %v1754 = vmul.f32 %v499, %v419
      %v1755 = vmul.f32 %v500, %v419
      %v1756 = vmul.f32 %v503, %v419
      %v1757 = vmul.f32 %v504, %v419
      %v1758 = vmul.f32 %v505, %v419
      %v1759 = vmul.f32 %v506, %v419
      %v1760 = vmul.f32 %v507, %v419
      %v1761 = vmul.f32 %v508, %v419
      %v1762 = vmul.f32 %v509, %v419
      %v1763 = vmul.f32 %v510, %v419
      %v1764 = vmul.f32 %v511, %v419
      %v1765 = vmul.f32 %v512, %v419
      %v1766 = vmul.f32 %v513, %v419
      %v1767 = vmul.f32 %v514, %v419
      %v1768 = vmul.f32 %v515, %v419
      %v1769 = vmul.f32 %v516, %v419
      %v1770 = vmul.f32 %v519, %v419
      %v1771 = vmul.f32 %v520, %v419
      %v1772 = vmul.f32 %v521, %v419
      %v1773 = vmul.f32 %v522, %v419
      %v1774 = vmul.f32 %v523, %v419
      %v1775 = vmul.f32 %v524, %v419
      %v1776 = vmul.f32 %v525, %v419
      %v1777 = vmul.f32 %v526, %v419
      %v1778 = vmul.f32 %v527, %v419
      %v1779 = vmul.f32 %v528, %v419
      %v1780 = vmul.f32 %v529, %v419
      %v1781 = vmul.f32 %v530, %v419
      %v1782 = vmul.f32 %v531, %v419
      %v1783 = vmul.f32 %v532, %v419
      %v1784 = vmul.f32 %v535, %v419
      %v1785 = vmul.f32 %v536, %v419
      %v1786 = vmul.f32 %v537, %v419
      %v1787 = vmul.f32 %v538, %v419
      %v1788 = vmul.f32 %v539, %v419
      %v1789 = vmul.f32 %v540, %v419
      %v1790 = vmul.f32 %v541, %v419
      %v1791 = vmul.f32 %v542, %v419
      %v1792 = vmul.f32 %v543, %v419
      %v1793 = vmul.f32 %v544, %v419
      %v1794 = vmul.f32 %v545, %v419
      %v1795 = vmul.f32 %v546, %v419
      %v1796 = vmul.f32 %v547, %v419
      %v1797 = vmul.f32 %v548, %v419
      %v1798 = vadd.f32 %v1294, %v1714
      %v1799 = vadd.f32 %v1295, %v1715
      %v1800 = vadd.f32 %v1296, %v1716
      %v1801 = vadd.f32 %v1297, %v1717
      %v1802 = vadd.f32 %v1298, %v1718
      %v1803 = vadd.f32 %v1299, %v1719
      %v1804 = vadd.f32 %v1300, %v1720
      %v1805 = vadd.f32 %v1301, %v1721
      %v1806 = vadd.f32 %v1302, %v1722
      %v1807 = vadd.f32 %v1303, %v1723
      %v1808 = vadd.f32 %v1304, %v1724
      %v1809 = vadd.f32 %v1305, %v1725
      %v1810 = vadd.f32 %v1306, %v1726
      %v1811 = vadd.f32 %v1307, %v1727
      %v1812 = vadd.f32 %v1308, %v1728
      %v1813 = vadd.f32 %v1309, %v1729
      %v1814 = vadd.f32 %v1310, %v1730
      %v1815 = vadd.f32 %v1311, %v1731
      %v1816 = vadd.f32 %v1312, %v1732
      %v1817 = vadd.f32 %v1313, %v1733
      %v1818 = vadd.f32 %v1314, %v1734
      %v1819 = vadd.f32 %v1315, %v1735
      %v1820 = vadd.f32 %v1316, %v1736
      %v1821 = vadd.f32 %v1317, %v1737
      %v1822 = vadd.f32 %v1318, %v1738
      %v1823 = vadd.f32 %v1319, %v1739
      %v1824 = vadd.f32 %v1320, %v1740
      %v1825 = vadd.f32 %v1321, %v1741
      %v1826 = vadd.f32 %v1322, %v1742
      %v1827 = vadd.f32 %v1323, %v1743
      %v1828 = vadd.f32 %v1324, %v1744
      %v1829 = vadd.f32 %v1325, %v1745
      %v1830 = vadd.f32 %v1326, %v1746
      %v1831 = vadd.f32 %v1327, %v1747
      %v1832 = vadd.f32 %v1328, %v1748
      %v1833 = vadd.f32 %v1329, %v1749
      %v1834 = vadd.f32 %v1330, %v1750
      %v1835 = vadd.f32 %v1331, %v1751
      %v1836 = vadd.f32 %v1332, %v1752
      %v1837 = vadd.f32 %v1333, %v1753
      %v1838 = vadd.f32 %v1334, %v1754
      %v1839 = vadd.f32 %v1335, %v1755
      %v1840 = vadd.f32 %v1336, %v1756
      %v1841 = vadd.f32 %v1337, %v1757
      %v1842 = vadd.f32 %v1338, %v1758
      %v1843 = vadd.f32 %v1339, %v1759
      %v1844 = vadd.f32 %v1340, %v1760
      %v1845 = vadd.f32 %v1341, %v1761
      %v1846 = vadd.f32 %v1342, %v1762
      %v1847 = vadd.f32 %v1343, %v1763
      %v1848 = vadd.f32 %v1344, %v1764
      %v1849 = vadd.f32 %v1345, %v1765
      %v1850 = vadd.f32 %v1346, %v1766
      %v1851 = vadd.f32 %v1347, %v1767
      %v1852 = vadd.f32 %v1348, %v1768
      %v1853 = vadd.f32 %v1349, %v1769
      %v1854 = vadd.f32 %v1350, %v1770
      %v1855 = vadd.f32 %v1351, %v1771
      %v1856 = vadd.f32 %v1352, %v1772
      %v1857 = vadd.f32 %v1353, %v1773
      %v1858 = vadd.f32 %v1354, %v1774
      %v1859 = vadd.f32 %v1355, %v1775
      %v1860 = vadd.f32 %v1356, %v1776
      %v1861 = vadd.f32 %v1357, %v1777
      %v1862 = vadd.f32 %v1358, %v1778
      %v1863 = vadd.f32 %v1359, %v1779
      %v1864 = vadd.f32 %v1360, %v1780
      %v1865 = vadd.f32 %v1361, %v1781
      %v1866 = vadd.f32 %v1362, %v1782
      %v1867 = vadd.f32 %v1363, %v1783
      %v1868 = vadd.f32 %v1364, %v1784
      %v1869 = vadd.f32 %v1365, %v1785
      %v1870 = vadd.f32 %v1366, %v1786
      %v1871 = vadd.f32 %v1367, %v1787
      %v1872 = vadd.f32 %v1368, %v1788
      %v1873 = vadd.f32 %v1369, %v1789
      %v1874 = vadd.f32 %v1370, %v1790
      %v1875 = vadd.f32 %v1371, %v1791
      %v1876 = vadd.f32 %v1372, %v1792
      %v1877 = vadd.f32 %v1373, %v1793
      %v1878 = vadd.f32 %v1374, %v1794
      %v1879 = vadd.f32 %v1375, %v1795
      %v1880 = vadd.f32 %v1376, %v1796
      %v1881 = vadd.f32 %v1377, %v1797
      %v1882 = vadd.f32 %v1462, %v1630
      %v1883 = vadd.f32 %v1463, %v1631
      %v1884 = vadd.f32 %v1464, %v1632
      %v1885 = vadd.f32 %v1465, %v1633
      %v1886 = vadd.f32 %v1466, %v1634
      %v1887 = vadd.f32 %v1467, %v1635
      %v1888 = vadd.f32 %v1468, %v1636
      %v1889 = vadd.f32 %v1469, %v1637
      %v1890 = vadd.f32 %v1470, %v1638
      %v1891 = vadd.f32 %v1471, %v1639
      %v1892 = vadd.f32 %v1472, %v1640
      %v1893 = vadd.f32 %v1473, %v1641
      %v1894 = vadd.f32 %v1474, %v1642
      %v1895 = vadd.f32 %v1475, %v1643
      %v1896 = vadd.f32 %v1476, %v1644
      %v1897 = vadd.f32 %v1477, %v1645
      %v1898 = vadd.f32 %v1478, %v1646
      %v1899 = vadd.f32 %v1479, %v1647
      %v1900 = vadd.f32 %v1480, %v1648
      %v1901 = vadd.f32 %v1481, %v1649
      %v1902 = vadd.f32 %v1482, %v1650
      %v1903 = vadd.f32 %v1483, %v1651
      %v1904 = vadd.f32 %v1484, %v1652
      %v1905 = vadd.f32 %v1485, %v1653
      %v1906 = vadd.f32 %v1486, %v1654
      %v1907 = vadd.f32 %v1487, %v1655
      %v1908 = vadd.f32 %v1488, %v1656
      %v1909 = vadd.f32 %v1489, %v1657
      %v1910 = vadd.f32 %v1490, %v1658
      %v1911 = vadd.f32 %v1491, %v1659
      %v1912 = vadd.f32 %v1492, %v1660
      %v1913 = vadd.f32 %v1493, %v1661
      %v1914 = vadd.f32 %v1494, %v1662
      %v1915 = vadd.f32 %v1495, %v1663
      %v1916 = vadd.f32 %v1496, %v1664
      %v1917 = vadd.f32 %v1497, %v1665
      %v1918 = vadd.f32 %v1498, %v1666
      %v1919 = vadd.f32 %v1499, %v1667
      %v1920 = vadd.f32 %v1500, %v1668
      %v1921 = vadd.f32 %v1501, %v1669
      %v1922 = vadd.f32 %v1502, %v1670
      %v1923 = vadd.f32 %v1503, %v1671
      %v1924 = vadd.f32 %v1504, %v1672
      %v1925 = vadd.f32 %v1505, %v1673
      %v1926 = vadd.f32 %v1506, %v1674
      %v1927 = vadd.f32 %v1507, %v1675
      %v1928 = vadd.f32 %v1508, %v1676
      %v1929 = vadd.f32 %v1509, %v1677
      %v1930 = vadd.f32 %v1510, %v1678
      %v1931 = vadd.f32 %v1511, %v1679
      %v1932 = vadd.f32 %v1512, %v1680
      %v1933 = vadd.f32 %v1513, %v1681
      %v1934 = vadd.f32 %v1514, %v1682
      %v1935 = vadd.f32 %v1515, %v1683
      %v1936 = vadd.f32 %v1516, %v1684
      %v1937 = vadd.f32 %v1517, %v1685
      %v1938 = vadd.f32 %v1518, %v1686
      %v1939 = vadd.f32 %v1519, %v1687
      %v1940 = vadd.f32 %v1520, %v1688
      %v1941 = vadd.f32 %v1521, %v1689
      %v1942 = vadd.f32 %v1522, %v1690
      %v1943 = vadd.f32 %v1523, %v1691
      %v1944 = vadd.f32 %v1524, %v1692
      %v1945 = vadd.f32 %v1525, %v1693
      %v1946 = vadd.f32 %v1526, %v1694
      %v1947 = vadd.f32 %v1527, %v1695
      %v1948 = vadd.f32 %v1528, %v1696
      %v1949 = vadd.f32 %v1529, %v1697
      %v1950 = vadd.f32 %v1530, %v1698
      %v1951 = vadd.f32 %v1531, %v1699
      %v1952 = vadd.f32 %v1532, %v1700
      %v1953 = vadd.f32 %v1533, %v1701
      %v1954 = vadd.f32 %v1534, %v1702
      %v1955 = vadd.f32 %v1535, %v1703
      %v1956 = vadd.f32 %v1536, %v1704
      %v1957 = vadd.f32 %v1537, %v1705
      %v1958 = vadd.f32 %v1538, %v1706
      %v1959 = vadd.f32 %v1539, %v1707
      %v1960 = vadd.f32 %v1540, %v1708
      %v1961 = vadd.f32 %v1541, %v1709
      %v1962 = vadd.f32 %v1542, %v1710
      %v1963 = vadd.f32 %v1543, %v1711
      %v1964 = vadd.f32 %v1544, %v1712
      %v1965 = vadd.f32 %v1545, %v1713
      %v1966 = vadd.f32 %v1798, %v420
      %v1967 = vadd.f32 %v1799, %v420
      %v1968 = vadd.f32 %v1800, %v420
      %v1969 = vadd.f32 %v1801, %v420
      %v1970 = vadd.f32 %v1802, %v420
      %v1971 = vadd.f32 %v1803, %v420
      %v1972 = vadd.f32 %v1804, %v420
      %v1973 = vadd.f32 %v1805, %v420
      %v1974 = vadd.f32 %v1806, %v420
      %v1975 = vadd.f32 %v1807, %v420
      %v1976 = vadd.f32 %v1808, %v420
      %v1977 = vadd.f32 %v1809, %v420
      %v1978 = vadd.f32 %v1810, %v420
      %v1979 = vadd.f32 %v1811, %v420
      %v1980 = vadd.f32 %v1812, %v420
      %v1981 = vadd.f32 %v1813, %v420
      %v1982 = vadd.f32 %v1814, %v420
      %v1983 = vadd.f32 %v1815, %v420
      %v1984 = vadd.f32 %v1816, %v420
      %v1985 = vadd.f32 %v1817, %v420
      %v1986 = vadd.f32 %v1818, %v420
      %v1987 = vadd.f32 %v1819, %v420
      %v1988 = vadd.f32 %v1820, %v420
      %v1989 = vadd.f32 %v1821, %v420
      %v1990 = vadd.f32 %v1822, %v420
      %v1991 = vadd.f32 %v1823, %v420
      %v1992 = vadd.f32 %v1824, %v420
      %v1993 = vadd.f32 %v1825, %v420
      %v1994 = vadd.f32 %v1826, %v420
      %v1995 = vadd.f32 %v1827, %v420
      %v1996 = vadd.f32 %v1828, %v420
      %v1997 = vadd.f32 %v1829, %v420
      %v1998 = vadd.f32 %v1830, %v420
      %v1999 = vadd.f32 %v1831, %v420
      %v2000 = vadd.f32 %v1832, %v420
      %v2001 = vadd.f32 %v1833, %v420
      %v2002 = vadd.f32 %v1834, %v420
      %v2003 = vadd.f32 %v1835, %v420
      %v2004 = vadd.f32 %v1836, %v420
      %v2005 = vadd.f32 %v1837, %v420
      %v2006 = vadd.f32 %v1838, %v420
      %v2007 = vadd.f32 %v1839, %v420
      %v2008 = vadd.f32 %v1840, %v420
      %v2009 = vadd.f32 %v1841, %v420
      %v2010 = vadd.f32 %v1842, %v420
      %v2011 = vadd.f32 %v1843, %v420
      %v2012 = vadd.f32 %v1844, %v420
      %v2013 = vadd.f32 %v1845, %v420
      %v2014 = vadd.f32 %v1846, %v420
      %v2015 = vadd.f32 %v1847, %v420
      %v2016 = vadd.f32 %v1848, %v420
      %v2017 = vadd.f32 %v1849, %v420
      %v2018 = vadd.f32 %v1850, %v420
      %v2019 = vadd.f32 %v1851, %v420
      %v2020 = vadd.f32 %v1852, %v420
      %v2021 = vadd.f32 %v1853, %v420
      %v2022 = vadd.f32 %v1854, %v420
      %v2023 = vadd.f32 %v1855, %v420
      %v2024 = vadd.f32 %v1856, %v420
      %v2025 = vadd.f32 %v1857, %v420
      %v2026 = vadd.f32 %v1858, %v420
      %v2027 = vadd.f32 %v1859, %v420
      %v2028 = vadd.f32 %v1860, %v420
      %v2029 = vadd.f32 %v1861, %v420
      %v2030 = vadd.f32 %v1862, %v420
      %v2031 = vadd.f32 %v1863, %v420
      %v2032 = vadd.f32 %v1864, %v420
      %v2033 = vadd.f32 %v1865, %v420
      %v2034 = vadd.f32 %v1866, %v420
      %v2035 = vadd.f32 %v1867, %v420
      %v2036 = vadd.f32 %v1868, %v420
      %v2037 = vadd.f32 %v1869, %v420
      %v2038 = vadd.f32 %v1870, %v420
      %v2039 = vadd.f32 %v1871, %v420
      %v2040 = vadd.f32 %v1872, %v420
      %v2041 = vadd.f32 %v1873, %v420
      %v2042 = vadd.f32 %v1874, %v420
      %v2043 = vadd.f32 %v1875, %v420
      %v2044 = vadd.f32 %v1876, %v420
      %v2045 = vadd.f32 %v1877, %v420
      %v2046 = vadd.f32 %v1878, %v420
      %v2047 = vadd.f32 %v1879, %v420
      %v2048 = vadd.f32 %v1880, %v420
      %v2049 = vadd.f32 %v1881, %v420
      %v2050 = vadd.f32 %v1882, %v1966
      %v2051 = vadd.f32 %v1883, %v1967
      %v2052 = vadd.f32 %v1884, %v1968
      %v2053 = vadd.f32 %v1885, %v1969
      %v2054 = vadd.f32 %v1886, %v1970
      %v2055 = vadd.f32 %v1887, %v1971
      %v2056 = vadd.f32 %v1888, %v1972
      %v2057 = vadd.f32 %v1889, %v1973
      %v2058 = vadd.f32 %v1890, %v1974
      %v2059 = vadd.f32 %v1891, %v1975
      %v2060 = vadd.f32 %v1892, %v1976
      %v2061 = vadd.f32 %v1893, %v1977
      %v2062 = vadd.f32 %v1894, %v1978
      %v2063 = vadd.f32 %v1895, %v1979
      %v2064 = vadd.f32 %v1896, %v1980
      %v2065 = vadd.f32 %v1897, %v1981
      %v2066 = vadd.f32 %v1898, %v1982
      %v2067 = vadd.f32 %v1899, %v1983
      %v2068 = vadd.f32 %v1900, %v1984
      %v2069 = vadd.f32 %v1901, %v1985
      %v2070 = vadd.f32 %v1902, %v1986
      %v2071 = vadd.f32 %v1903, %v1987
      %v2072 = vadd.f32 %v1904, %v1988
      %v2073 = vadd.f32 %v1905, %v1989
      %v2074 = vadd.f32 %v1906, %v1990
      %v2075 = vadd.f32 %v1907, %v1991
      %v2076 = vadd.f32 %v1908, %v1992
      %v2077 = vadd.f32 %v1909, %v1993
      %v2078 = vadd.f32 %v1910, %v1994
      %v2079 = vadd.f32 %v1911, %v1995
      %v2080 = vadd.f32 %v1912, %v1996
      %v2081 = vadd.f32 %v1913, %v1997
      %v2082 = vadd.f32 %v1914, %v1998
      %v2083 = vadd.f32 %v1915, %v1999
      %v2084 = vadd.f32 %v1916, %v2000
      %v2085 = vadd.f32 %v1917, %v2001
      %v2086 = vadd.f32 %v1918, %v2002
      %v2087 = vadd.f32 %v1919, %v2003
      %v2088 = vadd.f32 %v1920, %v2004
      %v2089 = vadd.f32 %v1921, %v2005
      %v2090 = vadd.f32 %v1922, %v2006
      %v2091 = vadd.f32 %v1923, %v2007
      %v2092 = vadd.f32 %v1924, %v2008
      %v2093 = vadd.f32 %v1925, %v2009
      %v2094 = vadd.f32 %v1926, %v2010
      %v2095 = vadd.f32 %v1927, %v2011
      %v2096 = vadd.f32 %v1928, %v2012
      %v2097 = vadd.f32 %v1929, %v2013
      %v2098 = vadd.f32 %v1930, %v2014
      %v2099 = vadd.f32 %v1931, %v2015
      %v2100 = vadd.f32 %v1932, %v2016
      %v2101 = vadd.f32 %v1933, %v2017
      %v2102 = vadd.f32 %v1934, %v2018
      %v2103 = vadd.f32 %v1935, %v2019
      %v2104 = vadd.f32 %v1936, %v2020
      %v2105 = vadd.f32 %v1937, %v2021
      %v2106 = vadd.f32 %v1938, %v2022
      %v2107 = vadd.f32 %v1939, %v2023
      %v2108 = vadd.f32 %v1940, %v2024
      %v2109 = vadd.f32 %v1941, %v2025
      %v2110 = vadd.f32 %v1942, %v2026
      %v2111 = vadd.f32 %v1943, %v2027
      %v2112 = vadd.f32 %v1944, %v2028
      %v2113 = vadd.f32 %v1945, %v2029
      %v2114 = vadd.f32 %v1946, %v2030
      %v2115 = vadd.f32 %v1947, %v2031
      %v2116 = vadd.f32 %v1948, %v2032
      %v2117 = vadd.f32 %v1949, %v2033
      %v2118 = vadd.f32 %v1950, %v2034
      %v2119 = vadd.f32 %v1951, %v2035
      %v2120 = vadd.f32 %v1952, %v2036
      %v2121 = vadd.f32 %v1953, %v2037
      %v2122 = vadd.f32 %v1954, %v2038
      %v2123 = vadd.f32 %v1955, %v2039
      %v2124 = vadd.f32 %v1956, %v2040
      %v2125 = vadd.f32 %v1957, %v2041
      %v2126 = vadd.f32 %v1958, %v2042
      %v2127 = vadd.f32 %v1959, %v2043
      %v2128 = vadd.f32 %v1960, %v2044
      %v2129 = vadd.f32 %v1961, %v2045
      %v2130 = vadd.f32 %v1962, %v2046
      %v2131 = vadd.f32 %v1963, %v2047
      %v2132 = vadd.f32 %v1964, %v2048
      %v2133 = vadd.f32 %v1965, %v2049
      %s2134 = scalar_lea.vmem %s408, 17
      %2135 = vst [vmem:[%s2134] sm:$0x1] %v2050
      %2136 = vst [vmem:[%s2134 + $0x1] sm:$0x1] %v2051
      %2137 = vst [vmem:[%s2134 + $0x2] sm:$0x1] %v2052
      %2138 = vst [vmem:[%s2134 + $0x3] sm:$0x1] %v2053
      %2139 = vst [vmem:[%s2134 + $0x4] sm:$0x1] %v2054
      %2140 = vst [vmem:[%s2134 + $0x5] sm:$0x1] %v2055
      %2141 = vst [vmem:[%s2134 + $0x6] sm:$0x1] %v2056
      %2142 = vst [vmem:[%s2134 + $0x7] sm:$0x1] %v2057
      %2143 = vst [vmem:[%s2134 + $0x8] sm:$0x1] %v2058
      %2144 = vst [vmem:[%s2134 + $0x9] sm:$0x1] %v2059
      %2145 = vst [vmem:[%s2134 + $0xa] sm:$0x1] %v2060
      %2146 = vst [vmem:[%s2134 + $0xb] sm:$0x1] %v2061
      %2147 = vst [vmem:[%s2134 + $0xc] sm:$0x1] %v2062
      %2148 = vst [vmem:[%s2134 + $0xd] sm:$0x1] %v2063
      %2149 = vst [vmem:[%s2134 + $0x10] sm:$0x1] %v2064
      %2150 = vst [vmem:[%s2134 + $0x11] sm:$0x1] %v2065
      %2151 = vst [vmem:[%s2134 + $0x12] sm:$0x1] %v2066
      %2152 = vst [vmem:[%s2134 + $0x13] sm:$0x1] %v2067
      %2153 = vst [vmem:[%s2134 + $0x14] sm:$0x1] %v2068
      %2154 = vst [vmem:[%s2134 + $0x15] sm:$0x1] %v2069
      %2155 = vst [vmem:[%s2134 + $0x16] sm:$0x1] %v2070
      %2156 = vst [vmem:[%s2134 + $0x17] sm:$0x1] %v2071
      %2157 = vst [vmem:[%s2134 + $0x18] sm:$0x1] %v2072
      %2158 = vst [vmem:[%s2134 + $0x19] sm:$0x1] %v2073
      %2159 = vst [vmem:[%s2134 + $0x1a] sm:$0x1] %v2074
      %2160 = vst [vmem:[%s2134 + $0x1b] sm:$0x1] %v2075
      %2161 = vst [vmem:[%s2134 + $0x1c] sm:$0x1] %v2076
      %2162 = vst [vmem:[%s2134 + $0x1d] sm:$0x1] %v2077
      %2163 = vst [vmem:[%s2134 + $0x20] sm:$0x1] %v2078
      %2164 = vst [vmem:[%s2134 + $0x21] sm:$0x1] %v2079
      %2165 = vst [vmem:[%s2134 + $0x22] sm:$0x1] %v2080
      %2166 = vst [vmem:[%s2134 + $0x23] sm:$0x1] %v2081
      %2167 = vst [vmem:[%s2134 + $0x24] sm:$0x1] %v2082
      %2168 = vst [vmem:[%s2134 + $0x25] sm:$0x1] %v2083
      %2169 = vst [vmem:[%s2134 + $0x26] sm:$0x1] %v2084
      %2170 = vst [vmem:[%s2134 + $0x27] sm:$0x1] %v2085
      %2171 = vst [vmem:[%s2134 + $0x28] sm:$0x1] %v2086
      %2172 = vst [vmem:[%s2134 + $0x29] sm:$0x1] %v2087
      %2173 = vst [vmem:[%s2134 + $0x2a] sm:$0x1] %v2088
      %2174 = vst [vmem:[%s2134 + $0x2b] sm:$0x1] %v2089
      %2175 = vst [vmem:[%s2134 + $0x2c] sm:$0x1] %v2090
      %2176 = vst [vmem:[%s2134 + $0x2d] sm:$0x1] %v2091
      %2177 = vst [vmem:[%s2134 + $0x30] sm:$0x1] %v2092
      %2178 = vst [vmem:[%s2134 + $0x31] sm:$0x1] %v2093
      %2179 = vst [vmem:[%s2134 + $0x32] sm:$0x1] %v2094
      %2180 = vst [vmem:[%s2134 + $0x33] sm:$0x1] %v2095
      %2181 = vst [vmem:[%s2134 + $0x34] sm:$0x1] %v2096
      %2182 = vst [vmem:[%s2134 + $0x35] sm:$0x1] %v2097
      %2183 = vst [vmem:[%s2134 + $0x36] sm:$0x1] %v2098
      %2184 = vst [vmem:[%s2134 + $0x37] sm:$0x1] %v2099
      %2185 = vst [vmem:[%s2134 + $0x38] sm:$0x1] %v2100
      %2186 = vst [vmem:[%s2134 + $0x39] sm:$0x1] %v2101
      %2187 = vst [vmem:[%s2134 + $0x3a] sm:$0x1] %v2102
      %2188 = vst [vmem:[%s2134 + $0x3b] sm:$0x1] %v2103
      %2189 = vst [vmem:[%s2134 + $0x3c] sm:$0x1] %v2104
      %2190 = vst [vmem:[%s2134 + $0x3d] sm:$0x1] %v2105
      %2191 = vst [vmem:[%s2134 + $0x40] sm:$0x1] %v2106
      %2192 = vst [vmem:[%s2134 + $0x41] sm:$0x1] %v2107
      %2193 = vst [vmem:[%s2134 + $0x42] sm:$0x1] %v2108
      %2194 = vst [vmem:[%s2134 + $0x43] sm:$0x1] %v2109
      %2195 = vst [vmem:[%s2134 + $0x44] sm:$0x1] %v2110
      %2196 = vst [vmem:[%s2134 + $0x45] sm:$0x1] %v2111
      %2197 = vst [vmem:[%s2134 + $0x46] sm:$0x1] %v2112
      %2198 = vst [vmem:[%s2134 + $0x47] sm:$0x1] %v2113
      %2199 = vst [vmem:[%s2134 + $0x48] sm:$0x1] %v2114
      %2200 = vst [vmem:[%s2134 + $0x49] sm:$0x1] %v2115
      %2201 = vst [vmem:[%s2134 + $0x4a] sm:$0x1] %v2116
      %2202 = vst [vmem:[%s2134 + $0x4b] sm:$0x1] %v2117
      %2203 = vst [vmem:[%s2134 + $0x4c] sm:$0x1] %v2118
      %2204 = vst [vmem:[%s2134 + $0x4d] sm:$0x1] %v2119
      %2205 = vst [vmem:[%s2134 + $0x50] sm:$0x1] %v2120
      %2206 = vst [vmem:[%s2134 + $0x51] sm:$0x1] %v2121
      %2207 = vst [vmem:[%s2134 + $0x52] sm:$0x1] %v2122
      %2208 = vst [vmem:[%s2134 + $0x53] sm:$0x1] %v2123
      %2209 = vst [vmem:[%s2134 + $0x54] sm:$0x1] %v2124
      %2210 = vst [vmem:[%s2134 + $0x55] sm:$0x1] %v2125
      %2211 = vst [vmem:[%s2134 + $0x56] sm:$0x1] %v2126
      %2212 = vst [vmem:[%s2134 + $0x57] sm:$0x1] %v2127
      %2213 = vst [vmem:[%s2134 + $0x58] sm:$0x1] %v2128
      %2214 = vst [vmem:[%s2134 + $0x59] sm:$0x1] %v2129
      %2215 = vst [vmem:[%s2134 + $0x5a] sm:$0x1] %v2130
      %2216 = vst [vmem:[%s2134 + $0x5b] sm:$0x1] %v2131
      %2217 = vst [vmem:[%s2134 + $0x5c] sm:$0x1] %v2132
      %2218 = vst [vmem:[%s2134 + $0x5d] sm:$0x1] %v2133
      %v2219 = vmul.f32 %v421, %v412
      %v2220 = vmul.f32 %v437, %v412
      %v2221 = vmul.f32 %v453, %v412
      %v2222 = vmul.f32 %v469, %v412
      %v2223 = vmul.f32 %v485, %v412
      %v2224 = vmul.f32 %v501, %v412
      %v2225 = vmul.f32 %v422, %v413
      %v2226 = vmul.f32 %v438, %v413
      %v2227 = vmul.f32 %v454, %v413
      %v2228 = vmul.f32 %v470, %v413
      %v2229 = vmul.f32 %v486, %v413
      %v2230 = vmul.f32 %v502, %v413
      %v2231 = vadd.f32 %v2219, %v2225
      %v2232 = vadd.f32 %v2220, %v2226
      %v2233 = vadd.f32 %v2221, %v2227
      %v2234 = vadd.f32 %v2222, %v2228
      %v2235 = vadd.f32 %v2223, %v2229
      %v2236 = vadd.f32 %v2224, %v2230
      %v2237 = vmul.f32 %v437, %v415
      %v2238 = vmul.f32 %v453, %v415
      %v2239 = vmul.f32 %v469, %v415
      %v2240 = vmul.f32 %v485, %v415
      %v2241 = vmul.f32 %v501, %v415
      %v2242 = vmul.f32 %v517, %v415
      %v2243 = vadd.f32 %v2231, %v2237
      %v2244 = vadd.f32 %v2232, %v2238
      %v2245 = vadd.f32 %v2233, %v2239
      %v2246 = vadd.f32 %v2234, %v2240
      %v2247 = vadd.f32 %v2235, %v2241
      %v2248 = vadd.f32 %v2236, %v2242
      %v2249 = vmul.f32 %v438, %v416
      %v2250 = vmul.f32 %v454, %v416
      %v2251 = vmul.f32 %v470, %v416
      %v2252 = vmul.f32 %v486, %v416
      %v2253 = vmul.f32 %v502, %v416
      %v2254 = vmul.f32 %v518, %v416
      %v2255 = vadd.f32 %v2243, %v2249
      %v2256 = vadd.f32 %v2244, %v2250
      %v2257 = vadd.f32 %v2245, %v2251
      %v2258 = vadd.f32 %v2246, %v2252
      %v2259 = vadd.f32 %v2247, %v2253
      %v2260 = vadd.f32 %v2248, %v2254
      %v2261 = vmul.f32 %v453, %v418
      %v2262 = vmul.f32 %v469, %v418
      %v2263 = vmul.f32 %v485, %v418
      %v2264 = vmul.f32 %v501, %v418
      %v2265 = vmul.f32 %v517, %v418
      %v2266 = vmul.f32 %v533, %v418
      %v2267 = vadd.f32 %v2255, %v2261
      %v2268 = vadd.f32 %v2256, %v2262
      %v2269 = vadd.f32 %v2257, %v2263
      %v2270 = vadd.f32 %v2258, %v2264
      %v2271 = vadd.f32 %v2259, %v2265
      %v2272 = vadd.f32 %v2260, %v2266
      %v2273 = vmul.f32 %v454, %v419
      %v2274 = vmul.f32 %v470, %v419
      %v2275 = vmul.f32 %v486, %v419
      %v2276 = vmul.f32 %v502, %v419
      %v2277 = vmul.f32 %v518, %v419
      %v2278 = vmul.f32 %v534, %v419
      %v2279 = vadd.f32 %v2267, %v2273
      %v2280 = vadd.f32 %v2268, %v2274
      %v2281 = vadd.f32 %v2269, %v2275
      %v2282 = vadd.f32 %v2270, %v2276
      %v2283 = vadd.f32 %v2271, %v2277
      %v2284 = vadd.f32 %v2272, %v2278
      %v2285 = vadd.f32 %v2279, %v420
      %v2286 = vadd.f32 %v2280, %v420
      %v2287 = vadd.f32 %v2281, %v420
      %v2288 = vadd.f32 %v2282, %v420
      %v2289 = vadd.f32 %v2283, %v420
      %v2290 = vadd.f32 %v2284, %v420
      %s2291 = scalar_lea.vmem %s408, 16
      %2292 = vst [vmem:[%s2291] sm:$0x1] %v2285
      %2293 = vst [vmem:[%s2291 + $0x10] sm:$0x1] %v2286
      %2294 = vst [vmem:[%s2291 + $0x20] sm:$0x1] %v2287
      %2295 = vst [vmem:[%s2291 + $0x30] sm:$0x1] %v2288
      %2296 = vst [vmem:[%s2291 + $0x40] sm:$0x1] %v2289
      %2297 = vst [vmem:[%s2291 + $0x50] sm:$0x1] %v2290
      %v2298 = vmul.f32 %v435, %v411
      %v2299 = vmul.f32 %v451, %v411
      %v2300 = vmul.f32 %v467, %v411
      %v2301 = vmul.f32 %v483, %v411
      %v2302 = vmul.f32 %v499, %v411
      %v2303 = vmul.f32 %v515, %v411
      %v2304 = vmul.f32 %v436, %v412
      %v2305 = vmul.f32 %v452, %v412
      %v2306 = vmul.f32 %v468, %v412
      %v2307 = vmul.f32 %v484, %v412
      %v2308 = vmul.f32 %v500, %v412
      %v2309 = vmul.f32 %v516, %v412
      %v2310 = vadd.f32 %v2298, %v2304
      %v2311 = vadd.f32 %v2299, %v2305
      %v2312 = vadd.f32 %v2300, %v2306
      %v2313 = vadd.f32 %v2301, %v2307
      %v2314 = vadd.f32 %v2302, %v2308
      %v2315 = vadd.f32 %v2303, %v2309
      %v2316 = vmul.f32 %v451, %v414
      %v2317 = vmul.f32 %v467, %v414
      %v2318 = vmul.f32 %v483, %v414
      %v2319 = vmul.f32 %v499, %v414
      %v2320 = vmul.f32 %v515, %v414
      %v2321 = vmul.f32 %v531, %v414
      %v2322 = vadd.f32 %v2310, %v2316
      %v2323 = vadd.f32 %v2311, %v2317
      %v2324 = vadd.f32 %v2312, %v2318
      %v2325 = vadd.f32 %v2313, %v2319
      %v2326 = vadd.f32 %v2314, %v2320
      %v2327 = vadd.f32 %v2315, %v2321
      %v2328 = vmul.f32 %v452, %v415
      %v2329 = vmul.f32 %v468, %v415
      %v2330 = vmul.f32 %v484, %v415
      %v2331 = vmul.f32 %v500, %v415
      %v2332 = vmul.f32 %v516, %v415
      %v2333 = vmul.f32 %v532, %v415
      %v2334 = vadd.f32 %v2322, %v2328
      %v2335 = vadd.f32 %v2323, %v2329
      %v2336 = vadd.f32 %v2324, %v2330
      %v2337 = vadd.f32 %v2325, %v2331
      %v2338 = vadd.f32 %v2326, %v2332
      %v2339 = vadd.f32 %v2327, %v2333
      %v2340 = vmul.f32 %v467, %v417
      %v2341 = vmul.f32 %v483, %v417
      %v2342 = vmul.f32 %v499, %v417
      %v2343 = vmul.f32 %v515, %v417
      %v2344 = vmul.f32 %v531, %v417
      %v2345 = vmul.f32 %v547, %v417
      %v2346 = vadd.f32 %v2334, %v2340
      %v2347 = vadd.f32 %v2335, %v2341
      %v2348 = vadd.f32 %v2336, %v2342
      %v2349 = vadd.f32 %v2337, %v2343
      %v2350 = vadd.f32 %v2338, %v2344
      %v2351 = vadd.f32 %v2339, %v2345
      %v2352 = vmul.f32 %v468, %v418
      %v2353 = vmul.f32 %v484, %v418
      %v2354 = vmul.f32 %v500, %v418
      %v2355 = vmul.f32 %v516, %v418
      %v2356 = vmul.f32 %v532, %v418
      %v2357 = vmul.f32 %v548, %v418
      %v2358 = vadd.f32 %v2346, %v2352
      %v2359 = vadd.f32 %v2347, %v2353
      %v2360 = vadd.f32 %v2348, %v2354
      %v2361 = vadd.f32 %v2349, %v2355
      %v2362 = vadd.f32 %v2350, %v2356
      %v2363 = vadd.f32 %v2351, %v2357
      %v2364 = vadd.f32 %v2358, %v420
      %v2365 = vadd.f32 %v2359, %v420
      %v2366 = vadd.f32 %v2360, %v420
      %v2367 = vadd.f32 %v2361, %v420
      %v2368 = vadd.f32 %v2362, %v420
      %v2369 = vadd.f32 %v2363, %v420
      %s2370 = scalar_lea.vmem %s408, 31
      %2371 = vst [vmem:[%s2370] sm:$0x1] %v2364
      %2372 = vst [vmem:[%s2370 + $0x10] sm:$0x1] %v2365
      %2373 = vst [vmem:[%s2370 + $0x20] sm:$0x1] %v2366
      %2374 = vst [vmem:[%s2370 + $0x30] sm:$0x1] %v2367
      %2375 = vst [vmem:[%s2370 + $0x40] sm:$0x1] %v2368
      %2376 = vst [vmem:[%s2370 + $0x50] sm:$0x1] %v2369
      %v2377 = vmul.f32 %v569, %v411
      %v2378 = vmul.f32 %v570, %v411
      %v2379 = vmul.f32 %v571, %v411
      %v2380 = vmul.f32 %v572, %v411
      %v2381 = vmul.f32 %v573, %v411
      %v2382 = vmul.f32 %v574, %v411
      %v2383 = vmul.f32 %v575, %v411
      %v2384 = vmul.f32 %v576, %v411
      %v2385 = vmul.f32 %v577, %v411
      %v2386 = vmul.f32 %v578, %v411
      %v2387 = vmul.f32 %v579, %v411
      %v2388 = vmul.f32 %v580, %v411
      %v2389 = vmul.f32 %v581, %v411
      %v2390 = vmul.f32 %v582, %v411
      %v2391 = vmul.f32 %v570, %v412
      %v2392 = vmul.f32 %v571, %v412
      %v2393 = vmul.f32 %v572, %v412
      %v2394 = vmul.f32 %v573, %v412
      %v2395 = vmul.f32 %v574, %v412
      %v2396 = vmul.f32 %v575, %v412
      %v2397 = vmul.f32 %v576, %v412
      %v2398 = vmul.f32 %v577, %v412
      %v2399 = vmul.f32 %v578, %v412
      %v2400 = vmul.f32 %v579, %v412
      %v2401 = vmul.f32 %v580, %v412
      %v2402 = vmul.f32 %v581, %v412
      %v2403 = vmul.f32 %v582, %v412
      %v2404 = vmul.f32 %v583, %v412
      %v2405 = vmul.f32 %v571, %v413
      %v2406 = vmul.f32 %v572, %v413
      %v2407 = vmul.f32 %v573, %v413
      %v2408 = vmul.f32 %v574, %v413
      %v2409 = vmul.f32 %v575, %v413
      %v2410 = vmul.f32 %v576, %v413
      %v2411 = vmul.f32 %v577, %v413
      %v2412 = vmul.f32 %v578, %v413
      %v2413 = vmul.f32 %v579, %v413
      %v2414 = vmul.f32 %v580, %v413
      %v2415 = vmul.f32 %v581, %v413
      %v2416 = vmul.f32 %v582, %v413
      %v2417 = vmul.f32 %v583, %v413
      %v2418 = vmul.f32 %v584, %v413
      %v2419 = vmul.f32 %v421, %v414
      %v2420 = vmul.f32 %v422, %v414
      %v2421 = vmul.f32 %v423, %v414
      %v2422 = vmul.f32 %v424, %v414
      %v2423 = vmul.f32 %v425, %v414
      %v2424 = vmul.f32 %v426, %v414
      %v2425 = vmul.f32 %v427, %v414
      %v2426 = vmul.f32 %v428, %v414
      %v2427 = vmul.f32 %v429, %v414
      %v2428 = vmul.f32 %v430, %v414
      %v2429 = vmul.f32 %v431, %v414
      %v2430 = vmul.f32 %v432, %v414
      %v2431 = vmul.f32 %v433, %v414
      %v2432 = vmul.f32 %v434, %v414
      %v2433 = vadd.f32 %v2377, %v2419
      %v2434 = vadd.f32 %v2378, %v2420
      %v2435 = vadd.f32 %v2379, %v2421
      %v2436 = vadd.f32 %v2380, %v2422
      %v2437 = vadd.f32 %v2381, %v2423
      %v2438 = vadd.f32 %v2382, %v2424
      %v2439 = vadd.f32 %v2383, %v2425
      %v2440 = vadd.f32 %v2384, %v2426
      %v2441 = vadd.f32 %v2385, %v2427
      %v2442 = vadd.f32 %v2386, %v2428
      %v2443 = vadd.f32 %v2387, %v2429
      %v2444 = vadd.f32 %v2388, %v2430
      %v2445 = vadd.f32 %v2389, %v2431
      %v2446 = vadd.f32 %v2390, %v2432
      %v2447 = vmul.f32 %v422, %v415
      %v2448 = vmul.f32 %v423, %v415
      %v2449 = vmul.f32 %v424, %v415
      %v2450 = vmul.f32 %v425, %v415
      %v2451 = vmul.f32 %v426, %v415
      %v2452 = vmul.f32 %v427, %v415
      %v2453 = vmul.f32 %v428, %v415
      %v2454 = vmul.f32 %v429, %v415
      %v2455 = vmul.f32 %v430, %v415
      %v2456 = vmul.f32 %v431, %v415
      %v2457 = vmul.f32 %v432, %v415
      %v2458 = vmul.f32 %v433, %v415
      %v2459 = vmul.f32 %v434, %v415
      %v2460 = vmul.f32 %v435, %v415
      %v2461 = vadd.f32 %v2391, %v2447
      %v2462 = vadd.f32 %v2392, %v2448
      %v2463 = vadd.f32 %v2393, %v2449
      %v2464 = vadd.f32 %v2394, %v2450
      %v2465 = vadd.f32 %v2395, %v2451
      %v2466 = vadd.f32 %v2396, %v2452
      %v2467 = vadd.f32 %v2397, %v2453
      %v2468 = vadd.f32 %v2398, %v2454
      %v2469 = vadd.f32 %v2399, %v2455
      %v2470 = vadd.f32 %v2400, %v2456
      %v2471 = vadd.f32 %v2401, %v2457
      %v2472 = vadd.f32 %v2402, %v2458
      %v2473 = vadd.f32 %v2403, %v2459
      %v2474 = vadd.f32 %v2404, %v2460
      %v2475 = vmul.f32 %v423, %v416
      %v2476 = vmul.f32 %v424, %v416
      %v2477 = vmul.f32 %v425, %v416
      %v2478 = vmul.f32 %v426, %v416
      %v2479 = vmul.f32 %v427, %v416
      %v2480 = vmul.f32 %v428, %v416
      %v2481 = vmul.f32 %v429, %v416
      %v2482 = vmul.f32 %v430, %v416
      %v2483 = vmul.f32 %v431, %v416
      %v2484 = vmul.f32 %v432, %v416
      %v2485 = vmul.f32 %v433, %v416
      %v2486 = vmul.f32 %v434, %v416
      %v2487 = vmul.f32 %v435, %v416
      %v2488 = vmul.f32 %v436, %v416
      %v2489 = vadd.f32 %v2405, %v2475
      %v2490 = vadd.f32 %v2406, %v2476
      %v2491 = vadd.f32 %v2407, %v2477
      %v2492 = vadd.f32 %v2408, %v2478
      %v2493 = vadd.f32 %v2409, %v2479
      %v2494 = vadd.f32 %v2410, %v2480
      %v2495 = vadd.f32 %v2411, %v2481
      %v2496 = vadd.f32 %v2412, %v2482
      %v2497 = vadd.f32 %v2413, %v2483
      %v2498 = vadd.f32 %v2414, %v2484
      %v2499 = vadd.f32 %v2415, %v2485
      %v2500 = vadd.f32 %v2416, %v2486
      %v2501 = vadd.f32 %v2417, %v2487
      %v2502 = vadd.f32 %v2418, %v2488
      %v2503 = vmul.f32 %v437, %v417
      %v2504 = vmul.f32 %v438, %v417
      %v2505 = vmul.f32 %v439, %v417
      %v2506 = vmul.f32 %v440, %v417
      %v2507 = vmul.f32 %v441, %v417
      %v2508 = vmul.f32 %v442, %v417
      %v2509 = vmul.f32 %v443, %v417
      %v2510 = vmul.f32 %v444, %v417
      %v2511 = vmul.f32 %v445, %v417
      %v2512 = vmul.f32 %v446, %v417
      %v2513 = vmul.f32 %v447, %v417
      %v2514 = vmul.f32 %v448, %v417
      %v2515 = vmul.f32 %v449, %v417
      %v2516 = vmul.f32 %v450, %v417
      %v2517 = vadd.f32 %v2433, %v2503
      %v2518 = vadd.f32 %v2434, %v2504
      %v2519 = vadd.f32 %v2435, %v2505
      %v2520 = vadd.f32 %v2436, %v2506
      %v2521 = vadd.f32 %v2437, %v2507
      %v2522 = vadd.f32 %v2438, %v2508
      %v2523 = vadd.f32 %v2439, %v2509
      %v2524 = vadd.f32 %v2440, %v2510
      %v2525 = vadd.f32 %v2441, %v2511
      %v2526 = vadd.f32 %v2442, %v2512
      %v2527 = vadd.f32 %v2443, %v2513
      %v2528 = vadd.f32 %v2444, %v2514
      %v2529 = vadd.f32 %v2445, %v2515
      %v2530 = vadd.f32 %v2446, %v2516
      %v2531 = vmul.f32 %v438, %v418
      %v2532 = vmul.f32 %v439, %v418
      %v2533 = vmul.f32 %v440, %v418
      %v2534 = vmul.f32 %v441, %v418
      %v2535 = vmul.f32 %v442, %v418
      %v2536 = vmul.f32 %v443, %v418
      %v2537 = vmul.f32 %v444, %v418
      %v2538 = vmul.f32 %v445, %v418
      %v2539 = vmul.f32 %v446, %v418
      %v2540 = vmul.f32 %v447, %v418
      %v2541 = vmul.f32 %v448, %v418
      %v2542 = vmul.f32 %v449, %v418
      %v2543 = vmul.f32 %v450, %v418
      %v2544 = vmul.f32 %v451, %v418
      %v2545 = vadd.f32 %v2461, %v2531
      %v2546 = vadd.f32 %v2462, %v2532
      %v2547 = vadd.f32 %v2463, %v2533
      %v2548 = vadd.f32 %v2464, %v2534
      %v2549 = vadd.f32 %v2465, %v2535
      %v2550 = vadd.f32 %v2466, %v2536
      %v2551 = vadd.f32 %v2467, %v2537
      %v2552 = vadd.f32 %v2468, %v2538
      %v2553 = vadd.f32 %v2469, %v2539
      %v2554 = vadd.f32 %v2470, %v2540
      %v2555 = vadd.f32 %v2471, %v2541
      %v2556 = vadd.f32 %v2472, %v2542
      %v2557 = vadd.f32 %v2473, %v2543
      %v2558 = vadd.f32 %v2474, %v2544
      %v2559 = vmul.f32 %v439, %v419
      %v2560 = vmul.f32 %v440, %v419
      %v2561 = vmul.f32 %v441, %v419
      %v2562 = vmul.f32 %v442, %v419
      %v2563 = vmul.f32 %v443, %v419
      %v2564 = vmul.f32 %v444, %v419
      %v2565 = vmul.f32 %v445, %v419
      %v2566 = vmul.f32 %v446, %v419
      %v2567 = vmul.f32 %v447, %v419
      %v2568 = vmul.f32 %v448, %v419
      %v2569 = vmul.f32 %v449, %v419
      %v2570 = vmul.f32 %v450, %v419
      %v2571 = vmul.f32 %v451, %v419
      %v2572 = vmul.f32 %v452, %v419
      %v2573 = vadd.f32 %v2489, %v2559
      %v2574 = vadd.f32 %v2490, %v2560
      %v2575 = vadd.f32 %v2491, %v2561
      %v2576 = vadd.f32 %v2492, %v2562
      %v2577 = vadd.f32 %v2493, %v2563
      %v2578 = vadd.f32 %v2494, %v2564
      %v2579 = vadd.f32 %v2495, %v2565
      %v2580 = vadd.f32 %v2496, %v2566
      %v2581 = vadd.f32 %v2497, %v2567
      %v2582 = vadd.f32 %v2498, %v2568
      %v2583 = vadd.f32 %v2499, %v2569
      %v2584 = vadd.f32 %v2500, %v2570
      %v2585 = vadd.f32 %v2501, %v2571
      %v2586 = vadd.f32 %v2502, %v2572
      %v2587 = vadd.f32 %v2517, %v2545
      %v2588 = vadd.f32 %v2518, %v2546
      %v2589 = vadd.f32 %v2519, %v2547
      %v2590 = vadd.f32 %v2520, %v2548
      %v2591 = vadd.f32 %v2521, %v2549
      %v2592 = vadd.f32 %v2522, %v2550
      %v2593 = vadd.f32 %v2523, %v2551
      %v2594 = vadd.f32 %v2524, %v2552
      %v2595 = vadd.f32 %v2525, %v2553
      %v2596 = vadd.f32 %v2526, %v2554
      %v2597 = vadd.f32 %v2527, %v2555
      %v2598 = vadd.f32 %v2528, %v2556
      %v2599 = vadd.f32 %v2529, %v2557
      %v2600 = vadd.f32 %v2530, %v2558
      %v2601 = vadd.f32 %v2573, %v420
      %v2602 = vadd.f32 %v2574, %v420
      %v2603 = vadd.f32 %v2575, %v420
      %v2604 = vadd.f32 %v2576, %v420
      %v2605 = vadd.f32 %v2577, %v420
      %v2606 = vadd.f32 %v2578, %v420
      %v2607 = vadd.f32 %v2579, %v420
      %v2608 = vadd.f32 %v2580, %v420
      %v2609 = vadd.f32 %v2581, %v420
      %v2610 = vadd.f32 %v2582, %v420
      %v2611 = vadd.f32 %v2583, %v420
      %v2612 = vadd.f32 %v2584, %v420
      %v2613 = vadd.f32 %v2585, %v420
      %v2614 = vadd.f32 %v2586, %v420
      %v2615 = vadd.f32 %v2587, %v2601
      %v2616 = vadd.f32 %v2588, %v2602
      %v2617 = vadd.f32 %v2589, %v2603
      %v2618 = vadd.f32 %v2590, %v2604
      %v2619 = vadd.f32 %v2591, %v2605
      %v2620 = vadd.f32 %v2592, %v2606
      %v2621 = vadd.f32 %v2593, %v2607
      %v2622 = vadd.f32 %v2594, %v2608
      %v2623 = vadd.f32 %v2595, %v2609
      %v2624 = vadd.f32 %v2596, %v2610
      %v2625 = vadd.f32 %v2597, %v2611
      %v2626 = vadd.f32 %v2598, %v2612
      %v2627 = vadd.f32 %v2599, %v2613
      %v2628 = vadd.f32 %v2600, %v2614
      %s2629 = scalar_lea.vmem %s408, 1
      %2630 = vst [vmem:[%s2629] sm:$0x1] %v2615
      %2631 = vst [vmem:[%s2629 + $0x1] sm:$0x1] %v2616
      %2632 = vst [vmem:[%s2629 + $0x2] sm:$0x1] %v2617
      %2633 = vst [vmem:[%s2629 + $0x3] sm:$0x1] %v2618
      %2634 = vst [vmem:[%s2629 + $0x4] sm:$0x1] %v2619
      %2635 = vst [vmem:[%s2629 + $0x5] sm:$0x1] %v2620
      %2636 = vst [vmem:[%s2629 + $0x6] sm:$0x1] %v2621
      %2637 = vst [vmem:[%s2629 + $0x7] sm:$0x1] %v2622
      %2638 = vst [vmem:[%s2629 + $0x8] sm:$0x1] %v2623
      %2639 = vst [vmem:[%s2629 + $0x9] sm:$0x1] %v2624
      %2640 = vst [vmem:[%s2629 + $0xa] sm:$0x1] %v2625
      %2641 = vst [vmem:[%s2629 + $0xb] sm:$0x1] %v2626
      %2642 = vst [vmem:[%s2629 + $0xc] sm:$0x1] %v2627
      %2643 = vst [vmem:[%s2629 + $0xd] sm:$0x1] %v2628
      %v2644 = vmul.f32 %v569, %v412
      %v2645 = vmul.f32 %v570, %v413
      %v2646 = vadd.f32 %v2644, %v2645
      %v2647 = vmul.f32 %v421, %v415
      %v2648 = vadd.f32 %v2646, %v2647
      %v2649 = vmul.f32 %v422, %v416
      %v2650 = vadd.f32 %v2648, %v2649
      %v2651 = vmul.f32 %v437, %v418
      %v2652 = vadd.f32 %v2650, %v2651
      %v2653 = vmul.f32 %v438, %v419
      %v2654 = vadd.f32 %v2652, %v2653
      %v2655 = vadd.f32 %v2654, %v420
      %2656 = vst [vmem:[%s408] sm:$0x1] %v2655
      %v2657 = vmul.f32 %v583, %v411
      %v2658 = vmul.f32 %v584, %v412
      %v2659 = vadd.f32 %v2657, %v2658
      %v2660 = vmul.f32 %v435, %v414
      %v2661 = vadd.f32 %v2659, %v2660
      %v2662 = vmul.f32 %v436, %v415
      %v2663 = vadd.f32 %v2661, %v2662
      %v2664 = vmul.f32 %v451, %v417
      %v2665 = vadd.f32 %v2663, %v2664
      %v2666 = vmul.f32 %v452, %v418
      %v2667 = vadd.f32 %v2665, %v2666
      %v2668 = vadd.f32 %v2667, %v420
      %s2669 = scalar_lea.vmem %s408, 15
      %2670 = vst [vmem:[%s2669] sm:$0x1] %v2668
      %v2671 = vmul.f32 %v517, %v411
      %v2672 = vmul.f32 %v518, %v411
      %v2673 = vmul.f32 %v519, %v411
      %v2674 = vmul.f32 %v520, %v411
      %v2675 = vmul.f32 %v521, %v411
      %v2676 = vmul.f32 %v522, %v411
      %v2677 = vmul.f32 %v523, %v411
      %v2678 = vmul.f32 %v524, %v411
      %v2679 = vmul.f32 %v525, %v411
      %v2680 = vmul.f32 %v526, %v411
      %v2681 = vmul.f32 %v527, %v411
      %v2682 = vmul.f32 %v528, %v411
      %v2683 = vmul.f32 %v529, %v411
      %v2684 = vmul.f32 %v530, %v411
      %v2685 = vmul.f32 %v518, %v412
      %v2686 = vmul.f32 %v519, %v412
      %v2687 = vmul.f32 %v520, %v412
      %v2688 = vmul.f32 %v521, %v412
      %v2689 = vmul.f32 %v522, %v412
      %v2690 = vmul.f32 %v523, %v412
      %v2691 = vmul.f32 %v524, %v412
      %v2692 = vmul.f32 %v525, %v412
      %v2693 = vmul.f32 %v526, %v412
      %v2694 = vmul.f32 %v527, %v412
      %v2695 = vmul.f32 %v528, %v412
      %v2696 = vmul.f32 %v529, %v412
      %v2697 = vmul.f32 %v530, %v412
      %v2698 = vmul.f32 %v531, %v412
      %v2699 = vmul.f32 %v519, %v413
      %v2700 = vmul.f32 %v520, %v413
      %v2701 = vmul.f32 %v521, %v413
      %v2702 = vmul.f32 %v522, %v413
      %v2703 = vmul.f32 %v523, %v413
      %v2704 = vmul.f32 %v524, %v413
      %v2705 = vmul.f32 %v525, %v413
      %v2706 = vmul.f32 %v526, %v413
      %v2707 = vmul.f32 %v527, %v413
      %v2708 = vmul.f32 %v528, %v413
      %v2709 = vmul.f32 %v529, %v413
      %v2710 = vmul.f32 %v530, %v413
      %v2711 = vmul.f32 %v531, %v413
      %v2712 = vmul.f32 %v532, %v413
      %v2713 = vmul.f32 %v533, %v414
      %v2714 = vmul.f32 %v534, %v414
      %v2715 = vmul.f32 %v535, %v414
      %v2716 = vmul.f32 %v536, %v414
      %v2717 = vmul.f32 %v537, %v414
      %v2718 = vmul.f32 %v538, %v414
      %v2719 = vmul.f32 %v539, %v414
      %v2720 = vmul.f32 %v540, %v414
      %v2721 = vmul.f32 %v541, %v414
      %v2722 = vmul.f32 %v542, %v414
      %v2723 = vmul.f32 %v543, %v414
      %v2724 = vmul.f32 %v544, %v414
      %v2725 = vmul.f32 %v545, %v414
      %v2726 = vmul.f32 %v546, %v414
      %v2727 = vadd.f32 %v2671, %v2713
      %v2728 = vadd.f32 %v2672, %v2714
      %v2729 = vadd.f32 %v2673, %v2715
      %v2730 = vadd.f32 %v2674, %v2716
      %v2731 = vadd.f32 %v2675, %v2717
      %v2732 = vadd.f32 %v2676, %v2718
      %v2733 = vadd.f32 %v2677, %v2719
      %v2734 = vadd.f32 %v2678, %v2720
      %v2735 = vadd.f32 %v2679, %v2721
      %v2736 = vadd.f32 %v2680, %v2722
      %v2737 = vadd.f32 %v2681, %v2723
      %v2738 = vadd.f32 %v2682, %v2724
      %v2739 = vadd.f32 %v2683, %v2725
      %v2740 = vadd.f32 %v2684, %v2726
      %v2741 = vmul.f32 %v534, %v415
      %v2742 = vmul.f32 %v535, %v415
      %v2743 = vmul.f32 %v536, %v415
      %v2744 = vmul.f32 %v537, %v415
      %v2745 = vmul.f32 %v538, %v415
      %v2746 = vmul.f32 %v539, %v415
      %v2747 = vmul.f32 %v540, %v415
      %v2748 = vmul.f32 %v541, %v415
      %v2749 = vmul.f32 %v542, %v415
      %v2750 = vmul.f32 %v543, %v415
      %v2751 = vmul.f32 %v544, %v415
      %v2752 = vmul.f32 %v545, %v415
      %v2753 = vmul.f32 %v546, %v415
      %v2754 = vmul.f32 %v547, %v415
      %v2755 = vadd.f32 %v2685, %v2741
      %v2756 = vadd.f32 %v2686, %v2742
      %v2757 = vadd.f32 %v2687, %v2743
      %v2758 = vadd.f32 %v2688, %v2744
      %v2759 = vadd.f32 %v2689, %v2745
      %v2760 = vadd.f32 %v2690, %v2746
      %v2761 = vadd.f32 %v2691, %v2747
      %v2762 = vadd.f32 %v2692, %v2748
      %v2763 = vadd.f32 %v2693, %v2749
      %v2764 = vadd.f32 %v2694, %v2750
      %v2765 = vadd.f32 %v2695, %v2751
      %v2766 = vadd.f32 %v2696, %v2752
      %v2767 = vadd.f32 %v2697, %v2753
      %v2768 = vadd.f32 %v2698, %v2754
      %v2769 = vmul.f32 %v535, %v416
      %v2770 = vmul.f32 %v536, %v416
      %v2771 = vmul.f32 %v537, %v416
      %v2772 = vmul.f32 %v538, %v416
      %v2773 = vmul.f32 %v539, %v416
      %v2774 = vmul.f32 %v540, %v416
      %v2775 = vmul.f32 %v541, %v416
      %v2776 = vmul.f32 %v542, %v416
      %v2777 = vmul.f32 %v543, %v416
      %v2778 = vmul.f32 %v544, %v416
      %v2779 = vmul.f32 %v545, %v416
      %v2780 = vmul.f32 %v546, %v416
      %v2781 = vmul.f32 %v547, %v416
      %v2782 = vmul.f32 %v548, %v416
      %v2783 = vadd.f32 %v2699, %v2769
      %v2784 = vadd.f32 %v2700, %v2770
      %v2785 = vadd.f32 %v2701, %v2771
      %v2786 = vadd.f32 %v2702, %v2772
      %v2787 = vadd.f32 %v2703, %v2773
      %v2788 = vadd.f32 %v2704, %v2774
      %v2789 = vadd.f32 %v2705, %v2775
      %v2790 = vadd.f32 %v2706, %v2776
      %v2791 = vadd.f32 %v2707, %v2777
      %v2792 = vadd.f32 %v2708, %v2778
      %v2793 = vadd.f32 %v2709, %v2779
      %v2794 = vadd.f32 %v2710, %v2780
      %v2795 = vadd.f32 %v2711, %v2781
      %v2796 = vadd.f32 %v2712, %v2782
      %v2797 = vmul.f32 %v606, %v417
      %v2798 = vmul.f32 %v607, %v417
      %v2799 = vmul.f32 %v608, %v417
      %v2800 = vmul.f32 %v609, %v417
      %v2801 = vmul.f32 %v610, %v417
      %v2802 = vmul.f32 %v611, %v417
      %v2803 = vmul.f32 %v612, %v417
      %v2804 = vmul.f32 %v613, %v417
      %v2805 = vmul.f32 %v614, %v417
      %v2806 = vmul.f32 %v615, %v417
      %v2807 = vmul.f32 %v616, %v417
      %v2808 = vmul.f32 %v617, %v417
      %v2809 = vmul.f32 %v618, %v417
      %v2810 = vmul.f32 %v619, %v417
      %v2811 = vadd.f32 %v2727, %v2797
      %v2812 = vadd.f32 %v2728, %v2798
      %v2813 = vadd.f32 %v2729, %v2799
      %v2814 = vadd.f32 %v2730, %v2800
      %v2815 = vadd.f32 %v2731, %v2801
      %v2816 = vadd.f32 %v2732, %v2802
      %v2817 = vadd.f32 %v2733, %v2803
      %v2818 = vadd.f32 %v2734, %v2804
      %v2819 = vadd.f32 %v2735, %v2805
      %v2820 = vadd.f32 %v2736, %v2806
      %v2821 = vadd.f32 %v2737, %v2807
      %v2822 = vadd.f32 %v2738, %v2808
      %v2823 = vadd.f32 %v2739, %v2809
      %v2824 = vadd.f32 %v2740, %v2810
      %v2825 = vmul.f32 %v607, %v418
      %v2826 = vmul.f32 %v608, %v418
      %v2827 = vmul.f32 %v609, %v418
      %v2828 = vmul.f32 %v610, %v418
      %v2829 = vmul.f32 %v611, %v418
      %v2830 = vmul.f32 %v612, %v418
      %v2831 = vmul.f32 %v613, %v418
      %v2832 = vmul.f32 %v614, %v418
      %v2833 = vmul.f32 %v615, %v418
      %v2834 = vmul.f32 %v616, %v418
      %v2835 = vmul.f32 %v617, %v418
      %v2836 = vmul.f32 %v618, %v418
      %v2837 = vmul.f32 %v619, %v418
      %v2838 = vmul.f32 %v620, %v418
      %v2839 = vadd.f32 %v2755, %v2825
      %v2840 = vadd.f32 %v2756, %v2826
      %v2841 = vadd.f32 %v2757, %v2827
      %v2842 = vadd.f32 %v2758, %v2828
      %v2843 = vadd.f32 %v2759, %v2829
      %v2844 = vadd.f32 %v2760, %v2830
      %v2845 = vadd.f32 %v2761, %v2831
      %v2846 = vadd.f32 %v2762, %v2832
      %v2847 = vadd.f32 %v2763, %v2833
      %v2848 = vadd.f32 %v2764, %v2834
      %v2849 = vadd.f32 %v2765, %v2835
      %v2850 = vadd.f32 %v2766, %v2836
      %v2851 = vadd.f32 %v2767, %v2837
      %v2852 = vadd.f32 %v2768, %v2838
      %v2853 = vmul.f32 %v608, %v419
      %v2854 = vmul.f32 %v609, %v419
      %v2855 = vmul.f32 %v610, %v419
      %v2856 = vmul.f32 %v611, %v419
      %v2857 = vmul.f32 %v612, %v419
      %v2858 = vmul.f32 %v613, %v419
      %v2859 = vmul.f32 %v614, %v419
      %v2860 = vmul.f32 %v615, %v419
      %v2861 = vmul.f32 %v616, %v419
      %v2862 = vmul.f32 %v617, %v419
      %v2863 = vmul.f32 %v618, %v419
      %v2864 = vmul.f32 %v619, %v419
      %v2865 = vmul.f32 %v620, %v419
      %v2866 = vmul.f32 %v621, %v419
      %v2867 = vadd.f32 %v2783, %v2853
      %v2868 = vadd.f32 %v2784, %v2854
      %v2869 = vadd.f32 %v2785, %v2855
      %v2870 = vadd.f32 %v2786, %v2856
      %v2871 = vadd.f32 %v2787, %v2857
      %v2872 = vadd.f32 %v2788, %v2858
      %v2873 = vadd.f32 %v2789, %v2859
      %v2874 = vadd.f32 %v2790, %v2860
      %v2875 = vadd.f32 %v2791, %v2861
      %v2876 = vadd.f32 %v2792, %v2862
      %v2877 = vadd.f32 %v2793, %v2863
      %v2878 = vadd.f32 %v2794, %v2864
      %v2879 = vadd.f32 %v2795, %v2865
      %v2880 = vadd.f32 %v2796, %v2866
      %v2881 = vadd.f32 %v2811, %v2839
      %v2882 = vadd.f32 %v2812, %v2840
      %v2883 = vadd.f32 %v2813, %v2841
      %v2884 = vadd.f32 %v2814, %v2842
      %v2885 = vadd.f32 %v2815, %v2843
      %v2886 = vadd.f32 %v2816, %v2844
      %v2887 = vadd.f32 %v2817, %v2845
      %v2888 = vadd.f32 %v2818, %v2846
      %v2889 = vadd.f32 %v2819, %v2847
      %v2890 = vadd.f32 %v2820, %v2848
      %v2891 = vadd.f32 %v2821, %v2849
      %v2892 = vadd.f32 %v2822, %v2850
      %v2893 = vadd.f32 %v2823, %v2851
      %v2894 = vadd.f32 %v2824, %v2852
      %v2895 = vadd.f32 %v2867, %v420
      %v2896 = vadd.f32 %v2868, %v420
      %v2897 = vadd.f32 %v2869, %v420
      %v2898 = vadd.f32 %v2870, %v420
      %v2899 = vadd.f32 %v2871, %v420
      %v2900 = vadd.f32 %v2872, %v420
      %v2901 = vadd.f32 %v2873, %v420
      %v2902 = vadd.f32 %v2874, %v420
      %v2903 = vadd.f32 %v2875, %v420
      %v2904 = vadd.f32 %v2876, %v420
      %v2905 = vadd.f32 %v2877, %v420
      %v2906 = vadd.f32 %v2878, %v420
      %v2907 = vadd.f32 %v2879, %v420
      %v2908 = vadd.f32 %v2880, %v420
      %v2909 = vadd.f32 %v2881, %v2895
      %v2910 = vadd.f32 %v2882, %v2896
      %v2911 = vadd.f32 %v2883, %v2897
      %v2912 = vadd.f32 %v2884, %v2898
      %v2913 = vadd.f32 %v2885, %v2899
      %v2914 = vadd.f32 %v2886, %v2900
      %v2915 = vadd.f32 %v2887, %v2901
      %v2916 = vadd.f32 %v2888, %v2902
      %v2917 = vadd.f32 %v2889, %v2903
      %v2918 = vadd.f32 %v2890, %v2904
      %v2919 = vadd.f32 %v2891, %v2905
      %v2920 = vadd.f32 %v2892, %v2906
      %v2921 = vadd.f32 %v2893, %v2907
      %v2922 = vadd.f32 %v2894, %v2908
      %s2923 = scalar_lea.vmem %s408, 113
      %2924 = vst [vmem:[%s2923] sm:$0x1] %v2909
      %2925 = vst [vmem:[%s2923 + $0x1] sm:$0x1] %v2910
      %2926 = vst [vmem:[%s2923 + $0x2] sm:$0x1] %v2911
      %2927 = vst [vmem:[%s2923 + $0x3] sm:$0x1] %v2912
      %2928 = vst [vmem:[%s2923 + $0x4] sm:$0x1] %v2913
      %2929 = vst [vmem:[%s2923 + $0x5] sm:$0x1] %v2914
      %2930 = vst [vmem:[%s2923 + $0x6] sm:$0x1] %v2915
      %2931 = vst [vmem:[%s2923 + $0x7] sm:$0x1] %v2916
      %2932 = vst [vmem:[%s2923 + $0x8] sm:$0x1] %v2917
      %2933 = vst [vmem:[%s2923 + $0x9] sm:$0x1] %v2918
      %2934 = vst [vmem:[%s2923 + $0xa] sm:$0x1] %v2919
      %2935 = vst [vmem:[%s2923 + $0xb] sm:$0x1] %v2920
      %2936 = vst [vmem:[%s2923 + $0xc] sm:$0x1] %v2921
      %2937 = vst [vmem:[%s2923 + $0xd] sm:$0x1] %v2922
      %v2938 = vmul.f32 %v517, %v412
      %v2939 = vmul.f32 %v518, %v413
      %v2940 = vadd.f32 %v2938, %v2939
      %v2941 = vmul.f32 %v533, %v415
      %v2942 = vadd.f32 %v2940, %v2941
      %v2943 = vmul.f32 %v534, %v416
      %v2944 = vadd.f32 %v2942, %v2943
      %v2945 = vmul.f32 %v606, %v418
      %v2946 = vadd.f32 %v2944, %v2945
      %v2947 = vmul.f32 %v607, %v419
      %v2948 = vadd.f32 %v2946, %v2947
      %v2949 = vadd.f32 %v2948, %v420
      %s2950 = scalar_lea.vmem %s408, 112
      %2951 = vst [vmem:[%s2950] sm:$0x1] %v2949
      %v2952 = vmul.f32 %v531, %v411
      %v2953 = vmul.f32 %v532, %v412
      %v2954 = vadd.f32 %v2952, %v2953
      %v2955 = vmul.f32 %v547, %v414
      %v2956 = vadd.f32 %v2954, %v2955
      %v2957 = vmul.f32 %v548, %v415
      %v2958 = vadd.f32 %v2956, %v2957
      %v2959 = vmul.f32 %v620, %v417
      %v2960 = vadd.f32 %v2958, %v2959
      %v2961 = vmul.f32 %v621, %v418
      %v2962 = vadd.f32 %v2960, %v2961
      %v2963 = vadd.f32 %v2962, %v420
      %s2964 = scalar_lea.vmem %s408, 127
      %2965 = vst [vmem:[%s2964] sm:$0x1] %v2963
      %s2966 = smul.u32 8, %s21
      %p2967 = scmp.lt.s32.totalorder %s20, 0
      %s2968 = scalar_select %p2967, %s20, 0
      %p2969 = scmp.lt.s32.totalorder %s2966, 15
      %s2970 = scalar_select %p2969, %s2966, 15
      %s2971 = smul.addr %s2970, 16
      %s2972 = smul.addr %s2968, 256
      %s2973 = sadd.s32 %s2971, %s2972
      %s2974 = scalar_lea.vmem %s5, %s2973
      // Predicated region
      $region41: #{_dwconv3x3_nchw.1} parent=39 // pred_check
        %p2975 = pneg %p200
      $region42: #{_dwconv3x3_nchw.1} parent=39 // pred_check_branch
        %2977 = sbr.rel (%p2975) target = $region44
      $region43: #{_dwconv3x3_nchw.1} parent=39 // pred_region
        %s2978 = smul.u32 8, %s21
      $region44: #{_dwconv3x3_nchw.1} parent=39 // pred_fallthru
        _
    $region40: #{_dwconv3x3_nchw.1} parent=5 // pred_fallthru
      _
    %p2979 = scmp.le.s32.totalorder 2, %s11
    // Predicated region
    $region45: #{_dwconv3x3_nchw.1} parent=5 // pred_check
      %p2980 = pneg %p2979
    $region46: #{_dwconv3x3_nchw.1} parent=5 // pred_check_branch
      %2982 = sbr.rel (%p2980) target = $region48
    $region47: #{_dwconv3x3_nchw.1} parent=5 // pred_region
      %s2983 = ssub.s32 %s11, 2
      // Predicated region
      $region49: #{_dwconv3x3_nchw.1} parent=47 // pred_check
        %p2984 = pneg %p206
      $region50: #{_dwconv3x3_nchw.1} parent=47 // pred_check_branch
        %2986 = sbr.rel (%p2984) target = $region52
      $region51: #{_dwconv3x3_nchw.1} parent=47 // pred_region
        %s2987 = smul.u32 8, %s23
        %p2988 = scmp.lt.s32.totalorder %s22, 0
        %s2989 = scalar_select %p2988, %s22, 0
        %p2990 = scmp.lt.s32.totalorder %s2987, 15
        %s2991 = scalar_select %p2990, %s2987, 15
        %s2992 = smul.addr %s2991, 16
        %s2993 = smul.addr %s2989, 256
        %s2994 = sadd.s32 %s2992, %s2993
        %s2995 = scalar_lea.vmem %s5, %s2994
      $region52: #{_dwconv3x3_nchw.1} parent=47 // pred_fallthru
        _
    $region48: #{_dwconv3x3_nchw.1} parent=5 // pred_fallthru
      _
  $region6: #{_dwconv3x3_nchw.1} parent=0 // loop_footer
    %s15 = sadd.s32 1, %s11
  $region7: #{_dwconv3x3_nchw.1} parent=0 // loop_footer_branch
    %10 = sbr.rel target = $region3
  $region8: #{_dwconv3x3_nchw.1} parent=0 // loop_exit
    _

</llo_original>
